<compile_context>
chip_gen: v6e
topology: v6e:2x2x1
jax: 0.10.0
libtpu: 0.0.40
codegen_flags: <defaults>
</compile_context>

<pallas_src>
import math
import jax
import jax.numpy as jnp
from jax.experimental import pallas as pl
from jax.experimental.pallas import tpu as pltpu

# Small VGG-style config: cfg = [C1, 'M', C2, 'M'], 3x3 convs with padding=1.
C0, C1, C2 = 4, 8, 16            # in_channels, conv1 out, conv2 out
H, W = 16, 16                    # input spatial size
H1p, W1p = H // 2, W // 2        # after pool1 -> (8, 8)
H2p, W2p = H1p // 2, W1p // 2    # after pool2 -> (4, 4)
K1 = 9 * C0                      # im2col K for conv1 (36)
K2 = 9 * C1                      # im2col K for conv2 (72)
OUT_F = C2 * H2p * W2p           # flattened features per image (256)


def _pool2x2_from_ref(src_ref, ho, wo):
    """2x2 max pool via strided reads from a VMEM scratch ref (b, 2ho, 2wo, c)."""
    p00 = src_ref[:, pl.ds(0, ho, 2), pl.ds(0, wo, 2), :]
    p01 = src_ref[:, pl.ds(0, ho, 2), pl.ds(1, wo, 2), :]
    p10 = src_ref[:, pl.ds(1, ho, 2), pl.ds(0, wo, 2), :]
    p11 = src_ref[:, pl.ds(1, ho, 2), pl.ds(1, wo, 2), :]
    return jnp.maximum(jnp.maximum(p00, p01), jnp.maximum(p10, p11))


def vgg_features_kernel(x_ref, w1_ref, b1_ref, w2_ref, b2_ref, o_ref,
                        cols1_ref, a1_ref, a1p_ref, cols2_ref, a2_ref):
    tb = x_ref.shape[0]                            # batch tile (static)
    n1 = tb * H * W                                # conv1 matmul rows
    n2 = tb * H1p * W1p                            # conv2 matmul rows

    # ----- conv1 (3x3, pad=1) + ReLU: single im2col matmul, K = 9*C0 -----
    # Windows are sliced straight from the (zero-haloed) input ref and stored, already
    # cast to bf16, into the matmul-shaped im2col scratch.
    for kh in range(3):
        for kw in range(3):
            t = kh * 3 + kw
            win = x_ref[:, kh:kh + H, kw:kw + W, :]            # (tb, H, W, C0) f32
            cols1_ref[:, t * C0:(t + 1) * C0] = (
                win.reshape(n1, C0).astype(jnp.bfloat16))
    y = jnp.dot(cols1_ref[...], w1_ref[...], preferred_element_type=jnp.float32)
    y = jnp.maximum(y + b1_ref[...], 0.0)                      # (n1, C1) f32
    a1_ref[...] = y.reshape(tb, H, W, C1)

    # ----- maxpool 2x2 -> zero-bordered conv2 input -----
    p1 = _pool2x2_from_ref(a1_ref, H1p, W1p)                   # (tb, 8, 8, C1)
    # zero only the 1-px halo (not the whole buffer); done every step so it is
    # correct even when the batch grid axis is split across TensorCores.
    a1p_ref[:, 0:1, :, :] = jnp.zeros((tb, 1, W1p + 2, C1), jnp.float32)
    a1p_ref[:, H1p + 1:H1p + 2, :, :] = jnp.zeros((tb, 1, W1p + 2, C1), jnp.float32)
    a1p_ref[:, :, 0:1, :] = jnp.zeros((tb, H1p + 2, 1, C1), jnp.float32)
    a1p_ref[:, :, W1p + 1:W1p + 2, :] = jnp.zeros((tb, H1p + 2, 1, C1), jnp.float32)
    a1p_ref[:, 1:1 + H1p, 1:1 + W1p, :] = p1

    # ----- conv2 (3x3, pad=1) + ReLU: single im2col matmul, K = 9*C1 -----
    for kh in range(3):
        for kw in range(3):
            t = kh * 3 + kw
            win = a1p_ref[:, kh:kh + H1p, kw:kw + W1p, :]      # (tb, 8, 8, C1) f32
            cols2_ref[:, t * C1:(t + 1) * C1] = (
                win.reshape(n2, C1).astype(jnp.bfloat16))
    z = jnp.dot(cols2_ref[...], w2_ref[...], preferred_element_type=jnp.float32)
    z = jnp.maximum(z + b2_ref[...], 0.0)                      # (n2, C2) f32
    a2_ref[...] = z.reshape(tb, H1p, W1p, C2)

    # ----- maxpool 2x2, then torch C-major flatten order (c, h, w) per image -----
    p2 = _pool2x2_from_ref(a2_ref, H2p, W2p)       # (tb, 4, 4, C2)
    p2 = p2.reshape(tb, H2p * W2p, C2)             # (tb, h*w, c)
    o_ref[...] = jnp.swapaxes(p2, 1, 2)            # (tb, c, h*w) == torch view order


def vgg_conv_blocks(x_nchw, params, *, batch_tile=32):
    """Forward pass of VGGConvBlocks: features(x) then flatten to (B, -1)."""
    w1, b1, w2, b2 = params
    B = x_nchw.shape[0]
    # Batch tile: big enough to amortize the ~0.35us per-grid-step overhead and feed the
    # MXU TB*H*W rows, but capped at B//2 so B>=2 always yields >=2 grid steps (lets the
    # "parallel" batch axis split across both TensorCores on v7x).
    TB = max(1, min(batch_tile, max(1, B // 2)))
    Bp = ((B + TB - 1) // TB) * TB

    # Cheap XLA glue on the tiny input: NCHW -> NHWC, pad=1 halo, pad batch to TB multiple.
    x = jnp.transpose(x_nchw, (0, 2, 3, 1)).astype(jnp.float32)
    x = jnp.pad(x, ((0, Bp - B), (1, 1), (1, 1), (0, 0)))

    # Weights reshaped to im2col form (K = (kh, kw, cin) major order) and cast to bf16
    # (default MXU precision truncates to bf16 anyway); biases stay f32 as (1, C).
    w1r = w1.reshape(K1, C1).astype(jnp.bfloat16)
    w2r = w2.reshape(K2, C2).astype(jnp.bfloat16)
    b1r = jnp.reshape(b1, (1, C1)).astype(jnp.float32)
    b2r = jnp.reshape(b2, (1, C2)).astype(jnp.float32)

    flops = 2 * Bp * (H * W * K1 * C1 + H1p * W1p * K2 * C2)
    bytes_accessed = (x.size * 4 + Bp * OUT_F * 4
                      + (K1 * C1 + K2 * C2) * 2 + (C1 + C2) * 4)

    out = pl.pallas_call(
        vgg_features_kernel,
        out_shape=jax.ShapeDtypeStruct((Bp, C2, H2p * W2p), jnp.float32),
        grid_spec=pltpu.PrefetchScalarGridSpec(
            num_scalar_prefetch=0,
            grid=(Bp // TB,),
            in_specs=[
                pl.BlockSpec((TB, H + 2, W + 2, C0), lambda b: (b, 0, 0, 0)),
                pl.BlockSpec((K1, C1), lambda b: (0, 0)),
                pl.BlockSpec((1, C1), lambda b: (0, 0)),
                pl.BlockSpec((K2, C2), lambda b: (0, 0)),
                pl.BlockSpec((1, C2), lambda b: (0, 0)),
            ],
            out_specs=pl.BlockSpec((TB, C2, H2p * W2p), lambda b: (b, 0, 0)),
            scratch_shapes=[
                pltpu.VMEM((TB * H * W, K1), jnp.bfloat16),           # conv1 im2col (matmul shape)
                pltpu.VMEM((TB, H, W, C1), jnp.float32),              # conv1 + relu
                pltpu.VMEM((TB, H1p + 2, W1p + 2, C1), jnp.float32),  # pool1, zero halo
                pltpu.VMEM((TB * H1p * W1p, K2), jnp.bfloat16),       # conv2 im2col (matmul shape)
                pltpu.VMEM((TB, H1p, W1p, C2), jnp.float32),          # conv2 + relu
            ],
        ),
        compiler_params=pltpu.CompilerParams(
            dimension_semantics=("parallel",),
            vmem_limit_bytes=48 * 1024 * 1024,
        ),
        cost_estimate=pl.CostEstimate(
            flops=flops, transcendentals=0, bytes_accessed=bytes_accessed),
    )(x, w1r, b1r, w2r, b2r)

    # Kernel already produced torch C-major (c, h, w) order -> this reshape is free
    # (metadata only), and the slice only triggers when the batch was padded.
    return out.reshape(Bp, -1)[:B]


def init_params(key):
    """Deterministic init matching the module: w ~ N(0, sqrt(2/(k*k*out_ch))), b = 0."""
    k1, k2 = jax.random.split(key)
    std1 = math.sqrt(2.0 / (3 * 3 * C1))
    std2 = math.sqrt(2.0 / (3 * 3 * C2))
    w1 = jax.random.normal(k1, (3, 3, C0, C1), jnp.float32) * std1   # HWIO
    b1 = jnp.zeros((C1,), jnp.float32)
    w2 = jax.random.normal(k2, (3, 3, C1, C2), jnp.float32) * std2   # HWIO
    b2 = jnp.zeros((C2,), jnp.float32)
    return w1, b1, w2, b2


def reference_forward(x_nchw, params):
    """Pure-JAX reference for the same forward pass (for verification only)."""
    w1, b1, w2, b2 = params
    dn = ('NHWC', 'HWIO', 'NHWC')

    def pool(y):
        b, h, w, c = y.shape
        return y.reshape(b, h // 2, 2, w // 2, 2, c).max(axis=(2, 4))

    x = jnp.transpose(x_nchw, (0, 2, 3, 1))
    y = jax.lax.conv_general_dilated(x, w1, (1, 1), 'SAME', dimension_numbers=dn) + b1
    y = pool(jnp.maximum(y, 0.0))
    y = jax.lax.conv_general_dilated(y, w2, (1, 1), 'SAME', dimension_numbers=dn) + b2
    y = pool(jnp.maximum(y, 0.0))
    return jnp.transpose(y, (0, 3, 1, 2)).reshape(y.shape[0], -1)


if __name__ == "__main__":
    key = jax.random.PRNGKey(0)
    kx, kp = jax.random.split(key)
    x = jax.random.normal(kx, (2, C0, H, W), jnp.float32)   # NCHW, like PyTorch input
    params = init_params(kp)

    out = jax.block_until_ready(vgg_conv_blocks(x, params))
    ref = reference_forward(x, params)

    assert out.shape == (2, OUT_F), out.shape
    max_err = float(jnp.max(jnp.abs(out - ref)))
    assert jnp.allclose(out, ref, atol=2e-2, rtol=2e-2), max_err
    print("KERNEL_OK")
</pallas_src>

<mosaic_0001>
module attributes {stable_mosaic.version = 11 : i64} {
  func.func @vgg_features_kernel(%arg0: i32, %arg1: memref<1x18x18x4xf32, #tpu.memory_space<vmem>>, %arg2: memref<36x8xbf16, #tpu.memory_space<vmem>>, %arg3: memref<1x8xf32, #tpu.memory_space<vmem>>, %arg4: memref<72x16xbf16, #tpu.memory_space<vmem>>, %arg5: memref<1x16xf32, #tpu.memory_space<vmem>>, %arg6: memref<1x16x16xf32, #tpu.memory_space<vmem>>, %arg7: memref<256x36xbf16, #tpu.memory_space<vmem>>, %arg8: memref<1x16x16x8xf32, #tpu.memory_space<vmem>>, %arg9: memref<1x10x10x8xf32, #tpu.memory_space<vmem>>, %arg10: memref<64x72xbf16, #tpu.memory_space<vmem>>, %arg11: memref<1x8x8x16xf32, #tpu.memory_space<vmem>>) attributes {dimension_semantics = [#tpu.dimension_semantics<parallel>], iteration_bounds = array<i64: 2>, scalar_prefetch = 0 : i64, scratch_operands = 5 : i64, tpu.core_type = #tpu.core_type<tc>, window_params = [{transform_indices = @transform_0, window_bounds = array<i64: 1, 18, 18, 4>}, {pipeline_mode = #tpu.pipeline_mode<synchronous>, transform_indices = @transform_1, window_bounds = array<i64: 36, 8>}, {pipeline_mode = #tpu.pipeline_mode<synchronous>, transform_indices = @transform_2, window_bounds = array<i64: 1, 8>}, {pipeline_mode = #tpu.pipeline_mode<synchronous>, transform_indices = @transform_3, window_bounds = array<i64: 72, 16>}, {pipeline_mode = #tpu.pipeline_mode<synchronous>, transform_indices = @transform_4, window_bounds = array<i64: 1, 16>}, {transform_indices = @transform_5, window_bounds = array<i64: 1, 16, 16>}]} {
    %c0 = arith.constant 0 : index
    %c0_0 = arith.constant 0 : index
    %c0_1 = arith.constant 0 : index
    %c0_2 = arith.constant 0 : index
    %0 = vector.load %arg1[%c0, %c0_0, %c0_1, %c0_2] : memref<1x18x18x4xf32, #tpu.memory_space<vmem>>, vector<1x16x16x4xf32>
    %1 = vector.shape_cast %0 : vector<1x16x16x4xf32> to vector<256x4xf32>
    %2 = arith.truncf %1 : vector<256x4xf32> to vector<256x4xbf16>
    %c0_3 = arith.constant 0 : index
    %c0_4 = arith.constant 0 : index
    %3 = vector.load %arg7[%c0_3, %c0_4] : memref<256x36xbf16, #tpu.memory_space<vmem>>, vector<256x4xbf16>
    tpu.vector_store %arg7[%c0_3, %c0_4], %2 {strides = array<i32>} : memref<256x36xbf16, #tpu.memory_space<vmem>>, vector<256x4xbf16>,
    %c0_5 = arith.constant 0 : index
    %c0_6 = arith.constant 0 : index
    %c1 = arith.constant 1 : index
    %c0_7 = arith.constant 0 : index
    %4 = vector.load %arg1[%c0_5, %c0_6, %c1, %c0_7] : memref<1x18x18x4xf32, #tpu.memory_space<vmem>>, vector<1x16x16x4xf32>
    %5 = vector.shape_cast %4 : vector<1x16x16x4xf32> to vector<256x4xf32>
    %6 = arith.truncf %5 : vector<256x4xf32> to vector<256x4xbf16>
    %c0_8 = arith.constant 0 : index
    %c4 = arith.constant 4 : index
    %7 = vector.load %arg7[%c0_8, %c4] : memref<256x36xbf16, #tpu.memory_space<vmem>>, vector<256x4xbf16>
    tpu.vector_store %arg7[%c0_8, %c4], %6 {strides = array<i32>} : memref<256x36xbf16, #tpu.memory_space<vmem>>, vector<256x4xbf16>,
    %c0_9 = arith.constant 0 : index
    %c0_10 = arith.constant 0 : index
    %c2 = arith.constant 2 : index
    %c0_11 = arith.constant 0 : index
    %8 = vector.load %arg1[%c0_9, %c0_10, %c2, %c0_11] : memref<1x18x18x4xf32, #tpu.memory_space<vmem>>, vector<1x16x16x4xf32>
    %9 = vector.shape_cast %8 : vector<1x16x16x4xf32> to vector<256x4xf32>
    %10 = arith.truncf %9 : vector<256x4xf32> to vector<256x4xbf16>
    %c0_12 = arith.constant 0 : index
    %c8 = arith.constant 8 : index
    %11 = vector.load %arg7[%c0_12, %c8] : memref<256x36xbf16, #tpu.memory_space<vmem>>, vector<256x4xbf16>
    tpu.vector_store %arg7[%c0_12, %c8], %10 {strides = array<i32>} : memref<256x36xbf16, #tpu.memory_space<vmem>>, vector<256x4xbf16>,
    %c0_13 = arith.constant 0 : index
    %c1_14 = arith.constant 1 : index
    %c0_15 = arith.constant 0 : index
    %c0_16 = arith.constant 0 : index
    %12 = vector.load %arg1[%c0_13, %c1_14, %c0_15, %c0_16] : memref<1x18x18x4xf32, #tpu.memory_space<vmem>>, vector<1x16x16x4xf32>
    %13 = vector.shape_cast %12 : vector<1x16x16x4xf32> to vector<256x4xf32>
    %14 = arith.truncf %13 : vector<256x4xf32> to vector<256x4xbf16>
    %c0_17 = arith.constant 0 : index
    %c12 = arith.constant 12 : index
    %15 = vector.load %arg7[%c0_17, %c12] : memref<256x36xbf16, #tpu.memory_space<vmem>>, vector<256x4xbf16>
    tpu.vector_store %arg7[%c0_17, %c12], %14 {strides = array<i32>} : memref<256x36xbf16, #tpu.memory_space<vmem>>, vector<256x4xbf16>,
    %c0_18 = arith.constant 0 : index
    %c1_19 = arith.constant 1 : index
    %c1_20 = arith.constant 1 : index
    %c0_21 = arith.constant 0 : index
    %16 = vector.load %arg1[%c0_18, %c1_19, %c1_20, %c0_21] : memref<1x18x18x4xf32, #tpu.memory_space<vmem>>, vector<1x16x16x4xf32>
    %17 = vector.shape_cast %16 : vector<1x16x16x4xf32> to vector<256x4xf32>
    %18 = arith.truncf %17 : vector<256x4xf32> to vector<256x4xbf16>
    %c0_22 = arith.constant 0 : index
    %c16 = arith.constant 16 : index
    %19 = vector.load %arg7[%c0_22, %c16] : memref<256x36xbf16, #tpu.memory_space<vmem>>, vector<256x4xbf16>
    tpu.vector_store %arg7[%c0_22, %c16], %18 {strides = array<i32>} : memref<256x36xbf16, #tpu.memory_space<vmem>>, vector<256x4xbf16>,
    %c0_23 = arith.constant 0 : index
    %c1_24 = arith.constant 1 : index
    %c2_25 = arith.constant 2 : index
    %c0_26 = arith.constant 0 : index
    %20 = vector.load %arg1[%c0_23, %c1_24, %c2_25, %c0_26] : memref<1x18x18x4xf32, #tpu.memory_space<vmem>>, vector<1x16x16x4xf32>
    %21 = vector.shape_cast %20 : vector<1x16x16x4xf32> to vector<256x4xf32>
    %22 = arith.truncf %21 : vector<256x4xf32> to vector<256x4xbf16>
    %c0_27 = arith.constant 0 : index
    %c20 = arith.constant 20 : index
    %23 = vector.load %arg7[%c0_27, %c20] : memref<256x36xbf16, #tpu.memory_space<vmem>>, vector<256x4xbf16>
    tpu.vector_store %arg7[%c0_27, %c20], %22 {strides = array<i32>} : memref<256x36xbf16, #tpu.memory_space<vmem>>, vector<256x4xbf16>,
    %c0_28 = arith.constant 0 : index
    %c2_29 = arith.constant 2 : index
    %c0_30 = arith.constant 0 : index
    %c0_31 = arith.constant 0 : index
    %24 = vector.load %arg1[%c0_28, %c2_29, %c0_30, %c0_31] : memref<1x18x18x4xf32, #tpu.memory_space<vmem>>, vector<1x16x16x4xf32>
    %25 = vector.shape_cast %24 : vector<1x16x16x4xf32> to vector<256x4xf32>
    %26 = arith.truncf %25 : vector<256x4xf32> to vector<256x4xbf16>
    %c0_32 = arith.constant 0 : index
    %c24 = arith.constant 24 : index
    %27 = vector.load %arg7[%c0_32, %c24] : memref<256x36xbf16, #tpu.memory_space<vmem>>, vector<256x4xbf16>
    tpu.vector_store %arg7[%c0_32, %c24], %26 {strides = array<i32>} : memref<256x36xbf16, #tpu.memory_space<vmem>>, vector<256x4xbf16>,
    %c0_33 = arith.constant 0 : index
    %c2_34 = arith.constant 2 : index
    %c1_35 = arith.constant 1 : index
    %c0_36 = arith.constant 0 : index
    %28 = vector.load %arg1[%c0_33, %c2_34, %c1_35, %c0_36] : memref<1x18x18x4xf32, #tpu.memory_space<vmem>>, vector<1x16x16x4xf32>
    %29 = vector.shape_cast %28 : vector<1x16x16x4xf32> to vector<256x4xf32>
    %30 = arith.truncf %29 : vector<256x4xf32> to vector<256x4xbf16>
    %c0_37 = arith.constant 0 : index
    %c28 = arith.constant 28 : index
    %31 = vector.load %arg7[%c0_37, %c28] : memref<256x36xbf16, #tpu.memory_space<vmem>>, vector<256x4xbf16>
    tpu.vector_store %arg7[%c0_37, %c28], %30 {strides = array<i32>} : memref<256x36xbf16, #tpu.memory_space<vmem>>, vector<256x4xbf16>,
    %c0_38 = arith.constant 0 : index
    %c2_39 = arith.constant 2 : index
    %c2_40 = arith.constant 2 : index
    %c0_41 = arith.constant 0 : index
    %32 = vector.load %arg1[%c0_38, %c2_39, %c2_40, %c0_41] : memref<1x18x18x4xf32, #tpu.memory_space<vmem>>, vector<1x16x16x4xf32>
    %33 = vector.shape_cast %32 : vector<1x16x16x4xf32> to vector<256x4xf32>
    %34 = arith.truncf %33 : vector<256x4xf32> to vector<256x4xbf16>
    %c0_42 = arith.constant 0 : index
    %c32 = arith.constant 32 : index
    %35 = vector.load %arg7[%c0_42, %c32] : memref<256x36xbf16, #tpu.memory_space<vmem>>, vector<256x4xbf16>
    tpu.vector_store %arg7[%c0_42, %c32], %34 {strides = array<i32>} : memref<256x36xbf16, #tpu.memory_space<vmem>>, vector<256x4xbf16>,
    %c0_43 = arith.constant 0 : index
    %c0_44 = arith.constant 0 : index
    %36 = vector.load %arg7[%c0_43, %c0_44] : memref<256x36xbf16, #tpu.memory_space<vmem>>, vector<256x36xbf16>
    %c0_45 = arith.constant 0 : index
    %c0_46 = arith.constant 0 : index
    %37 = vector.load %arg2[%c0_45, %c0_46] : memref<36x8xbf16, #tpu.memory_space<vmem>>, vector<36x8xbf16>
    %cst = arith.constant dense<0.000000e+00> : vector<256x8xf32>
    %38 = tpu.matmul %36, %37, %cst {dimension_numbers = #tpu.dot_dimension_numbers<[1], [0], [0], [1], [0, 0, 1, 1], [], []>} : vector<256x36xbf16>, vector<36x8xbf16>, vector<256x8xf32> -> vector<256x8xf32>
    %c0_47 = arith.constant 0 : index
    %c0_48 = arith.constant 0 : index
    %39 = vector.load %arg3[%c0_47, %c0_48] : memref<1x8xf32, #tpu.memory_space<vmem>>, vector<1x8xf32>
    %40 = vector.broadcast %39 : vector<1x8xf32> to vector<256x8xf32>
    %41 = arith.addf %38, %40 : vector<256x8xf32>
    %cst_49 = arith.constant 0.000000e+00 : f32
    %42 = vector.broadcast %cst_49 : f32 to vector<256x8xf32>
    %43 = arith.maximumf %41, %42 : vector<256x8xf32>
    %44 = vector.shape_cast %43 : vector<256x8xf32> to vector<1x16x16x8xf32>
    %c0_50 = arith.constant 0 : index
    %c0_51 = arith.constant 0 : index
    %c0_52 = arith.constant 0 : index
    %c0_53 = arith.constant 0 : index
    %45 = vector.load %arg8[%c0_50, %c0_51, %c0_52, %c0_53] : memref<1x16x16x8xf32, #tpu.memory_space<vmem>>, vector<1x16x16x8xf32>
    tpu.vector_store %arg8[%c0_50, %c0_51, %c0_52, %c0_53], %44 {strides = array<i32>} : memref<1x16x16x8xf32, #tpu.memory_space<vmem>>, vector<1x16x16x8xf32>,
    %c0_54 = arith.constant 0 : index
    %c0_55 = arith.constant 0 : index
    %c0_56 = arith.constant 0 : index
    %c0_57 = arith.constant 0 : index
    %46 = tpu.strided_load %arg8[%c0_54, %c0_55, %c0_56, %c0_57] {strides = array<i32: 1, 2, 2, 1>} : memref<1x16x16x8xf32, #tpu.memory_space<vmem>>, vector<1x8x8x8xf32>
    %c0_58 = arith.constant 0 : index
    %c0_59 = arith.constant 0 : index
    %c1_60 = arith.constant 1 : index
    %c0_61 = arith.constant 0 : index
    %47 = tpu.strided_load %arg8[%c0_58, %c0_59, %c1_60, %c0_61] {strides = array<i32: 1, 2, 2, 1>} : memref<1x16x16x8xf32, #tpu.memory_space<vmem>>, vector<1x8x8x8xf32>
    %c0_62 = arith.constant 0 : index
    %c1_63 = arith.constant 1 : index
    %c0_64 = arith.constant 0 : index
    %c0_65 = arith.constant 0 : index
    %48 = tpu.strided_load %arg8[%c0_62, %c1_63, %c0_64, %c0_65] {strides = array<i32: 1, 2, 2, 1>} : memref<1x16x16x8xf32, #tpu.memory_space<vmem>>, vector<1x8x8x8xf32>
    %c0_66 = arith.constant 0 : index
    %c1_67 = arith.constant 1 : index
    %c1_68 = arith.constant 1 : index
    %c0_69 = arith.constant 0 : index
    %49 = tpu.strided_load %arg8[%c0_66, %c1_67, %c1_68, %c0_69] {strides = array<i32: 1, 2, 2, 1>} : memref<1x16x16x8xf32, #tpu.memory_space<vmem>>, vector<1x8x8x8xf32>
    %50 = arith.maximumf %46, %47 : vector<1x8x8x8xf32>
    %51 = arith.maximumf %48, %49 : vector<1x8x8x8xf32>
    %52 = arith.maximumf %50, %51 : vector<1x8x8x8xf32>
    %cst_70 = arith.constant 0.000000e+00 : f32
    %53 = vector.broadcast %cst_70 : f32 to vector<1x1x10x8xf32>
    %c0_71 = arith.constant 0 : index
    %c0_72 = arith.constant 0 : index
    %c0_73 = arith.constant 0 : index
    %c0_74 = arith.constant 0 : index
    %54 = vector.load %arg9[%c0_71, %c0_72, %c0_73, %c0_74] : memref<1x10x10x8xf32, #tpu.memory_space<vmem>>, vector<1x1x10x8xf32>
    tpu.vector_store %arg9[%c0_71, %c0_72, %c0_73, %c0_74], %53 {strides = array<i32>} : memref<1x10x10x8xf32, #tpu.memory_space<vmem>>, vector<1x1x10x8xf32>,
    %cst_75 = arith.constant 0.000000e+00 : f32
    %55 = vector.broadcast %cst_75 : f32 to vector<1x1x10x8xf32>
    %c0_76 = arith.constant 0 : index
    %c9 = arith.constant 9 : index
    %c0_77 = arith.constant 0 : index
    %c0_78 = arith.constant 0 : index
    %56 = vector.load %arg9[%c0_76, %c9, %c0_77, %c0_78] : memref<1x10x10x8xf32, #tpu.memory_space<vmem>>, vector<1x1x10x8xf32>
    tpu.vector_store %arg9[%c0_76, %c9, %c0_77, %c0_78], %55 {strides = array<i32>} : memref<1x10x10x8xf32, #tpu.memory_space<vmem>>, vector<1x1x10x8xf32>,
    %cst_79 = arith.constant 0.000000e+00 : f32
    %57 = vector.broadcast %cst_79 : f32 to vector<1x10x1x8xf32>
    %c0_80 = arith.constant 0 : index
    %c0_81 = arith.constant 0 : index
    %c0_82 = arith.constant 0 : index
    %c0_83 = arith.constant 0 : index
    %58 = vector.load %arg9[%c0_80, %c0_81, %c0_82, %c0_83] : memref<1x10x10x8xf32, #tpu.memory_space<vmem>>, vector<1x10x1x8xf32>
    tpu.vector_store %arg9[%c0_80, %c0_81, %c0_82, %c0_83], %57 {strides = array<i32>} : memref<1x10x10x8xf32, #tpu.memory_space<vmem>>, vector<1x10x1x8xf32>,
    %cst_84 = arith.constant 0.000000e+00 : f32
    %59 = vector.broadcast %cst_84 : f32 to vector<1x10x1x8xf32>
    %c0_85 = arith.constant 0 : index
    %c0_86 = arith.constant 0 : index
    %c9_87 = arith.constant 9 : index
    %c0_88 = arith.constant 0 : index
    %60 = vector.load %arg9[%c0_85, %c0_86, %c9_87, %c0_88] : memref<1x10x10x8xf32, #tpu.memory_space<vmem>>, vector<1x10x1x8xf32>
    tpu.vector_store %arg9[%c0_85, %c0_86, %c9_87, %c0_88], %59 {strides = array<i32>} : memref<1x10x10x8xf32, #tpu.memory_space<vmem>>, vector<1x10x1x8xf32>,
    %c0_89 = arith.constant 0 : index
    %c1_90 = arith.constant 1 : index
    %c1_91 = arith.constant 1 : index
    %c0_92 = arith.constant 0 : index
    %61 = vector.load %arg9[%c0_89, %c1_90, %c1_91, %c0_92] : memref<1x10x10x8xf32, #tpu.memory_space<vmem>>, vector<1x8x8x8xf32>
    tpu.vector_store %arg9[%c0_89, %c1_90, %c1_91, %c0_92], %52 {strides = array<i32>} : memref<1x10x10x8xf32, #tpu.memory_space<vmem>>, vector<1x8x8x8xf32>,
    %c0_93 = arith.constant 0 : index
    %c0_94 = arith.constant 0 : index
    %c0_95 = arith.constant 0 : index
    %c0_96 = arith.constant 0 : index
    %62 = vector.load %arg9[%c0_93, %c0_94, %c0_95, %c0_96] : memref<1x10x10x8xf32, #tpu.memory_space<vmem>>, vector<1x8x8x8xf32>
    %63 = vector.shape_cast %62 : vector<1x8x8x8xf32> to vector<64x8xf32>
    %64 = arith.truncf %63 : vector<64x8xf32> to vector<64x8xbf16>
    %c0_97 = arith.constant 0 : index
    %c0_98 = arith.constant 0 : index
    %65 = vector.load %arg10[%c0_97, %c0_98] : memref<64x72xbf16, #tpu.memory_space<vmem>>, vector<64x8xbf16>
    tpu.vector_store %arg10[%c0_97, %c0_98], %64 {strides = array<i32>} : memref<64x72xbf16, #tpu.memory_space<vmem>>, vector<64x8xbf16>,
    %c0_99 = arith.constant 0 : index
    %c0_100 = arith.constant 0 : index
    %c1_101 = arith.constant 1 : index
    %c0_102 = arith.constant 0 : index
    %66 = vector.load %arg9[%c0_99, %c0_100, %c1_101, %c0_102] : memref<1x10x10x8xf32, #tpu.memory_space<vmem>>, vector<1x8x8x8xf32>
    %67 = vector.shape_cast %66 : vector<1x8x8x8xf32> to vector<64x8xf32>
    %68 = arith.truncf %67 : vector<64x8xf32> to vector<64x8xbf16>
    %c0_103 = arith.constant 0 : index
    %c8_104 = arith.constant 8 : index
    %69 = vector.load %arg10[%c0_103, %c8_104] : memref<64x72xbf16, #tpu.memory_space<vmem>>, vector<64x8xbf16>
    tpu.vector_store %arg10[%c0_103, %c8_104], %68 {strides = array<i32>} : memref<64x72xbf16, #tpu.memory_space<vmem>>, vector<64x8xbf16>,
    %c0_105 = arith.constant 0 : index
    %c0_106 = arith.constant 0 : index
    %c2_107 = arith.constant 2 : index
    %c0_108 = arith.constant 0 : index
    %70 = vector.load %arg9[%c0_105, %c0_106, %c2_107, %c0_108] : memref<1x10x10x8xf32, #tpu.memory_space<vmem>>, vector<1x8x8x8xf32>
    %71 = vector.shape_cast %70 : vector<1x8x8x8xf32> to vector<64x8xf32>
    %72 = arith.truncf %71 : vector<64x8xf32> to vector<64x8xbf16>
    %c0_109 = arith.constant 0 : index
    %c16_110 = arith.constant 16 : index
    %73 = vector.load %arg10[%c0_109, %c16_110] : memref<64x72xbf16, #tpu.memory_space<vmem>>, vector<64x8xbf16>
    tpu.vector_store %arg10[%c0_109, %c16_110], %72 {strides = array<i32>} : memref<64x72xbf16, #tpu.memory_space<vmem>>, vector<64x8xbf16>,
    %c0_111 = arith.constant 0 : index
    %c1_112 = arith.constant 1 : index
    %c0_113 = arith.constant 0 : index
    %c0_114 = arith.constant 0 : index
    %74 = vector.load %arg9[%c0_111, %c1_112, %c0_113, %c0_114] : memref<1x10x10x8xf32, #tpu.memory_space<vmem>>, vector<1x8x8x8xf32>
    %75 = vector.shape_cast %74 : vector<1x8x8x8xf32> to vector<64x8xf32>
    %76 = arith.truncf %75 : vector<64x8xf32> to vector<64x8xbf16>
    %c0_115 = arith.constant 0 : index
    %c24_116 = arith.constant 24 : index
    %77 = vector.load %arg10[%c0_115, %c24_116] : memref<64x72xbf16, #tpu.memory_space<vmem>>, vector<64x8xbf16>
    tpu.vector_store %arg10[%c0_115, %c24_116], %76 {strides = array<i32>} : memref<64x72xbf16, #tpu.memory_space<vmem>>, vector<64x8xbf16>,
    %c0_117 = arith.constant 0 : index
    %c1_118 = arith.constant 1 : index
    %c1_119 = arith.constant 1 : index
    %c0_120 = arith.constant 0 : index
    %78 = vector.load %arg9[%c0_117, %c1_118, %c1_119, %c0_120] : memref<1x10x10x8xf32, #tpu.memory_space<vmem>>, vector<1x8x8x8xf32>
    %79 = vector.shape_cast %78 : vector<1x8x8x8xf32> to vector<64x8xf32>
    %80 = arith.truncf %79 : vector<64x8xf32> to vector<64x8xbf16>
    %c0_121 = arith.constant 0 : index
    %c32_122 = arith.constant 32 : index
    %81 = vector.load %arg10[%c0_121, %c32_122] : memref<64x72xbf16, #tpu.memory_space<vmem>>, vector<64x8xbf16>
    tpu.vector_store %arg10[%c0_121, %c32_122], %80 {strides = array<i32>} : memref<64x72xbf16, #tpu.memory_space<vmem>>, vector<64x8xbf16>,
    %c0_123 = arith.constant 0 : index
    %c1_124 = arith.constant 1 : index
    %c2_125 = arith.constant 2 : index
    %c0_126 = arith.constant 0 : index
    %82 = vector.load %arg9[%c0_123, %c1_124, %c2_125, %c0_126] : memref<1x10x10x8xf32, #tpu.memory_space<vmem>>, vector<1x8x8x8xf32>
    %83 = vector.shape_cast %82 : vector<1x8x8x8xf32> to vector<64x8xf32>
    %84 = arith.truncf %83 : vector<64x8xf32> to vector<64x8xbf16>
    %c0_127 = arith.constant 0 : index
    %c40 = arith.constant 40 : index
    %85 = vector.load %arg10[%c0_127, %c40] : memref<64x72xbf16, #tpu.memory_space<vmem>>, vector<64x8xbf16>
    tpu.vector_store %arg10[%c0_127, %c40], %84 {strides = array<i32>} : memref<64x72xbf16, #tpu.memory_space<vmem>>, vector<64x8xbf16>,
    %c0_128 = arith.constant 0 : index
    %c2_129 = arith.constant 2 : index
    %c0_130 = arith.constant 0 : index
    %c0_131 = arith.constant 0 : index
    %86 = vector.load %arg9[%c0_128, %c2_129, %c0_130, %c0_131] : memref<1x10x10x8xf32, #tpu.memory_space<vmem>>, vector<1x8x8x8xf32>
    %87 = vector.shape_cast %86 : vector<1x8x8x8xf32> to vector<64x8xf32>
    %88 = arith.truncf %87 : vector<64x8xf32> to vector<64x8xbf16>
    %c0_132 = arith.constant 0 : index
    %c48 = arith.constant 48 : index
    %89 = vector.load %arg10[%c0_132, %c48] : memref<64x72xbf16, #tpu.memory_space<vmem>>, vector<64x8xbf16>
    tpu.vector_store %arg10[%c0_132, %c48], %88 {strides = array<i32>} : memref<64x72xbf16, #tpu.memory_space<vmem>>, vector<64x8xbf16>,
    %c0_133 = arith.constant 0 : index
    %c2_134 = arith.constant 2 : index
    %c1_135 = arith.constant 1 : index
    %c0_136 = arith.constant 0 : index
    %90 = vector.load %arg9[%c0_133, %c2_134, %c1_135, %c0_136] : memref<1x10x10x8xf32, #tpu.memory_space<vmem>>, vector<1x8x8x8xf32>
    %91 = vector.shape_cast %90 : vector<1x8x8x8xf32> to vector<64x8xf32>
    %92 = arith.truncf %91 : vector<64x8xf32> to vector<64x8xbf16>
    %c0_137 = arith.constant 0 : index
    %c56 = arith.constant 56 : index
    %93 = vector.load %arg10[%c0_137, %c56] : memref<64x72xbf16, #tpu.memory_space<vmem>>, vector<64x8xbf16>
    tpu.vector_store %arg10[%c0_137, %c56], %92 {strides = array<i32>} : memref<64x72xbf16, #tpu.memory_space<vmem>>, vector<64x8xbf16>,
    %c0_138 = arith.constant 0 : index
    %c2_139 = arith.constant 2 : index
    %c2_140 = arith.constant 2 : index
    %c0_141 = arith.constant 0 : index
    %94 = vector.load %arg9[%c0_138, %c2_139, %c2_140, %c0_141] : memref<1x10x10x8xf32, #tpu.memory_space<vmem>>, vector<1x8x8x8xf32>
    %95 = vector.shape_cast %94 : vector<1x8x8x8xf32> to vector<64x8xf32>
    %96 = arith.truncf %95 : vector<64x8xf32> to vector<64x8xbf16>
    %c0_142 = arith.constant 0 : index
    %c64 = arith.constant 64 : index
    %97 = vector.load %arg10[%c0_142, %c64] : memref<64x72xbf16, #tpu.memory_space<vmem>>, vector<64x8xbf16>
    tpu.vector_store %arg10[%c0_142, %c64], %96 {strides = array<i32>} : memref<64x72xbf16, #tpu.memory_space<vmem>>, vector<64x8xbf16>,
    %c0_143 = arith.constant 0 : index
    %c0_144 = arith.constant 0 : index
    %98 = vector.load %arg10[%c0_143, %c0_144] : memref<64x72xbf16, #tpu.memory_space<vmem>>, vector<64x72xbf16>
    %c0_145 = arith.constant 0 : index
    %c0_146 = arith.constant 0 : index
    %99 = vector.load %arg4[%c0_145, %c0_146] : memref<72x16xbf16, #tpu.memory_space<vmem>>, vector<72x16xbf16>
    %cst_147 = arith.constant dense<0.000000e+00> : vector<64x16xf32>
    %100 = tpu.matmul %98, %99, %cst_147 {dimension_numbers = #tpu.dot_dimension_numbers<[1], [0], [0], [1], [0, 0, 1, 1], [], []>} : vector<64x72xbf16>, vector<72x16xbf16>, vector<64x16xf32> -> vector<64x16xf32>
    %c0_148 = arith.constant 0 : index
    %c0_149 = arith.constant 0 : index
    %101 = vector.load %arg5[%c0_148, %c0_149] : memref<1x16xf32, #tpu.memory_space<vmem>>, vector<1x16xf32>
    %102 = vector.broadcast %101 : vector<1x16xf32> to vector<64x16xf32>
    %103 = arith.addf %100, %102 : vector<64x16xf32>
    %cst_150 = arith.constant 0.000000e+00 : f32
    %104 = vector.broadcast %cst_150 : f32 to vector<64x16xf32>
    %105 = arith.maximumf %103, %104 : vector<64x16xf32>
    %106 = vector.shape_cast %105 : vector<64x16xf32> to vector<1x8x8x16xf32>
    %c0_151 = arith.constant 0 : index
    %c0_152 = arith.constant 0 : index
    %c0_153 = arith.constant 0 : index
    %c0_154 = arith.constant 0 : index
    %107 = vector.load %arg11[%c0_151, %c0_152, %c0_153, %c0_154] : memref<1x8x8x16xf32, #tpu.memory_space<vmem>>, vector<1x8x8x16xf32>
    tpu.vector_store %arg11[%c0_151, %c0_152, %c0_153, %c0_154], %106 {strides = array<i32>} : memref<1x8x8x16xf32, #tpu.memory_space<vmem>>, vector<1x8x8x16xf32>,
    %c0_155 = arith.constant 0 : index
    %c0_156 = arith.constant 0 : index
    %c0_157 = arith.constant 0 : index
    %c0_158 = arith.constant 0 : index
    %108 = tpu.strided_load %arg11[%c0_155, %c0_156, %c0_157, %c0_158] {strides = array<i32: 1, 2, 2, 1>} : memref<1x8x8x16xf32, #tpu.memory_space<vmem>>, vector<1x4x4x16xf32>
    %c0_159 = arith.constant 0 : index
    %c0_160 = arith.constant 0 : index
    %c1_161 = arith.constant 1 : index
    %c0_162 = arith.constant 0 : index
    %109 = tpu.strided_load %arg11[%c0_159, %c0_160, %c1_161, %c0_162] {strides = array<i32: 1, 2, 2, 1>} : memref<1x8x8x16xf32, #tpu.memory_space<vmem>>, vector<1x4x4x16xf32>
    %c0_163 = arith.constant 0 : index
    %c1_164 = arith.constant 1 : index
    %c0_165 = arith.constant 0 : index
    %c0_166 = arith.constant 0 : index
    %110 = tpu.strided_load %arg11[%c0_163, %c1_164, %c0_165, %c0_166] {strides = array<i32: 1, 2, 2, 1>} : memref<1x8x8x16xf32, #tpu.memory_space<vmem>>, vector<1x4x4x16xf32>
    %c0_167 = arith.constant 0 : index
    %c1_168 = arith.constant 1 : index
    %c1_169 = arith.constant 1 : index
    %c0_170 = arith.constant 0 : index
    %111 = tpu.strided_load %arg11[%c0_167, %c1_168, %c1_169, %c0_170] {strides = array<i32: 1, 2, 2, 1>} : memref<1x8x8x16xf32, #tpu.memory_space<vmem>>, vector<1x4x4x16xf32>
    %112 = arith.maximumf %108, %109 : vector<1x4x4x16xf32>
    %113 = arith.maximumf %110, %111 : vector<1x4x4x16xf32>
    %114 = arith.maximumf %112, %113 : vector<1x4x4x16xf32>
    %115 = vector.shape_cast %114 : vector<1x4x4x16xf32> to vector<1x16x16xf32>
    %116 = tpu.transpose %115, [0, 2, 1] : vector<1x16x16xf32> -> vector<1x16x16xf32>
    %c0_171 = arith.constant 0 : index
    %c0_172 = arith.constant 0 : index
    %c0_173 = arith.constant 0 : index
    %117 = vector.load %arg6[%c0_171, %c0_172, %c0_173] : memref<1x16x16xf32, #tpu.memory_space<vmem>>, vector<1x16x16xf32>
    tpu.vector_store %arg6[%c0_171, %c0_172, %c0_173], %116 {strides = array<i32>} : memref<1x16x16xf32, #tpu.memory_space<vmem>>, vector<1x16x16xf32>,
    return
  }
  func.func @transform_0(%arg0: i32) -> (i32, i32, i32, i32) {
    %c0_i32 = arith.constant 0 : i32
    %c0_i32_0 = arith.constant 0 : i32
    %c0_i32_1 = arith.constant 0 : i32
    %c0_i32_2 = arith.constant 0 : i32
    return %arg0, %c0_i32, %c0_i32_0, %c0_i32_1 : i32, i32, i32, i32
  }
  func.func @transform_1(%arg0: i32) -> (i32, i32) {
    %c0_i32 = arith.constant 0 : i32
    %c0_i32_0 = arith.constant 0 : i32
    %c0_i32_1 = arith.constant 0 : i32
    return %c0_i32, %c0_i32_0 : i32, i32
  }
  func.func @transform_2(%arg0: i32) -> (i32, i32) {
    %c0_i32 = arith.constant 0 : i32
    %c0_i32_0 = arith.constant 0 : i32
    %c0_i32_1 = arith.constant 0 : i32
    return %c0_i32, %c0_i32_0 : i32, i32
  }
  func.func @transform_3(%arg0: i32) -> (i32, i32) {
    %c0_i32 = arith.constant 0 : i32
    %c0_i32_0 = arith.constant 0 : i32
    %c0_i32_1 = arith.constant 0 : i32
    return %c0_i32, %c0_i32_0 : i32, i32
  }
  func.func @transform_4(%arg0: i32) -> (i32, i32) {
    %c0_i32 = arith.constant 0 : i32
    %c0_i32_0 = arith.constant 0 : i32
    %c0_i32_1 = arith.constant 0 : i32
    return %c0_i32, %c0_i32_0 : i32, i32
  }
  func.func @transform_5(%arg0: i32) -> (i32, i32, i32) {
    %c0_i32 = arith.constant 0 : i32
    %c0_i32_0 = arith.constant 0 : i32
    %c0_i32_1 = arith.constant 0 : i32
    return %arg0, %c0_i32, %c0_i32_0 : i32, i32, i32
  }
}

</mosaic_0001>

<llo_original>
// kernel: tpu_custom_call.1
$region0: #{tpu_custom_call.1}
  #allocation0 [shape = 'u32[]', space=smem, size = 0x4, offset = 0x4, fixed_abs, tag = 'smem constant byte address 0x4 - core index']
  #allocation1 [shape = 'u32[144,128]{1,0:T(1,128)}', space=vmem, size = 0x12000, scoped, tag = 'internal scratch']
  #allocation2 [shape = 'bf16[256,36]{1,0:T(8,128)(2,1)}', space=vmem, size = 0x10000, scoped, tag = 'scratch operand']
  #allocation3 [shape = 'f32[1,16,16,8]{3,2,1,0:T(8,128)}', space=vmem, size = 0x20000, scoped, tag = 'scratch operand']
  #allocation4 [shape = 'f32[1,10,10,8]{3,2,1,0:T(8,128)}', space=vmem, size = 0x14000, scoped, tag = 'scratch operand']
  #allocation5 [shape = 'bf16[64,72]{1,0:T(8,128)(2,1)}', space=vmem, size = 0x4000, scoped, tag = 'scratch operand']
  #allocation6 [shape = 'f32[1,8,8,16]{3,2,1,0:T(8,128)}', space=vmem, size = 0x8000, scoped, tag = 'scratch operand']
  %s0 = inlined_call_operand.vmem [shape: f32[2,18,18,4], index: 0, kind: input, shape index: {}]
  %s1 = inlined_call_operand.vmem [shape: bf16[36,8], index: 1, kind: input, shape index: {}]
  %s2 = inlined_call_operand.vmem [shape: f32[1,8], index: 2, kind: input, shape index: {}]
  %s3 = inlined_call_operand.vmem [shape: bf16[72,16], index: 3, kind: input, shape index: {}]
  %s4 = inlined_call_operand.vmem [shape: f32[1,16], index: 4, kind: input, shape index: {}]
  %s5 = inlined_call_operand.hbm [shape: f32[2,16,16], index: 5, kind: output, shape index: {}]
  %s6 = sld [smem:[#allocation0]]
  $region53: #{tpu_custom_call.1} parent=0
    _
  %s8 = ssub.s32 1, %s6
  %s9 = scalar_select 0, %s8, %s6
  $region1: #{tpu_custom_call.1} parent=0
    #allocation7 [shape = 'u8[16384]{0}', space=vmem, size = 0x4000, scoped, tag = 'output window, operand 0']
    #allocation8 [shape = 's32[2]{0}', space=sflag, size = 0x8, scoped, tag = 'scoped memory for tpu_custom_call.1']
    %10 = vsyncpa [#allocation8], 0
    %s11 = scalar_lea.sflag [#allocation8], 1
    %12 = vsyncpa %s11, 0
    loop: start=0, step=1, limit=4
    $region2: #{tpu_custom_call.1} parent=1 // loop_pre_header
      _
    $region3: #{tpu_custom_call.1} parent=1 // loop_header
      %s14 = sphi 0, %s18
      %p15 = scmp.ge.s32.totalorder %s14, 4
      %s24 = sphi 0, %s26
      %s27 = sphi 0, %s24
      %s28 = sphi 0, %s27
      %s44 = sphi 0, %s28
      %s48 = sphi 0, %s48
      %s50 = sphi 0, %s48
      %s51 = sphi 0, %s50
      %s65 = sphi 0, %s51
      %s69 = sphi 0, %s69
      %s71 = sphi 0, %s69
      %s72 = sphi 0, %s71
      %s86 = sphi 0, %s72
      %s90 = sphi 0, %s90
      %s92 = sphi 0, %s90
      %s93 = sphi 0, %s92
      %s107 = sphi 0, %s93
      %s111 = sphi 0, %s111
      %s113 = sphi 0, %s111
      %s114 = sphi 0, %s113
      %s128 = sphi 0, %s114
      %s134 = sphi 0, %s136
      %s137 = sphi 0, %s134
      %s138 = sphi 0, %s137
      %s154 = sphi 0, %s138
    $region4: #{tpu_custom_call.1} parent=1 // loop_header_branch
      %17 = sbr.rel (%p15) target = $region8
    $region5: #{tpu_custom_call.1} parent=1 // loop_body
      %s19 = ssub.s32 %s14, 1
      %s20 = ssub.s32 %s14, 2
      %s21 = sadd.s32 %s14, 1
      %s22 = ssub.s32 %s14, %s21
      %p23 = scmp.eq.s32.totalorder %s22, 0
      %s25 = sadd.s32 %s24, 1
      %s26 = scalar_select %p23, %s24, %s25
      %p29 = pneg %p23
      %p30 = scmp.eq.s32.totalorder %s14, 1
      %p31 = por %p29, %p30
      %p32 = scmp.ne.s32.totalorder %s24, %s27
      %p33 = scmp.eq.s32.totalorder %s14, 0
      %p34 = por %p32, %p33
      %p35 = scmp.ne.s32.totalorder %s24, %s27
      %p36 = scmp.eq.s32.totalorder %s19, 1
      %p37 = por %p35, %p36
      %p38 = scmp.ne.s32.totalorder %s27, %s28
      %p39 = scmp.eq.s32.totalorder %s19, 0
      %p40 = por %p38, %p39
      %p41 = scmp.ne.s32.totalorder %s27, %s28
      %p42 = scmp.eq.s32.totalorder %s20, 1
      %p43 = por %p41, %p42
      %p45 = scmp.ne.s32.totalorder %s28, %s44
      %p46 = scmp.eq.s32.totalorder %s20, 0
      %p47 = por %p45, %p46
      %s49 = sadd.s32 %s48, 1
      %p52 = scmp.eq.s32.totalorder %s14, 1
      %p53 = scmp.ne.s32.totalorder %s48, %s50
      %p54 = scmp.eq.s32.totalorder %s14, 0
      %p55 = por %p53, %p54
      %p56 = scmp.ne.s32.totalorder %s48, %s50
      %p57 = scmp.eq.s32.totalorder %s19, 1
      %p58 = por %p56, %p57
      %p59 = scmp.ne.s32.totalorder %s50, %s51
      %p60 = scmp.eq.s32.totalorder %s19, 0
      %p61 = por %p59, %p60
      %p62 = scmp.ne.s32.totalorder %s50, %s51
      %p63 = scmp.eq.s32.totalorder %s20, 1
      %p64 = por %p62, %p63
      %p66 = scmp.ne.s32.totalorder %s51, %s65
      %p67 = scmp.eq.s32.totalorder %s20, 0
      %p68 = por %p66, %p67
      %s70 = sadd.s32 %s69, 1
      %p73 = scmp.eq.s32.totalorder %s14, 1
      %p74 = scmp.ne.s32.totalorder %s69, %s71
      %p75 = scmp.eq.s32.totalorder %s14, 0
      %p76 = por %p74, %p75
      %p77 = scmp.ne.s32.totalorder %s69, %s71
      %p78 = scmp.eq.s32.totalorder %s19, 1
      %p79 = por %p77, %p78
      %p80 = scmp.ne.s32.totalorder %s71, %s72
      %p81 = scmp.eq.s32.totalorder %s19, 0
      %p82 = por %p80, %p81
      %p83 = scmp.ne.s32.totalorder %s71, %s72
      %p84 = scmp.eq.s32.totalorder %s20, 1
      %p85 = por %p83, %p84
      %p87 = scmp.ne.s32.totalorder %s72, %s86
      %p88 = scmp.eq.s32.totalorder %s20, 0
      %p89 = por %p87, %p88
      %s91 = sadd.s32 %s90, 1
      %p94 = scmp.eq.s32.totalorder %s14, 1
      %p95 = scmp.ne.s32.totalorder %s90, %s92
      %p96 = scmp.eq.s32.totalorder %s14, 0
      %p97 = por %p95, %p96
      %p98 = scmp.ne.s32.totalorder %s90, %s92
      %p99 = scmp.eq.s32.totalorder %s19, 1
      %p100 = por %p98, %p99
      %p101 = scmp.ne.s32.totalorder %s92, %s93
      %p102 = scmp.eq.s32.totalorder %s19, 0
      %p103 = por %p101, %p102
      %p104 = scmp.ne.s32.totalorder %s92, %s93
      %p105 = scmp.eq.s32.totalorder %s20, 1
      %p106 = por %p104, %p105
      %p108 = scmp.ne.s32.totalorder %s93, %s107
      %p109 = scmp.eq.s32.totalorder %s20, 0
      %p110 = por %p108, %p109
      %s112 = sadd.s32 %s111, 1
      %p115 = scmp.eq.s32.totalorder %s14, 1
      %p116 = scmp.ne.s32.totalorder %s111, %s113
      %p117 = scmp.eq.s32.totalorder %s14, 0
      %p118 = por %p116, %p117
      %p119 = scmp.ne.s32.totalorder %s111, %s113
      %p120 = scmp.eq.s32.totalorder %s19, 1
      %p121 = por %p119, %p120
      %p122 = scmp.ne.s32.totalorder %s113, %s114
      %p123 = scmp.eq.s32.totalorder %s19, 0
      %p124 = por %p122, %p123
      %p125 = scmp.ne.s32.totalorder %s113, %s114
      %p126 = scmp.eq.s32.totalorder %s20, 1
      %p127 = por %p125, %p126
      %p129 = scmp.ne.s32.totalorder %s114, %s128
      %p130 = scmp.eq.s32.totalorder %s20, 0
      %p131 = por %p129, %p130
      %s132 = ssub.s32 %s14, %s21
      %p133 = scmp.eq.s32.totalorder %s132, 0
      %s135 = sadd.s32 %s134, 1
      %s136 = scalar_select %p133, %s134, %s135
      %p139 = pneg %p133
      %p140 = scmp.eq.s32.totalorder %s14, 1
      %p141 = por %p139, %p140
      %p142 = scmp.ne.s32.totalorder %s134, %s137
      %p143 = scmp.eq.s32.totalorder %s14, 0
      %p144 = por %p142, %p143
      %p145 = scmp.ne.s32.totalorder %s134, %s137
      %p146 = scmp.eq.s32.totalorder %s19, 1
      %p147 = por %p145, %p146
      %p148 = scmp.ne.s32.totalorder %s137, %s138
      %p149 = scmp.eq.s32.totalorder %s19, 0
      %p150 = por %p148, %p149
      %p151 = scmp.ne.s32.totalorder %s137, %s138
      %p152 = scmp.eq.s32.totalorder %s20, 1
      %p153 = por %p151, %p152
      %p155 = scmp.ne.s32.totalorder %s138, %s154
      %p156 = scmp.eq.s32.totalorder %s20, 0
      %p157 = por %p155, %p156
      %p158 = scmp.le.s32.totalorder 1, %s14
      %p159 = scmp.lt.s32.totalorder %s14, 3
      %p160 = pnand %p158, %p159
      %p161 = pneg %p160
      // Predicated region
      $region9: #{tpu_custom_call.1} parent=5 // pred_check
        _
      $region10: #{tpu_custom_call.1} parent=5 // pred_check_branch
        %163 = sbr.rel (%p160) target = $region12
      $region11: #{tpu_custom_call.1} parent=5 // pred_region
        %s164 = ssub.s32 %s14, 1
        // Predicated region
        $region13: #{tpu_custom_call.1} parent=11 // pred_check
          %p165 = pneg %p61
        $region14: #{tpu_custom_call.1} parent=11 // pred_check_branch
          %167 = sbr.rel (%p165) target = $region16
        $region15: #{tpu_custom_call.1} parent=11 // pred_region
          _
        $region16: #{tpu_custom_call.1} parent=11 // pred_fallthru
          _
        // Predicated region
        $region17: #{tpu_custom_call.1} parent=11 // pred_check
          %p168 = pneg %p82
        $region18: #{tpu_custom_call.1} parent=11 // pred_check_branch
          %170 = sbr.rel (%p168) target = $region20
        $region19: #{tpu_custom_call.1} parent=11 // pred_region
          _
        $region20: #{tpu_custom_call.1} parent=11 // pred_fallthru
          _
        // Predicated region
        $region21: #{tpu_custom_call.1} parent=11 // pred_check
          %p171 = pneg %p103
        $region22: #{tpu_custom_call.1} parent=11 // pred_check_branch
          %173 = sbr.rel (%p171) target = $region24
        $region23: #{tpu_custom_call.1} parent=11 // pred_region
          _
        $region24: #{tpu_custom_call.1} parent=11 // pred_fallthru
          _
        // Predicated region
        $region25: #{tpu_custom_call.1} parent=11 // pred_check
          %p174 = pneg %p124
        $region26: #{tpu_custom_call.1} parent=11 // pred_check_branch
          %176 = sbr.rel (%p174) target = $region28
        $region27: #{tpu_custom_call.1} parent=11 // pred_region
          _
        $region28: #{tpu_custom_call.1} parent=11 // pred_fallthru
          _
      $region12: #{tpu_custom_call.1} parent=5 // pred_fallthru
        _
      %p177 = scmp.lt.s32.totalorder %s14, 2
      // Predicated region
      $region29: #{tpu_custom_call.1} parent=5 // pred_check
        %p178 = pneg %p177
      $region30: #{tpu_custom_call.1} parent=5 // pred_check_branch
        %180 = sbr.rel (%p178) target = $region32
      $region31: #{tpu_custom_call.1} parent=5 // pred_region
        // Predicated region
        $region33: #{tpu_custom_call.1} parent=31 // pred_check
          %p181 = pneg %p34
        $region34: #{tpu_custom_call.1} parent=31 // pred_check_branch
          %183 = sbr.rel (%p181) target = $region36
        $region35: #{tpu_custom_call.1} parent=31 // pred_region
          %p184 = scmp.lt.s32.totalorder %s14, 1
          %s185 = scalar_select %p184, %s14, 1
          %s186 = smul.addr %s185, 54
          %s187 = smul.addr %s186, 8
          %s188 = scalar_lea.vmem %s0, %s187
        $region36: #{tpu_custom_call.1} parent=31 // pred_fallthru
          _
      $region32: #{tpu_custom_call.1} parent=5 // pred_fallthru
        _
      %p189 = scmp.le.s32.totalorder 1, %s14
      %p190 = scmp.lt.s32.totalorder %s14, 3
      %p191 = pnand %p189, %p190
      %p192 = pneg %p191
      // Predicated region
      $region37: #{tpu_custom_call.1} parent=5 // pred_check
        _
      $region38: #{tpu_custom_call.1} parent=5 // pred_check_branch
        %194 = sbr.rel (%p191) target = $region40
      $region39: #{tpu_custom_call.1} parent=5 // pred_region
        %s195 = ssub.s32 %s14, 1
        %p196 = scmp.lt.s32.totalorder %s19, 1
        %s197 = scalar_select %p196, %s19, 1
        %s198 = smul.addr %s197, 54
        %s199 = smul.addr %s198, 8
        %s200 = scalar_lea.vmem %s0, %s199
        %p201 = pneg %p40
        %p202 = pneg %p37
        %p203 = pneg %p61
        %p204 = pneg %p58
        %p205 = pneg %p82
        %p206 = pneg %p79
        %p207 = pneg %p103
        %p208 = pneg %p100
        %p209 = pneg %p124
        %p210 = pneg %p121
        %p211 = pneg %p150
        %p212 = pneg %p147
        %s213 = sand.u32 %s137, 1
        %s214 = scalar_lea.sflag [#allocation8], %s213
        %s215 = sand.u32 %s137, 1
        %s216 = smul.addr %s215, 16
        %s217 = scalar_lea.vmem [#allocation7], %s216
        %p218 = scmp.lt.s32.totalorder %s19, 1
        %s219 = scalar_select %p218, %s19, 1
        %s220 = smul.addr %s219, 54
        %s221 = smul.addr %s220, 8
        %s222 = scalar_lea.vmem %s0, %s221
        %v224 = vld [vmem:[%s222] sm:$0xff]
        %v225 = vld [vmem:[%s222 + $0x8] sm:$0xff]
        %v226 = vld [vmem:[%s222 + $0x18] sm:$0xff]
        %v227 = vld [vmem:[%s222 + $0x20] sm:$0xff]
        %v228 = vld [vmem:[%s222 + $0x30] sm:$0xff]
        %v229 = vld [vmem:[%s222 + $0x38] sm:$0xff]
        %v230 = vld [vmem:[%s222 + $0x48] sm:$0xff]
        %v231 = vld [vmem:[%s222 + $0x50] sm:$0xff]
        %v232 = vld [vmem:[%s222 + $0x60] sm:$0xff]
        %v233 = vld [vmem:[%s222 + $0x68] sm:$0xff]
        %v234 = vld [vmem:[%s222 + $0x78] sm:$0xff]
        %v235 = vld [vmem:[%s222 + $0x80] sm:$0xff]
        %v236 = vld [vmem:[%s222 + $0x90] sm:$0xff]
        %v237 = vld [vmem:[%s222 + $0x98] sm:$0xff]
        %v238 = vld [vmem:[%s222 + $0xa8] sm:$0xff]
        %v239 = vld [vmem:[%s222 + $0xb0] sm:$0xff]
        %v240 = vld [vmem:[%s222 + $0xc0] sm:$0xff]
        %v241 = vld [vmem:[%s222 + $0xc8] sm:$0xff]
        %v242 = vld [vmem:[%s222 + $0xd8] sm:$0xff]
        %v243 = vld [vmem:[%s222 + $0xe0] sm:$0xff]
        %v244 = vld [vmem:[%s222 + $0xf0] sm:$0xff]
        %v245 = vld [vmem:[%s222 + $0xf8] sm:$0xff]
        %v246 = vld [vmem:[%s222 + $0x108] sm:$0xff]
        %v247 = vld [vmem:[%s222 + $0x110] sm:$0xff]
        %v248 = vld [vmem:[%s222 + $0x120] sm:$0xff]
        %v249 = vld [vmem:[%s222 + $0x128] sm:$0xff]
        %v250 = vld [vmem:[%s222 + $0x138] sm:$0xff]
        %v251 = vld [vmem:[%s222 + $0x140] sm:$0xff]
        %v252 = vld [vmem:[%s222 + $0x150] sm:$0xff]
        %v253 = vld [vmem:[%s222 + $0x158] sm:$0xff]
        %v254 = vld [vmem:[%s222 + $0x168] sm:$0xff]
        %v255 = vld [vmem:[%s222 + $0x170] sm:$0xff]
        %v256 = vpack.c.bf16 %v225, %v224
        %v257 = vpack.c.bf16 %v227, %v226
        %v258 = vpack.c.bf16 %v229, %v228
        %v259 = vpack.c.bf16 %v231, %v230
        %v260 = vpack.c.bf16 %v233, %v232
        %v261 = vpack.c.bf16 %v235, %v234
        %v262 = vpack.c.bf16 %v237, %v236
        %v263 = vpack.c.bf16 %v239, %v238
        %v264 = vpack.c.bf16 %v241, %v240
        %v265 = vpack.c.bf16 %v243, %v242
        %v266 = vpack.c.bf16 %v245, %v244
        %v267 = vpack.c.bf16 %v247, %v246
        %v268 = vpack.c.bf16 %v249, %v248
        %v269 = vpack.c.bf16 %v251, %v250
        %v270 = vpack.c.bf16 %v253, %v252
        %v271 = vpack.c.bf16 %v255, %v254
        %v288 = vunpack.c.l.b16 %v256
        %v289 = vunpack.c.h.b16 %v256
        %v290 = vunpack.c.l.b16 %v257
        %v291 = vunpack.c.h.b16 %v257
        %v292 = vunpack.c.l.b16 %v258
        %v293 = vunpack.c.h.b16 %v258
        %v294 = vunpack.c.l.b16 %v259
        %v295 = vunpack.c.h.b16 %v259
        %v296 = vunpack.c.l.b16 %v260
        %v297 = vunpack.c.h.b16 %v260
        %v298 = vunpack.c.l.b16 %v261
        %v299 = vunpack.c.h.b16 %v261
        %v300 = vunpack.c.l.b16 %v262
        %v301 = vunpack.c.h.b16 %v262
        %v302 = vunpack.c.l.b16 %v263
        %v303 = vunpack.c.h.b16 %v263
        %v304 = vunpack.c.l.b16 %v264
        %v305 = vunpack.c.h.b16 %v264
        %v306 = vunpack.c.l.b16 %v265
        %v307 = vunpack.c.h.b16 %v265
        %v308 = vunpack.c.l.b16 %v266
        %v309 = vunpack.c.h.b16 %v266
        %v310 = vunpack.c.l.b16 %v267
        %v311 = vunpack.c.h.b16 %v267
        %v312 = vunpack.c.l.b16 %v268
        %v313 = vunpack.c.h.b16 %v268
        %v314 = vunpack.c.l.b16 %v269
        %v315 = vunpack.c.h.b16 %v269
        %v316 = vunpack.c.l.b16 %v270
        %v317 = vunpack.c.h.b16 %v270
        %v318 = vunpack.c.l.b16 %v271
        %v319 = vunpack.c.h.b16 %v271
        %v320 = vpack.c.b16 %v288, %v288
        %v321 = vpack.c.b16 %v289, %v289
        %v322 = vpack.c.b16 %v290, %v290
        %v323 = vpack.c.b16 %v291, %v291
        %v324 = vpack.c.b16 %v292, %v292
        %v325 = vpack.c.b16 %v293, %v293
        %v326 = vpack.c.b16 %v294, %v294
        %v327 = vpack.c.b16 %v295, %v295
        %v328 = vpack.c.b16 %v296, %v296
        %v329 = vpack.c.b16 %v297, %v297
        %v330 = vpack.c.b16 %v298, %v298
        %v331 = vpack.c.b16 %v299, %v299
        %v332 = vpack.c.b16 %v300, %v300
        %v333 = vpack.c.b16 %v301, %v301
        %v334 = vpack.c.b16 %v302, %v302
        %v335 = vpack.c.b16 %v303, %v303
        %v336 = vpack.c.b16 %v304, %v304
        %v337 = vpack.c.b16 %v305, %v305
        %v338 = vpack.c.b16 %v306, %v306
        %v339 = vpack.c.b16 %v307, %v307
        %v340 = vpack.c.b16 %v308, %v308
        %v341 = vpack.c.b16 %v309, %v309
        %v342 = vpack.c.b16 %v310, %v310
        %v343 = vpack.c.b16 %v311, %v311
        %v344 = vpack.c.b16 %v312, %v312
        %v345 = vpack.c.b16 %v313, %v313
        %v346 = vpack.c.b16 %v314, %v314
        %v347 = vpack.c.b16 %v315, %v315
        %v348 = vpack.c.b16 %v316, %v316
        %v349 = vpack.c.b16 %v317, %v317
        %v350 = vpack.c.b16 %v318, %v318
        %v351 = vpack.c.b16 %v319, %v319
        %vm384 = vcmask 27648
        %385 = vst.msk [vmem:[#allocation2] sm:$0xf] %vm384, %v320
        %386 = vst.msk [vmem:[#allocation2 + $0x4] sm:$0xf] %vm384, %v321
        %387 = vst.msk [vmem:[#allocation2 + $0x8] sm:$0xf] %vm384, %v322
        %388 = vst.msk [vmem:[#allocation2 + $0xc] sm:$0xf] %vm384, %v323
        %389 = vst.msk [vmem:[#allocation2 + $0x10] sm:$0xf] %vm384, %v324
        %390 = vst.msk [vmem:[#allocation2 + $0x14] sm:$0xf] %vm384, %v325
        %391 = vst.msk [vmem:[#allocation2 + $0x18] sm:$0xf] %vm384, %v326
        %392 = vst.msk [vmem:[#allocation2 + $0x1c] sm:$0xf] %vm384, %v327
        %393 = vst.msk [vmem:[#allocation2 + $0x20] sm:$0xf] %vm384, %v328
        %394 = vst.msk [vmem:[#allocation2 + $0x24] sm:$0xf] %vm384, %v329
        %395 = vst.msk [vmem:[#allocation2 + $0x28] sm:$0xf] %vm384, %v330
        %396 = vst.msk [vmem:[#allocation2 + $0x2c] sm:$0xf] %vm384, %v331
        %397 = vst.msk [vmem:[#allocation2 + $0x30] sm:$0xf] %vm384, %v332
        %398 = vst.msk [vmem:[#allocation2 + $0x34] sm:$0xf] %vm384, %v333
        %399 = vst.msk [vmem:[#allocation2 + $0x38] sm:$0xf] %vm384, %v334
        %400 = vst.msk [vmem:[#allocation2 + $0x3c] sm:$0xf] %vm384, %v335
        %401 = vst.msk [vmem:[#allocation2 + $0x40] sm:$0xf] %vm384, %v336
        %402 = vst.msk [vmem:[#allocation2 + $0x44] sm:$0xf] %vm384, %v337
        %403 = vst.msk [vmem:[#allocation2 + $0x48] sm:$0xf] %vm384, %v338
        %404 = vst.msk [vmem:[#allocation2 + $0x4c] sm:$0xf] %vm384, %v339
        %405 = vst.msk [vmem:[#allocation2 + $0x50] sm:$0xf] %vm384, %v340
        %406 = vst.msk [vmem:[#allocation2 + $0x54] sm:$0xf] %vm384, %v341
        %407 = vst.msk [vmem:[#allocation2 + $0x58] sm:$0xf] %vm384, %v342
        %408 = vst.msk [vmem:[#allocation2 + $0x5c] sm:$0xf] %vm384, %v343
        %409 = vst.msk [vmem:[#allocation2 + $0x60] sm:$0xf] %vm384, %v344
        %410 = vst.msk [vmem:[#allocation2 + $0x64] sm:$0xf] %vm384, %v345
        %411 = vst.msk [vmem:[#allocation2 + $0x68] sm:$0xf] %vm384, %v346
        %412 = vst.msk [vmem:[#allocation2 + $0x6c] sm:$0xf] %vm384, %v347
        %413 = vst.msk [vmem:[#allocation2 + $0x70] sm:$0xf] %vm384, %v348
        %414 = vst.msk [vmem:[#allocation2 + $0x74] sm:$0xf] %vm384, %v349
        %415 = vst.msk [vmem:[#allocation2 + $0x78] sm:$0xf] %vm384, %v350
        %416 = vst.msk [vmem:[#allocation2 + $0x7c] sm:$0xf] %vm384, %v351
        %v417 = vld [vmem:[%s222 + $0x1] sm:$0xff]
        %v418 = vld [vmem:[%s222 + $0x9] sm:$0xff]
        %v419 = vld [vmem:[%s222 + $0x19] sm:$0xff]
        %v420 = vld [vmem:[%s222 + $0x21] sm:$0xff]
        %v421 = vld [vmem:[%s222 + $0x31] sm:$0xff]
        %v422 = vld [vmem:[%s222 + $0x39] sm:$0xff]
        %v423 = vld [vmem:[%s222 + $0x49] sm:$0xff]
        %v424 = vld [vmem:[%s222 + $0x51] sm:$0xff]
        %v425 = vld [vmem:[%s222 + $0x61] sm:$0xff]
        %v426 = vld [vmem:[%s222 + $0x69] sm:$0xff]
        %v427 = vld [vmem:[%s222 + $0x79] sm:$0xff]
        %v428 = vld [vmem:[%s222 + $0x81] sm:$0xff]
        %v429 = vld [vmem:[%s222 + $0x91] sm:$0xff]
        %v430 = vld [vmem:[%s222 + $0x99] sm:$0xff]
        %v431 = vld [vmem:[%s222 + $0xa9] sm:$0xff]
        %v432 = vld [vmem:[%s222 + $0xb1] sm:$0xff]
        %v433 = vld [vmem:[%s222 + $0xc1] sm:$0xff]
        %v434 = vld [vmem:[%s222 + $0xc9] sm:$0xff]
        %v435 = vld [vmem:[%s222 + $0xd9] sm:$0xff]
        %v436 = vld [vmem:[%s222 + $0xe1] sm:$0xff]
        %v437 = vld [vmem:[%s222 + $0xf1] sm:$0xff]
        %v438 = vld [vmem:[%s222 + $0xf9] sm:$0xff]
        %v439 = vld [vmem:[%s222 + $0x109] sm:$0xff]
        %v440 = vld [vmem:[%s222 + $0x111] sm:$0xff]
        %v441 = vld [vmem:[%s222 + $0x121] sm:$0xff]
        %v442 = vld [vmem:[%s222 + $0x129] sm:$0xff]
        %v443 = vld [vmem:[%s222 + $0x139] sm:$0xff]
        %v444 = vld [vmem:[%s222 + $0x141] sm:$0xff]
        %v445 = vld [vmem:[%s222 + $0x151] sm:$0xff]
        %v446 = vld [vmem:[%s222 + $0x159] sm:$0xff]
        %v447 = vld [vmem:[%s222 + $0x169] sm:$0xff]
        %v448 = vld [vmem:[%s222 + $0x171] sm:$0xff]
        %v449 = vpack.c.bf16 %v418, %v417
        %v450 = vpack.c.bf16 %v420, %v419
        %v451 = vpack.c.bf16 %v422, %v421
        %v452 = vpack.c.bf16 %v424, %v423
        %v453 = vpack.c.bf16 %v426, %v425
        %v454 = vpack.c.bf16 %v428, %v427
        %v455 = vpack.c.bf16 %v430, %v429
        %v456 = vpack.c.bf16 %v432, %v431
        %v457 = vpack.c.bf16 %v434, %v433
        %v458 = vpack.c.bf16 %v436, %v435
        %v459 = vpack.c.bf16 %v438, %v437
        %v460 = vpack.c.bf16 %v440, %v439
        %v461 = vpack.c.bf16 %v442, %v441
        %v462 = vpack.c.bf16 %v444, %v443
        %v463 = vpack.c.bf16 %v446, %v445
        %v464 = vpack.c.bf16 %v448, %v447
        %v481 = vunpack.c.l.b16 %v449
        %v482 = vunpack.c.h.b16 %v449
        %v483 = vunpack.c.l.b16 %v450
        %v484 = vunpack.c.h.b16 %v450
        %v485 = vunpack.c.l.b16 %v451
        %v486 = vunpack.c.h.b16 %v451
        %v487 = vunpack.c.l.b16 %v452
        %v488 = vunpack.c.h.b16 %v452
        %v489 = vunpack.c.l.b16 %v453
        %v490 = vunpack.c.h.b16 %v453
        %v491 = vunpack.c.l.b16 %v454
        %v492 = vunpack.c.h.b16 %v454
        %v493 = vunpack.c.l.b16 %v455
        %v494 = vunpack.c.h.b16 %v455
        %v495 = vunpack.c.l.b16 %v456
        %v496 = vunpack.c.h.b16 %v456
        %v497 = vunpack.c.l.b16 %v457
        %v498 = vunpack.c.h.b16 %v457
        %v499 = vunpack.c.l.b16 %v458
        %v500 = vunpack.c.h.b16 %v458
        %v501 = vunpack.c.l.b16 %v459
        %v502 = vunpack.c.h.b16 %v459
        %v503 = vunpack.c.l.b16 %v460
        %v504 = vunpack.c.h.b16 %v460
        %v505 = vunpack.c.l.b16 %v461
        %v506 = vunpack.c.h.b16 %v461
        %v507 = vunpack.c.l.b16 %v462
        %v508 = vunpack.c.h.b16 %v462
        %v509 = vunpack.c.l.b16 %v463
        %v510 = vunpack.c.h.b16 %v463
        %v511 = vunpack.c.l.b16 %v464
        %v512 = vunpack.c.h.b16 %v464
        %v513 = vpack.c.b16 %v481, %v481
        %v514 = vpack.c.b16 %v482, %v482
        %v515 = vpack.c.b16 %v483, %v483
        %v516 = vpack.c.b16 %v484, %v484
        %v517 = vpack.c.b16 %v485, %v485
        %v518 = vpack.c.b16 %v486, %v486
        %v519 = vpack.c.b16 %v487, %v487
        %v520 = vpack.c.b16 %v488, %v488
        %v521 = vpack.c.b16 %v489, %v489
        %v522 = vpack.c.b16 %v490, %v490
        %v523 = vpack.c.b16 %v491, %v491
        %v524 = vpack.c.b16 %v492, %v492
        %v525 = vpack.c.b16 %v493, %v493
        %v526 = vpack.c.b16 %v494, %v494
        %v527 = vpack.c.b16 %v495, %v495
        %v528 = vpack.c.b16 %v496, %v496
        %v529 = vpack.c.b16 %v497, %v497
        %v530 = vpack.c.b16 %v498, %v498
        %v531 = vpack.c.b16 %v499, %v499
        %v532 = vpack.c.b16 %v500, %v500
        %v533 = vpack.c.b16 %v501, %v501
        %v534 = vpack.c.b16 %v502, %v502
        %v535 = vpack.c.b16 %v503, %v503
        %v536 = vpack.c.b16 %v504, %v504
        %v537 = vpack.c.b16 %v505, %v505
        %v538 = vpack.c.b16 %v506, %v506
        %v539 = vpack.c.b16 %v507, %v507
        %v540 = vpack.c.b16 %v508, %v508
        %v541 = vpack.c.b16 %v509, %v509
        %v542 = vpack.c.b16 %v510, %v510
        %v543 = vpack.c.b16 %v511, %v511
        %v544 = vpack.c.b16 %v512, %v512
        %545 = vrot.lane.b32.xlu0 %v513, 4
        %v546 = vpop.permute.xlu0 %545
        %547 = vrot.lane.b32.xlu0 %v514, 4
        %v548 = vpop.permute.xlu0 %547
        %549 = vrot.lane.b32.xlu0 %v515, 4
        %v550 = vpop.permute.xlu0 %549
        %551 = vrot.lane.b32.xlu0 %v516, 4
        %v552 = vpop.permute.xlu0 %551
        %553 = vrot.lane.b32.xlu0 %v517, 4
        %v554 = vpop.permute.xlu0 %553
        %555 = vrot.lane.b32.xlu0 %v518, 4
        %v556 = vpop.permute.xlu0 %555
        %557 = vrot.lane.b32.xlu0 %v519, 4
        %v558 = vpop.permute.xlu0 %557
        %559 = vrot.lane.b32.xlu0 %v520, 4
        %v560 = vpop.permute.xlu0 %559
        %561 = vrot.lane.b32.xlu0 %v521, 4
        %v562 = vpop.permute.xlu0 %561
        %563 = vrot.lane.b32.xlu0 %v522, 4
        %v564 = vpop.permute.xlu0 %563
        %565 = vrot.lane.b32.xlu0 %v523, 4
        %v566 = vpop.permute.xlu0 %565
        %567 = vrot.lane.b32.xlu0 %v524, 4
        %v568 = vpop.permute.xlu0 %567
        %569 = vrot.lane.b32.xlu0 %v525, 4
        %v570 = vpop.permute.xlu0 %569
        %571 = vrot.lane.b32.xlu0 %v526, 4
        %v572 = vpop.permute.xlu0 %571
        %573 = vrot.lane.b32.xlu0 %v527, 4
        %v574 = vpop.permute.xlu0 %573
        %575 = vrot.lane.b32.xlu0 %v528, 4
        %v576 = vpop.permute.xlu0 %575
        %577 = vrot.lane.b32.xlu0 %v529, 4
        %v578 = vpop.permute.xlu0 %577
        %579 = vrot.lane.b32.xlu0 %v530, 4
        %v580 = vpop.permute.xlu0 %579
        %581 = vrot.lane.b32.xlu0 %v531, 4
        %v582 = vpop.permute.xlu0 %581
        %583 = vrot.lane.b32.xlu0 %v532, 4
        %v584 = vpop.permute.xlu0 %583
        %585 = vrot.lane.b32.xlu0 %v533, 4
        %v586 = vpop.permute.xlu0 %585
        %587 = vrot.lane.b32.xlu0 %v534, 4
        %v588 = vpop.permute.xlu0 %587
        %589 = vrot.lane.b32.xlu0 %v535, 4
        %v590 = vpop.permute.xlu0 %589
        %591 = vrot.lane.b32.xlu0 %v536, 4
        %v592 = vpop.permute.xlu0 %591
        %593 = vrot.lane.b32.xlu0 %v537, 4
        %v594 = vpop.permute.xlu0 %593
        %595 = vrot.lane.b32.xlu0 %v538, 4
        %v596 = vpop.permute.xlu0 %595
        %597 = vrot.lane.b32.xlu0 %v539, 4
        %v598 = vpop.permute.xlu0 %597
        %599 = vrot.lane.b32.xlu0 %v540, 4
        %v600 = vpop.permute.xlu0 %599
        %601 = vrot.lane.b32.xlu0 %v541, 4
        %v602 = vpop.permute.xlu0 %601
        %603 = vrot.lane.b32.xlu0 %v542, 4
        %v604 = vpop.permute.xlu0 %603
        %605 = vrot.lane.b32.xlu0 %v543, 4
        %v606 = vpop.permute.xlu0 %605
        %607 = vrot.lane.b32.xlu0 %v544, 4
        %v608 = vpop.permute.xlu0 %607
        %vm641 = vcmask 60448
        %642 = vst.msk [vmem:[#allocation2] sm:$0xf] %vm641, %v546
        %643 = vst.msk [vmem:[#allocation2 + $0x4] sm:$0xf] %vm641, %v548
        %644 = vst.msk [vmem:[#allocation2 + $0x8] sm:$0xf] %vm641, %v550
        %645 = vst.msk [vmem:[#allocation2 + $0xc] sm:$0xf] %vm641, %v552
        %646 = vst.msk [vmem:[#allocation2 + $0x10] sm:$0xf] %vm641, %v554
        %647 = vst.msk [vmem:[#allocation2 + $0x14] sm:$0xf] %vm641, %v556
        %648 = vst.msk [vmem:[#allocation2 + $0x18] sm:$0xf] %vm641, %v558
        %649 = vst.msk [vmem:[#allocation2 + $0x1c] sm:$0xf] %vm641, %v560
        %650 = vst.msk [vmem:[#allocation2 + $0x20] sm:$0xf] %vm641, %v562
        %651 = vst.msk [vmem:[#allocation2 + $0x24] sm:$0xf] %vm641, %v564
        %652 = vst.msk [vmem:[#allocation2 + $0x28] sm:$0xf] %vm641, %v566
        %653 = vst.msk [vmem:[#allocation2 + $0x2c] sm:$0xf] %vm641, %v568
        %654 = vst.msk [vmem:[#allocation2 + $0x30] sm:$0xf] %vm641, %v570
        %655 = vst.msk [vmem:[#allocation2 + $0x34] sm:$0xf] %vm641, %v572
        %656 = vst.msk [vmem:[#allocation2 + $0x38] sm:$0xf] %vm641, %v574
        %657 = vst.msk [vmem:[#allocation2 + $0x3c] sm:$0xf] %vm641, %v576
        %658 = vst.msk [vmem:[#allocation2 + $0x40] sm:$0xf] %vm641, %v578
        %659 = vst.msk [vmem:[#allocation2 + $0x44] sm:$0xf] %vm641, %v580
        %660 = vst.msk [vmem:[#allocation2 + $0x48] sm:$0xf] %vm641, %v582
        %661 = vst.msk [vmem:[#allocation2 + $0x4c] sm:$0xf] %vm641, %v584
        %662 = vst.msk [vmem:[#allocation2 + $0x50] sm:$0xf] %vm641, %v586
        %663 = vst.msk [vmem:[#allocation2 + $0x54] sm:$0xf] %vm641, %v588
        %664 = vst.msk [vmem:[#allocation2 + $0x58] sm:$0xf] %vm641, %v590
        %665 = vst.msk [vmem:[#allocation2 + $0x5c] sm:$0xf] %vm641, %v592
        %666 = vst.msk [vmem:[#allocation2 + $0x60] sm:$0xf] %vm641, %v594
        %667 = vst.msk [vmem:[#allocation2 + $0x64] sm:$0xf] %vm641, %v596
        %668 = vst.msk [vmem:[#allocation2 + $0x68] sm:$0xf] %vm641, %v598
        %669 = vst.msk [vmem:[#allocation2 + $0x6c] sm:$0xf] %vm641, %v600
        %670 = vst.msk [vmem:[#allocation2 + $0x70] sm:$0xf] %vm641, %v602
        %671 = vst.msk [vmem:[#allocation2 + $0x74] sm:$0xf] %vm641, %v604
        %672 = vst.msk [vmem:[#allocation2 + $0x78] sm:$0xf] %vm641, %v606
        %673 = vst.msk [vmem:[#allocation2 + $0x7c] sm:$0xf] %vm641, %v608
        %v674 = vld [vmem:[%s222 + $0x2] sm:$0xff]
        %v675 = vld [vmem:[%s222 + $0xa] sm:$0xff]
        %v676 = vld [vmem:[%s222 + $0x1a] sm:$0xff]
        %v677 = vld [vmem:[%s222 + $0x22] sm:$0xff]
        %v678 = vld [vmem:[%s222 + $0x32] sm:$0xff]
        %v679 = vld [vmem:[%s222 + $0x3a] sm:$0xff]
        %v680 = vld [vmem:[%s222 + $0x4a] sm:$0xff]
        %v681 = vld [vmem:[%s222 + $0x52] sm:$0xff]
        %v682 = vld [vmem:[%s222 + $0x62] sm:$0xff]
        %v683 = vld [vmem:[%s222 + $0x6a] sm:$0xff]
        %v684 = vld [vmem:[%s222 + $0x7a] sm:$0xff]
        %v685 = vld [vmem:[%s222 + $0x82] sm:$0xff]
        %v686 = vld [vmem:[%s222 + $0x92] sm:$0xff]
        %v687 = vld [vmem:[%s222 + $0x9a] sm:$0xff]
        %v688 = vld [vmem:[%s222 + $0xaa] sm:$0xff]
        %v689 = vld [vmem:[%s222 + $0xb2] sm:$0xff]
        %v690 = vld [vmem:[%s222 + $0xc2] sm:$0xff]
        %v691 = vld [vmem:[%s222 + $0xca] sm:$0xff]
        %v692 = vld [vmem:[%s222 + $0xda] sm:$0xff]
        %v693 = vld [vmem:[%s222 + $0xe2] sm:$0xff]
        %v694 = vld [vmem:[%s222 + $0xf2] sm:$0xff]
        %v695 = vld [vmem:[%s222 + $0xfa] sm:$0xff]
        %v696 = vld [vmem:[%s222 + $0x10a] sm:$0xff]
        %v697 = vld [vmem:[%s222 + $0x112] sm:$0xff]
        %v698 = vld [vmem:[%s222 + $0x122] sm:$0xff]
        %v699 = vld [vmem:[%s222 + $0x12a] sm:$0xff]
        %v700 = vld [vmem:[%s222 + $0x13a] sm:$0xff]
        %v701 = vld [vmem:[%s222 + $0x142] sm:$0xff]
        %v702 = vld [vmem:[%s222 + $0x152] sm:$0xff]
        %v703 = vld [vmem:[%s222 + $0x15a] sm:$0xff]
        %v704 = vld [vmem:[%s222 + $0x16a] sm:$0xff]
        %v705 = vld [vmem:[%s222 + $0x172] sm:$0xff]
        %v706 = vpack.c.bf16 %v675, %v674
        %v707 = vpack.c.bf16 %v677, %v676
        %v708 = vpack.c.bf16 %v679, %v678
        %v709 = vpack.c.bf16 %v681, %v680
        %v710 = vpack.c.bf16 %v683, %v682
        %v711 = vpack.c.bf16 %v685, %v684
        %v712 = vpack.c.bf16 %v687, %v686
        %v713 = vpack.c.bf16 %v689, %v688
        %v714 = vpack.c.bf16 %v691, %v690
        %v715 = vpack.c.bf16 %v693, %v692
        %v716 = vpack.c.bf16 %v695, %v694
        %v717 = vpack.c.bf16 %v697, %v696
        %v718 = vpack.c.bf16 %v699, %v698
        %v719 = vpack.c.bf16 %v701, %v700
        %v720 = vpack.c.bf16 %v703, %v702
        %v721 = vpack.c.bf16 %v705, %v704
        %v738 = vunpack.c.l.b16 %v706
        %v739 = vunpack.c.h.b16 %v706
        %v740 = vunpack.c.l.b16 %v707
        %v741 = vunpack.c.h.b16 %v707
        %v742 = vunpack.c.l.b16 %v708
        %v743 = vunpack.c.h.b16 %v708
        %v744 = vunpack.c.l.b16 %v709
        %v745 = vunpack.c.h.b16 %v709
        %v746 = vunpack.c.l.b16 %v710
        %v747 = vunpack.c.h.b16 %v710
        %v748 = vunpack.c.l.b16 %v711
        %v749 = vunpack.c.h.b16 %v711
        %v750 = vunpack.c.l.b16 %v712
        %v751 = vunpack.c.h.b16 %v712
        %v752 = vunpack.c.l.b16 %v713
        %v753 = vunpack.c.h.b16 %v713
        %v754 = vunpack.c.l.b16 %v714
        %v755 = vunpack.c.h.b16 %v714
        %v756 = vunpack.c.l.b16 %v715
        %v757 = vunpack.c.h.b16 %v715
        %v758 = vunpack.c.l.b16 %v716
        %v759 = vunpack.c.h.b16 %v716
        %v760 = vunpack.c.l.b16 %v717
        %v761 = vunpack.c.h.b16 %v717
        %v762 = vunpack.c.l.b16 %v718
        %v763 = vunpack.c.h.b16 %v718
        %v764 = vunpack.c.l.b16 %v719
        %v765 = vunpack.c.h.b16 %v719
        %v766 = vunpack.c.l.b16 %v720
        %v767 = vunpack.c.h.b16 %v720
        %v768 = vunpack.c.l.b16 %v721
        %v769 = vunpack.c.h.b16 %v721
        %v770 = vpack.c.b16 %v738, %v738
        %v771 = vpack.c.b16 %v739, %v739
        %v772 = vpack.c.b16 %v740, %v740
        %v773 = vpack.c.b16 %v741, %v741
        %v774 = vpack.c.b16 %v742, %v742
        %v775 = vpack.c.b16 %v743, %v743
        %v776 = vpack.c.b16 %v744, %v744
        %v777 = vpack.c.b16 %v745, %v745
        %v778 = vpack.c.b16 %v746, %v746
        %v779 = vpack.c.b16 %v747, %v747
        %v780 = vpack.c.b16 %v748, %v748
        %v781 = vpack.c.b16 %v749, %v749
        %v782 = vpack.c.b16 %v750, %v750
        %v783 = vpack.c.b16 %v751, %v751
        %v784 = vpack.c.b16 %v752, %v752
        %v785 = vpack.c.b16 %v753, %v753
        %v786 = vpack.c.b16 %v754, %v754
        %v787 = vpack.c.b16 %v755, %v755
        %v788 = vpack.c.b16 %v756, %v756
        %v789 = vpack.c.b16 %v757, %v757
        %v790 = vpack.c.b16 %v758, %v758
        %v791 = vpack.c.b16 %v759, %v759
        %v792 = vpack.c.b16 %v760, %v760
        %v793 = vpack.c.b16 %v761, %v761
        %v794 = vpack.c.b16 %v762, %v762
        %v795 = vpack.c.b16 %v763, %v763
        %v796 = vpack.c.b16 %v764, %v764
        %v797 = vpack.c.b16 %v765, %v765
        %v798 = vpack.c.b16 %v766, %v766
        %v799 = vpack.c.b16 %v767, %v767
        %v800 = vpack.c.b16 %v768, %v768
        %v801 = vpack.c.b16 %v769, %v769
        %802 = vrot.lane.b32.xlu0 %v770, 8
        %v803 = vpop.permute.xlu0 %802
        %804 = vrot.lane.b32.xlu0 %v771, 8
        %v805 = vpop.permute.xlu0 %804
        %806 = vrot.lane.b32.xlu0 %v772, 8
        %v807 = vpop.permute.xlu0 %806
        %808 = vrot.lane.b32.xlu0 %v773, 8
        %v809 = vpop.permute.xlu0 %808
        %810 = vrot.lane.b32.xlu0 %v774, 8
        %v811 = vpop.permute.xlu0 %810
        %812 = vrot.lane.b32.xlu0 %v775, 8
        %v813 = vpop.permute.xlu0 %812
        %814 = vrot.lane.b32.xlu0 %v776, 8
        %v815 = vpop.permute.xlu0 %814
        %816 = vrot.lane.b32.xlu0 %v777, 8
        %v817 = vpop.permute.xlu0 %816
        %818 = vrot.lane.b32.xlu0 %v778, 8
        %v819 = vpop.permute.xlu0 %818
        %820 = vrot.lane.b32.xlu0 %v779, 8
        %v821 = vpop.permute.xlu0 %820
        %822 = vrot.lane.b32.xlu0 %v780, 8
        %v823 = vpop.permute.xlu0 %822
        %824 = vrot.lane.b32.xlu0 %v781, 8
        %v825 = vpop.permute.xlu0 %824
        %826 = vrot.lane.b32.xlu0 %v782, 8
        %v827 = vpop.permute.xlu0 %826
        %828 = vrot.lane.b32.xlu0 %v783, 8
        %v829 = vpop.permute.xlu0 %828
        %830 = vrot.lane.b32.xlu0 %v784, 8
        %v831 = vpop.permute.xlu0 %830
        %832 = vrot.lane.b32.xlu0 %v785, 8
        %v833 = vpop.permute.xlu0 %832
        %834 = vrot.lane.b32.xlu0 %v786, 8
        %v835 = vpop.permute.xlu0 %834
        %836 = vrot.lane.b32.xlu0 %v787, 8
        %v837 = vpop.permute.xlu0 %836
        %838 = vrot.lane.b32.xlu0 %v788, 8
        %v839 = vpop.permute.xlu0 %838
        %840 = vrot.lane.b32.xlu0 %v789, 8
        %v841 = vpop.permute.xlu0 %840
        %842 = vrot.lane.b32.xlu0 %v790, 8
        %v843 = vpop.permute.xlu0 %842
        %844 = vrot.lane.b32.xlu0 %v791, 8
        %v845 = vpop.permute.xlu0 %844
        %846 = vrot.lane.b32.xlu0 %v792, 8
        %v847 = vpop.permute.xlu0 %846
        %848 = vrot.lane.b32.xlu0 %v793, 8
        %v849 = vpop.permute.xlu0 %848
        %850 = vrot.lane.b32.xlu0 %v794, 8
        %v851 = vpop.permute.xlu0 %850
        %852 = vrot.lane.b32.xlu0 %v795, 8
        %v853 = vpop.permute.xlu0 %852
        %854 = vrot.lane.b32.xlu0 %v796, 8
        %v855 = vpop.permute.xlu0 %854
        %856 = vrot.lane.b32.xlu0 %v797, 8
        %v857 = vpop.permute.xlu0 %856
        %858 = vrot.lane.b32.xlu0 %v798, 8
        %v859 = vpop.permute.xlu0 %858
        %860 = vrot.lane.b32.xlu0 %v799, 8
        %v861 = vpop.permute.xlu0 %860
        %862 = vrot.lane.b32.xlu0 %v800, 8
        %v863 = vpop.permute.xlu0 %862
        %864 = vrot.lane.b32.xlu0 %v801, 8
        %v865 = vpop.permute.xlu0 %864
        %vm898 = vcmask 93248
        %899 = vst.msk [vmem:[#allocation2] sm:$0xf] %vm898, %v803
        %900 = vst.msk [vmem:[#allocation2 + $0x4] sm:$0xf] %vm898, %v805
        %901 = vst.msk [vmem:[#allocation2 + $0x8] sm:$0xf] %vm898, %v807
        %902 = vst.msk [vmem:[#allocation2 + $0xc] sm:$0xf] %vm898, %v809
        %903 = vst.msk [vmem:[#allocation2 + $0x10] sm:$0xf] %vm898, %v811
        %904 = vst.msk [vmem:[#allocation2 + $0x14] sm:$0xf] %vm898, %v813
        %905 = vst.msk [vmem:[#allocation2 + $0x18] sm:$0xf] %vm898, %v815
        %906 = vst.msk [vmem:[#allocation2 + $0x1c] sm:$0xf] %vm898, %v817
        %907 = vst.msk [vmem:[#allocation2 + $0x20] sm:$0xf] %vm898, %v819
        %908 = vst.msk [vmem:[#allocation2 + $0x24] sm:$0xf] %vm898, %v821
        %909 = vst.msk [vmem:[#allocation2 + $0x28] sm:$0xf] %vm898, %v823
        %910 = vst.msk [vmem:[#allocation2 + $0x2c] sm:$0xf] %vm898, %v825
        %911 = vst.msk [vmem:[#allocation2 + $0x30] sm:$0xf] %vm898, %v827
        %912 = vst.msk [vmem:[#allocation2 + $0x34] sm:$0xf] %vm898, %v829
        %913 = vst.msk [vmem:[#allocation2 + $0x38] sm:$0xf] %vm898, %v831
        %914 = vst.msk [vmem:[#allocation2 + $0x3c] sm:$0xf] %vm898, %v833
        %915 = vst.msk [vmem:[#allocation2 + $0x40] sm:$0xf] %vm898, %v835
        %916 = vst.msk [vmem:[#allocation2 + $0x44] sm:$0xf] %vm898, %v837
        %917 = vst.msk [vmem:[#allocation2 + $0x48] sm:$0xf] %vm898, %v839
        %918 = vst.msk [vmem:[#allocation2 + $0x4c] sm:$0xf] %vm898, %v841
        %919 = vst.msk [vmem:[#allocation2 + $0x50] sm:$0xf] %vm898, %v843
        %920 = vst.msk [vmem:[#allocation2 + $0x54] sm:$0xf] %vm898, %v845
        %921 = vst.msk [vmem:[#allocation2 + $0x58] sm:$0xf] %vm898, %v847
        %922 = vst.msk [vmem:[#allocation2 + $0x5c] sm:$0xf] %vm898, %v849
        %923 = vst.msk [vmem:[#allocation2 + $0x60] sm:$0xf] %vm898, %v851
        %924 = vst.msk [vmem:[#allocation2 + $0x64] sm:$0xf] %vm898, %v853
        %925 = vst.msk [vmem:[#allocation2 + $0x68] sm:$0xf] %vm898, %v855
        %926 = vst.msk [vmem:[#allocation2 + $0x6c] sm:$0xf] %vm898, %v857
        %927 = vst.msk [vmem:[#allocation2 + $0x70] sm:$0xf] %vm898, %v859
        %928 = vst.msk [vmem:[#allocation2 + $0x74] sm:$0xf] %vm898, %v861
        %929 = vst.msk [vmem:[#allocation2 + $0x78] sm:$0xf] %vm898, %v863
        %930 = vst.msk [vmem:[#allocation2 + $0x7c] sm:$0xf] %vm898, %v865
        %s931 = scalar_lea.vmem %s222, 24
        %v932 = vld [vmem:[%s931] sm:$0xff]
        %v933 = vld [vmem:[%s931 + $0x8] sm:$0xff]
        %v934 = vld [vmem:[%s931 + $0x18] sm:$0xff]
        %v935 = vld [vmem:[%s931 + $0x20] sm:$0xff]
        %v936 = vld [vmem:[%s931 + $0x30] sm:$0xff]
        %v937 = vld [vmem:[%s931 + $0x38] sm:$0xff]
        %v938 = vld [vmem:[%s931 + $0x48] sm:$0xff]
        %v939 = vld [vmem:[%s931 + $0x50] sm:$0xff]
        %v940 = vld [vmem:[%s931 + $0x60] sm:$0xff]
        %v941 = vld [vmem:[%s931 + $0x68] sm:$0xff]
        %v942 = vld [vmem:[%s931 + $0x78] sm:$0xff]
        %v943 = vld [vmem:[%s931 + $0x80] sm:$0xff]
        %v944 = vld [vmem:[%s931 + $0x90] sm:$0xff]
        %v945 = vld [vmem:[%s931 + $0x98] sm:$0xff]
        %v946 = vld [vmem:[%s931 + $0xa8] sm:$0xff]
        %v947 = vld [vmem:[%s931 + $0xb0] sm:$0xff]
        %v948 = vld [vmem:[%s931 + $0xc0] sm:$0xff]
        %v949 = vld [vmem:[%s931 + $0xc8] sm:$0xff]
        %v950 = vld [vmem:[%s931 + $0xd8] sm:$0xff]
        %v951 = vld [vmem:[%s931 + $0xe0] sm:$0xff]
        %v952 = vld [vmem:[%s931 + $0xf0] sm:$0xff]
        %v953 = vld [vmem:[%s931 + $0xf8] sm:$0xff]
        %v954 = vld [vmem:[%s931 + $0x108] sm:$0xff]
        %v955 = vld [vmem:[%s931 + $0x110] sm:$0xff]
        %v956 = vld [vmem:[%s931 + $0x120] sm:$0xff]
        %v957 = vld [vmem:[%s931 + $0x128] sm:$0xff]
        %v958 = vld [vmem:[%s931 + $0x138] sm:$0xff]
        %v959 = vld [vmem:[%s931 + $0x140] sm:$0xff]
        %v960 = vld [vmem:[%s931 + $0x150] sm:$0xff]
        %v961 = vld [vmem:[%s931 + $0x158] sm:$0xff]
        %v962 = vld [vmem:[%s931 + $0x168] sm:$0xff]
        %v963 = vld [vmem:[%s931 + $0x170] sm:$0xff]
        %v964 = vpack.c.bf16 %v933, %v932
        %v965 = vpack.c.bf16 %v935, %v934
        %v966 = vpack.c.bf16 %v937, %v936
        %v967 = vpack.c.bf16 %v939, %v938
        %v968 = vpack.c.bf16 %v941, %v940
        %v969 = vpack.c.bf16 %v943, %v942
        %v970 = vpack.c.bf16 %v945, %v944
        %v971 = vpack.c.bf16 %v947, %v946
        %v972 = vpack.c.bf16 %v949, %v948
        %v973 = vpack.c.bf16 %v951, %v950
        %v974 = vpack.c.bf16 %v953, %v952
        %v975 = vpack.c.bf16 %v955, %v954
        %v976 = vpack.c.bf16 %v957, %v956
        %v977 = vpack.c.bf16 %v959, %v958
        %v978 = vpack.c.bf16 %v961, %v960
        %v979 = vpack.c.bf16 %v963, %v962
        %v996 = vunpack.c.l.b16 %v964
        %v997 = vunpack.c.h.b16 %v964
        %v998 = vunpack.c.l.b16 %v965
        %v999 = vunpack.c.h.b16 %v965
        %v1000 = vunpack.c.l.b16 %v966
        %v1001 = vunpack.c.h.b16 %v966
        %v1002 = vunpack.c.l.b16 %v967
        %v1003 = vunpack.c.h.b16 %v967
        %v1004 = vunpack.c.l.b16 %v968
        %v1005 = vunpack.c.h.b16 %v968
        %v1006 = vunpack.c.l.b16 %v969
        %v1007 = vunpack.c.h.b16 %v969
        %v1008 = vunpack.c.l.b16 %v970
        %v1009 = vunpack.c.h.b16 %v970
        %v1010 = vunpack.c.l.b16 %v971
        %v1011 = vunpack.c.h.b16 %v971
        %v1012 = vunpack.c.l.b16 %v972
        %v1013 = vunpack.c.h.b16 %v972
        %v1014 = vunpack.c.l.b16 %v973
        %v1015 = vunpack.c.h.b16 %v973
        %v1016 = vunpack.c.l.b16 %v974
        %v1017 = vunpack.c.h.b16 %v974
        %v1018 = vunpack.c.l.b16 %v975
        %v1019 = vunpack.c.h.b16 %v975
        %v1020 = vunpack.c.l.b16 %v976
        %v1021 = vunpack.c.h.b16 %v976
        %v1022 = vunpack.c.l.b16 %v977
        %v1023 = vunpack.c.h.b16 %v977
        %v1024 = vunpack.c.l.b16 %v978
        %v1025 = vunpack.c.h.b16 %v978
        %v1026 = vunpack.c.l.b16 %v979
        %v1027 = vunpack.c.h.b16 %v979
        %v1028 = vpack.c.b16 %v996, %v996
        %v1029 = vpack.c.b16 %v997, %v997
        %v1030 = vpack.c.b16 %v998, %v998
        %v1031 = vpack.c.b16 %v999, %v999
        %v1032 = vpack.c.b16 %v1000, %v1000
        %v1033 = vpack.c.b16 %v1001, %v1001
        %v1034 = vpack.c.b16 %v1002, %v1002
        %v1035 = vpack.c.b16 %v1003, %v1003
        %v1036 = vpack.c.b16 %v1004, %v1004
        %v1037 = vpack.c.b16 %v1005, %v1005
        %v1038 = vpack.c.b16 %v1006, %v1006
        %v1039 = vpack.c.b16 %v1007, %v1007
        %v1040 = vpack.c.b16 %v1008, %v1008
        %v1041 = vpack.c.b16 %v1009, %v1009
        %v1042 = vpack.c.b16 %v1010, %v1010
        %v1043 = vpack.c.b16 %v1011, %v1011
        %v1044 = vpack.c.b16 %v1012, %v1012
        %v1045 = vpack.c.b16 %v1013, %v1013
        %v1046 = vpack.c.b16 %v1014, %v1014
        %v1047 = vpack.c.b16 %v1015, %v1015
        %v1048 = vpack.c.b16 %v1016, %v1016
        %v1049 = vpack.c.b16 %v1017, %v1017
        %v1050 = vpack.c.b16 %v1018, %v1018
        %v1051 = vpack.c.b16 %v1019, %v1019
        %v1052 = vpack.c.b16 %v1020, %v1020
        %v1053 = vpack.c.b16 %v1021, %v1021
        %v1054 = vpack.c.b16 %v1022, %v1022
        %v1055 = vpack.c.b16 %v1023, %v1023
        %v1056 = vpack.c.b16 %v1024, %v1024
        %v1057 = vpack.c.b16 %v1025, %v1025
        %v1058 = vpack.c.b16 %v1026, %v1026
        %v1059 = vpack.c.b16 %v1027, %v1027
        %1060 = vrot.lane.b32.xlu0 %v1028, 12
        %v1061 = vpop.permute.xlu0 %1060
        %1062 = vrot.lane.b32.xlu0 %v1029, 12
        %v1063 = vpop.permute.xlu0 %1062
        %1064 = vrot.lane.b32.xlu0 %v1030, 12
        %v1065 = vpop.permute.xlu0 %1064
        %1066 = vrot.lane.b32.xlu0 %v1031, 12
        %v1067 = vpop.permute.xlu0 %1066
        %1068 = vrot.lane.b32.xlu0 %v1032, 12
        %v1069 = vpop.permute.xlu0 %1068
        %1070 = vrot.lane.b32.xlu0 %v1033, 12
        %v1071 = vpop.permute.xlu0 %1070
        %1072 = vrot.lane.b32.xlu0 %v1034, 12
        %v1073 = vpop.permute.xlu0 %1072
        %1074 = vrot.lane.b32.xlu0 %v1035, 12
        %v1075 = vpop.permute.xlu0 %1074
        %1076 = vrot.lane.b32.xlu0 %v1036, 12
        %v1077 = vpop.permute.xlu0 %1076
        %1078 = vrot.lane.b32.xlu0 %v1037, 12
        %v1079 = vpop.permute.xlu0 %1078
        %1080 = vrot.lane.b32.xlu0 %v1038, 12
        %v1081 = vpop.permute.xlu0 %1080
        %1082 = vrot.lane.b32.xlu0 %v1039, 12
        %v1083 = vpop.permute.xlu0 %1082
        %1084 = vrot.lane.b32.xlu0 %v1040, 12
        %v1085 = vpop.permute.xlu0 %1084
        %1086 = vrot.lane.b32.xlu0 %v1041, 12
        %v1087 = vpop.permute.xlu0 %1086
        %1088 = vrot.lane.b32.xlu0 %v1042, 12
        %v1089 = vpop.permute.xlu0 %1088
        %1090 = vrot.lane.b32.xlu0 %v1043, 12
        %v1091 = vpop.permute.xlu0 %1090
        %1092 = vrot.lane.b32.xlu0 %v1044, 12
        %v1093 = vpop.permute.xlu0 %1092
        %1094 = vrot.lane.b32.xlu0 %v1045, 12
        %v1095 = vpop.permute.xlu0 %1094
        %1096 = vrot.lane.b32.xlu0 %v1046, 12
        %v1097 = vpop.permute.xlu0 %1096
        %1098 = vrot.lane.b32.xlu0 %v1047, 12
        %v1099 = vpop.permute.xlu0 %1098
        %1100 = vrot.lane.b32.xlu0 %v1048, 12
        %v1101 = vpop.permute.xlu0 %1100
        %1102 = vrot.lane.b32.xlu0 %v1049, 12
        %v1103 = vpop.permute.xlu0 %1102
        %1104 = vrot.lane.b32.xlu0 %v1050, 12
        %v1105 = vpop.permute.xlu0 %1104
        %1106 = vrot.lane.b32.xlu0 %v1051, 12
        %v1107 = vpop.permute.xlu0 %1106
        %1108 = vrot.lane.b32.xlu0 %v1052, 12
        %v1109 = vpop.permute.xlu0 %1108
        %1110 = vrot.lane.b32.xlu0 %v1053, 12
        %v1111 = vpop.permute.xlu0 %1110
        %1112 = vrot.lane.b32.xlu0 %v1054, 12
        %v1113 = vpop.permute.xlu0 %1112
        %1114 = vrot.lane.b32.xlu0 %v1055, 12
        %v1115 = vpop.permute.xlu0 %1114
        %1116 = vrot.lane.b32.xlu0 %v1056, 12
        %v1117 = vpop.permute.xlu0 %1116
        %1118 = vrot.lane.b32.xlu0 %v1057, 12
        %v1119 = vpop.permute.xlu0 %1118
        %1120 = vrot.lane.b32.xlu0 %v1058, 12
        %v1121 = vpop.permute.xlu0 %1120
        %1122 = vrot.lane.b32.xlu0 %v1059, 12
        %v1123 = vpop.permute.xlu0 %1122
        %vm1156 = vcmask 126048
        %1157 = vst.msk [vmem:[#allocation2] sm:$0xf] %vm1156, %v1061
        %1158 = vst.msk [vmem:[#allocation2 + $0x4] sm:$0xf] %vm1156, %v1063
        %1159 = vst.msk [vmem:[#allocation2 + $0x8] sm:$0xf] %vm1156, %v1065
        %1160 = vst.msk [vmem:[#allocation2 + $0xc] sm:$0xf] %vm1156, %v1067
        %1161 = vst.msk [vmem:[#allocation2 + $0x10] sm:$0xf] %vm1156, %v1069
        %1162 = vst.msk [vmem:[#allocation2 + $0x14] sm:$0xf] %vm1156, %v1071
        %1163 = vst.msk [vmem:[#allocation2 + $0x18] sm:$0xf] %vm1156, %v1073
        %1164 = vst.msk [vmem:[#allocation2 + $0x1c] sm:$0xf] %vm1156, %v1075
        %1165 = vst.msk [vmem:[#allocation2 + $0x20] sm:$0xf] %vm1156, %v1077
        %1166 = vst.msk [vmem:[#allocation2 + $0x24] sm:$0xf] %vm1156, %v1079
        %1167 = vst.msk [vmem:[#allocation2 + $0x28] sm:$0xf] %vm1156, %v1081
        %1168 = vst.msk [vmem:[#allocation2 + $0x2c] sm:$0xf] %vm1156, %v1083
        %1169 = vst.msk [vmem:[#allocation2 + $0x30] sm:$0xf] %vm1156, %v1085
        %1170 = vst.msk [vmem:[#allocation2 + $0x34] sm:$0xf] %vm1156, %v1087
        %1171 = vst.msk [vmem:[#allocation2 + $0x38] sm:$0xf] %vm1156, %v1089
        %1172 = vst.msk [vmem:[#allocation2 + $0x3c] sm:$0xf] %vm1156, %v1091
        %1173 = vst.msk [vmem:[#allocation2 + $0x40] sm:$0xf] %vm1156, %v1093
        %1174 = vst.msk [vmem:[#allocation2 + $0x44] sm:$0xf] %vm1156, %v1095
        %1175 = vst.msk [vmem:[#allocation2 + $0x48] sm:$0xf] %vm1156, %v1097
        %1176 = vst.msk [vmem:[#allocation2 + $0x4c] sm:$0xf] %vm1156, %v1099
        %1177 = vst.msk [vmem:[#allocation2 + $0x50] sm:$0xf] %vm1156, %v1101
        %1178 = vst.msk [vmem:[#allocation2 + $0x54] sm:$0xf] %vm1156, %v1103
        %1179 = vst.msk [vmem:[#allocation2 + $0x58] sm:$0xf] %vm1156, %v1105
        %1180 = vst.msk [vmem:[#allocation2 + $0x5c] sm:$0xf] %vm1156, %v1107
        %1181 = vst.msk [vmem:[#allocation2 + $0x60] sm:$0xf] %vm1156, %v1109
        %1182 = vst.msk [vmem:[#allocation2 + $0x64] sm:$0xf] %vm1156, %v1111
        %1183 = vst.msk [vmem:[#allocation2 + $0x68] sm:$0xf] %vm1156, %v1113
        %1184 = vst.msk [vmem:[#allocation2 + $0x6c] sm:$0xf] %vm1156, %v1115
        %1185 = vst.msk [vmem:[#allocation2 + $0x70] sm:$0xf] %vm1156, %v1117
        %1186 = vst.msk [vmem:[#allocation2 + $0x74] sm:$0xf] %vm1156, %v1119
        %1187 = vst.msk [vmem:[#allocation2 + $0x78] sm:$0xf] %vm1156, %v1121
        %1188 = vst.msk [vmem:[#allocation2 + $0x7c] sm:$0xf] %vm1156, %v1123
        %v1189 = vld [vmem:[%s931 + $0x1] sm:$0xff]
        %v1190 = vld [vmem:[%s931 + $0x9] sm:$0xff]
        %v1191 = vld [vmem:[%s931 + $0x19] sm:$0xff]
        %v1192 = vld [vmem:[%s931 + $0x21] sm:$0xff]
        %v1193 = vld [vmem:[%s931 + $0x31] sm:$0xff]
        %v1194 = vld [vmem:[%s931 + $0x39] sm:$0xff]
        %v1195 = vld [vmem:[%s931 + $0x49] sm:$0xff]
        %v1196 = vld [vmem:[%s931 + $0x51] sm:$0xff]
        %v1197 = vld [vmem:[%s931 + $0x61] sm:$0xff]
        %v1198 = vld [vmem:[%s931 + $0x69] sm:$0xff]
        %v1199 = vld [vmem:[%s931 + $0x79] sm:$0xff]
        %v1200 = vld [vmem:[%s931 + $0x81] sm:$0xff]
        %v1201 = vld [vmem:[%s931 + $0x91] sm:$0xff]
        %v1202 = vld [vmem:[%s931 + $0x99] sm:$0xff]
        %v1203 = vld [vmem:[%s931 + $0xa9] sm:$0xff]
        %v1204 = vld [vmem:[%s931 + $0xb1] sm:$0xff]
        %v1205 = vld [vmem:[%s931 + $0xc1] sm:$0xff]
        %v1206 = vld [vmem:[%s931 + $0xc9] sm:$0xff]
        %v1207 = vld [vmem:[%s931 + $0xd9] sm:$0xff]
        %v1208 = vld [vmem:[%s931 + $0xe1] sm:$0xff]
        %v1209 = vld [vmem:[%s931 + $0xf1] sm:$0xff]
        %v1210 = vld [vmem:[%s931 + $0xf9] sm:$0xff]
        %v1211 = vld [vmem:[%s931 + $0x109] sm:$0xff]
        %v1212 = vld [vmem:[%s931 + $0x111] sm:$0xff]
        %v1213 = vld [vmem:[%s931 + $0x121] sm:$0xff]
        %v1214 = vld [vmem:[%s931 + $0x129] sm:$0xff]
        %v1215 = vld [vmem:[%s931 + $0x139] sm:$0xff]
        %v1216 = vld [vmem:[%s931 + $0x141] sm:$0xff]
        %v1217 = vld [vmem:[%s931 + $0x151] sm:$0xff]
        %v1218 = vld [vmem:[%s931 + $0x159] sm:$0xff]
        %v1219 = vld [vmem:[%s931 + $0x169] sm:$0xff]
        %v1220 = vld [vmem:[%s931 + $0x171] sm:$0xff]
        %v1221 = vpack.c.bf16 %v1190, %v1189
        %v1222 = vpack.c.bf16 %v1192, %v1191
        %v1223 = vpack.c.bf16 %v1194, %v1193
        %v1224 = vpack.c.bf16 %v1196, %v1195
        %v1225 = vpack.c.bf16 %v1198, %v1197
        %v1226 = vpack.c.bf16 %v1200, %v1199
        %v1227 = vpack.c.bf16 %v1202, %v1201
        %v1228 = vpack.c.bf16 %v1204, %v1203
        %v1229 = vpack.c.bf16 %v1206, %v1205
        %v1230 = vpack.c.bf16 %v1208, %v1207
        %v1231 = vpack.c.bf16 %v1210, %v1209
        %v1232 = vpack.c.bf16 %v1212, %v1211
        %v1233 = vpack.c.bf16 %v1214, %v1213
        %v1234 = vpack.c.bf16 %v1216, %v1215
        %v1235 = vpack.c.bf16 %v1218, %v1217
        %v1236 = vpack.c.bf16 %v1220, %v1219
        %v1253 = vunpack.c.l.b16 %v1221
        %v1254 = vunpack.c.h.b16 %v1221
        %v1255 = vunpack.c.l.b16 %v1222
        %v1256 = vunpack.c.h.b16 %v1222
        %v1257 = vunpack.c.l.b16 %v1223
        %v1258 = vunpack.c.h.b16 %v1223
        %v1259 = vunpack.c.l.b16 %v1224
        %v1260 = vunpack.c.h.b16 %v1224
        %v1261 = vunpack.c.l.b16 %v1225
        %v1262 = vunpack.c.h.b16 %v1225
        %v1263 = vunpack.c.l.b16 %v1226
        %v1264 = vunpack.c.h.b16 %v1226
        %v1265 = vunpack.c.l.b16 %v1227
        %v1266 = vunpack.c.h.b16 %v1227
        %v1267 = vunpack.c.l.b16 %v1228
        %v1268 = vunpack.c.h.b16 %v1228
        %v1269 = vunpack.c.l.b16 %v1229
        %v1270 = vunpack.c.h.b16 %v1229
        %v1271 = vunpack.c.l.b16 %v1230
        %v1272 = vunpack.c.h.b16 %v1230
        %v1273 = vunpack.c.l.b16 %v1231
        %v1274 = vunpack.c.h.b16 %v1231
        %v1275 = vunpack.c.l.b16 %v1232
        %v1276 = vunpack.c.h.b16 %v1232
        %v1277 = vunpack.c.l.b16 %v1233
        %v1278 = vunpack.c.h.b16 %v1233
        %v1279 = vunpack.c.l.b16 %v1234
        %v1280 = vunpack.c.h.b16 %v1234
        %v1281 = vunpack.c.l.b16 %v1235
        %v1282 = vunpack.c.h.b16 %v1235
        %v1283 = vunpack.c.l.b16 %v1236
        %v1284 = vunpack.c.h.b16 %v1236
        %v1285 = vpack.c.b16 %v1253, %v1253
        %v1286 = vpack.c.b16 %v1254, %v1254
        %v1287 = vpack.c.b16 %v1255, %v1255
        %v1288 = vpack.c.b16 %v1256, %v1256
        %v1289 = vpack.c.b16 %v1257, %v1257
        %v1290 = vpack.c.b16 %v1258, %v1258
        %v1291 = vpack.c.b16 %v1259, %v1259
        %v1292 = vpack.c.b16 %v1260, %v1260
        %v1293 = vpack.c.b16 %v1261, %v1261
        %v1294 = vpack.c.b16 %v1262, %v1262
        %v1295 = vpack.c.b16 %v1263, %v1263
        %v1296 = vpack.c.b16 %v1264, %v1264
        %v1297 = vpack.c.b16 %v1265, %v1265
        %v1298 = vpack.c.b16 %v1266, %v1266
        %v1299 = vpack.c.b16 %v1267, %v1267
        %v1300 = vpack.c.b16 %v1268, %v1268
        %v1301 = vpack.c.b16 %v1269, %v1269
        %v1302 = vpack.c.b16 %v1270, %v1270
        %v1303 = vpack.c.b16 %v1271, %v1271
        %v1304 = vpack.c.b16 %v1272, %v1272
        %v1305 = vpack.c.b16 %v1273, %v1273
        %v1306 = vpack.c.b16 %v1274, %v1274
        %v1307 = vpack.c.b16 %v1275, %v1275
        %v1308 = vpack.c.b16 %v1276, %v1276
        %v1309 = vpack.c.b16 %v1277, %v1277
        %v1310 = vpack.c.b16 %v1278, %v1278
        %v1311 = vpack.c.b16 %v1279, %v1279
        %v1312 = vpack.c.b16 %v1280, %v1280
        %v1313 = vpack.c.b16 %v1281, %v1281
        %v1314 = vpack.c.b16 %v1282, %v1282
        %v1315 = vpack.c.b16 %v1283, %v1283
        %v1316 = vpack.c.b16 %v1284, %v1284
        %1317 = vrot.lane.b32.xlu0 %v1285, 16
        %v1318 = vpop.permute.xlu0 %1317
        %1319 = vrot.lane.b32.xlu0 %v1286, 16
        %v1320 = vpop.permute.xlu0 %1319
        %1321 = vrot.lane.b32.xlu0 %v1287, 16
        %v1322 = vpop.permute.xlu0 %1321
        %1323 = vrot.lane.b32.xlu0 %v1288, 16
        %v1324 = vpop.permute.xlu0 %1323
        %1325 = vrot.lane.b32.xlu0 %v1289, 16
        %v1326 = vpop.permute.xlu0 %1325
        %1327 = vrot.lane.b32.xlu0 %v1290, 16
        %v1328 = vpop.permute.xlu0 %1327
        %1329 = vrot.lane.b32.xlu0 %v1291, 16
        %v1330 = vpop.permute.xlu0 %1329
        %1331 = vrot.lane.b32.xlu0 %v1292, 16
        %v1332 = vpop.permute.xlu0 %1331
        %1333 = vrot.lane.b32.xlu0 %v1293, 16
        %v1334 = vpop.permute.xlu0 %1333
        %1335 = vrot.lane.b32.xlu0 %v1294, 16
        %v1336 = vpop.permute.xlu0 %1335
        %1337 = vrot.lane.b32.xlu0 %v1295, 16
        %v1338 = vpop.permute.xlu0 %1337
        %1339 = vrot.lane.b32.xlu0 %v1296, 16
        %v1340 = vpop.permute.xlu0 %1339
        %1341 = vrot.lane.b32.xlu0 %v1297, 16
        %v1342 = vpop.permute.xlu0 %1341
        %1343 = vrot.lane.b32.xlu0 %v1298, 16
        %v1344 = vpop.permute.xlu0 %1343
        %1345 = vrot.lane.b32.xlu0 %v1299, 16
        %v1346 = vpop.permute.xlu0 %1345
        %1347 = vrot.lane.b32.xlu0 %v1300, 16
        %v1348 = vpop.permute.xlu0 %1347
        %1349 = vrot.lane.b32.xlu0 %v1301, 16
        %v1350 = vpop.permute.xlu0 %1349
        %1351 = vrot.lane.b32.xlu0 %v1302, 16
        %v1352 = vpop.permute.xlu0 %1351
        %1353 = vrot.lane.b32.xlu0 %v1303, 16
        %v1354 = vpop.permute.xlu0 %1353
        %1355 = vrot.lane.b32.xlu0 %v1304, 16
        %v1356 = vpop.permute.xlu0 %1355
        %1357 = vrot.lane.b32.xlu0 %v1305, 16
        %v1358 = vpop.permute.xlu0 %1357
        %1359 = vrot.lane.b32.xlu0 %v1306, 16
        %v1360 = vpop.permute.xlu0 %1359
        %1361 = vrot.lane.b32.xlu0 %v1307, 16
        %v1362 = vpop.permute.xlu0 %1361
        %1363 = vrot.lane.b32.xlu0 %v1308, 16
        %v1364 = vpop.permute.xlu0 %1363
        %1365 = vrot.lane.b32.xlu0 %v1309, 16
        %v1366 = vpop.permute.xlu0 %1365
        %1367 = vrot.lane.b32.xlu0 %v1310, 16
        %v1368 = vpop.permute.xlu0 %1367
        %1369 = vrot.lane.b32.xlu0 %v1311, 16
        %v1370 = vpop.permute.xlu0 %1369
        %1371 = vrot.lane.b32.xlu0 %v1312, 16
        %v1372 = vpop.permute.xlu0 %1371
        %1373 = vrot.lane.b32.xlu0 %v1313, 16
        %v1374 = vpop.permute.xlu0 %1373
        %1375 = vrot.lane.b32.xlu0 %v1314, 16
        %v1376 = vpop.permute.xlu0 %1375
        %1377 = vrot.lane.b32.xlu0 %v1315, 16
        %v1378 = vpop.permute.xlu0 %1377
        %1379 = vrot.lane.b32.xlu0 %v1316, 16
        %v1380 = vpop.permute.xlu0 %1379
        %vm1413 = vcmask 158848
        %1414 = vst.msk [vmem:[#allocation2] sm:$0xf] %vm1413, %v1318
        %1415 = vst.msk [vmem:[#allocation2 + $0x4] sm:$0xf] %vm1413, %v1320
        %1416 = vst.msk [vmem:[#allocation2 + $0x8] sm:$0xf] %vm1413, %v1322
        %1417 = vst.msk [vmem:[#allocation2 + $0xc] sm:$0xf] %vm1413, %v1324
        %1418 = vst.msk [vmem:[#allocation2 + $0x10] sm:$0xf] %vm1413, %v1326
        %1419 = vst.msk [vmem:[#allocation2 + $0x14] sm:$0xf] %vm1413, %v1328
        %1420 = vst.msk [vmem:[#allocation2 + $0x18] sm:$0xf] %vm1413, %v1330
        %1421 = vst.msk [vmem:[#allocation2 + $0x1c] sm:$0xf] %vm1413, %v1332
        %1422 = vst.msk [vmem:[#allocation2 + $0x20] sm:$0xf] %vm1413, %v1334
        %1423 = vst.msk [vmem:[#allocation2 + $0x24] sm:$0xf] %vm1413, %v1336
        %1424 = vst.msk [vmem:[#allocation2 + $0x28] sm:$0xf] %vm1413, %v1338
        %1425 = vst.msk [vmem:[#allocation2 + $0x2c] sm:$0xf] %vm1413, %v1340
        %1426 = vst.msk [vmem:[#allocation2 + $0x30] sm:$0xf] %vm1413, %v1342
        %1427 = vst.msk [vmem:[#allocation2 + $0x34] sm:$0xf] %vm1413, %v1344
        %1428 = vst.msk [vmem:[#allocation2 + $0x38] sm:$0xf] %vm1413, %v1346
        %1429 = vst.msk [vmem:[#allocation2 + $0x3c] sm:$0xf] %vm1413, %v1348
        %1430 = vst.msk [vmem:[#allocation2 + $0x40] sm:$0xf] %vm1413, %v1350
        %1431 = vst.msk [vmem:[#allocation2 + $0x44] sm:$0xf] %vm1413, %v1352
        %1432 = vst.msk [vmem:[#allocation2 + $0x48] sm:$0xf] %vm1413, %v1354
        %1433 = vst.msk [vmem:[#allocation2 + $0x4c] sm:$0xf] %vm1413, %v1356
        %1434 = vst.msk [vmem:[#allocation2 + $0x50] sm:$0xf] %vm1413, %v1358
        %1435 = vst.msk [vmem:[#allocation2 + $0x54] sm:$0xf] %vm1413, %v1360
        %1436 = vst.msk [vmem:[#allocation2 + $0x58] sm:$0xf] %vm1413, %v1362
        %1437 = vst.msk [vmem:[#allocation2 + $0x5c] sm:$0xf] %vm1413, %v1364
        %1438 = vst.msk [vmem:[#allocation2 + $0x60] sm:$0xf] %vm1413, %v1366
        %1439 = vst.msk [vmem:[#allocation2 + $0x64] sm:$0xf] %vm1413, %v1368
        %1440 = vst.msk [vmem:[#allocation2 + $0x68] sm:$0xf] %vm1413, %v1370
        %1441 = vst.msk [vmem:[#allocation2 + $0x6c] sm:$0xf] %vm1413, %v1372
        %1442 = vst.msk [vmem:[#allocation2 + $0x70] sm:$0xf] %vm1413, %v1374
        %1443 = vst.msk [vmem:[#allocation2 + $0x74] sm:$0xf] %vm1413, %v1376
        %1444 = vst.msk [vmem:[#allocation2 + $0x78] sm:$0xf] %vm1413, %v1378
        %1445 = vst.msk [vmem:[#allocation2 + $0x7c] sm:$0xf] %vm1413, %v1380
        %v1446 = vld [vmem:[%s931 + $0x2] sm:$0xff]
        %v1447 = vld [vmem:[%s931 + $0xa] sm:$0xff]
        %v1448 = vld [vmem:[%s931 + $0x1a] sm:$0xff]
        %v1449 = vld [vmem:[%s931 + $0x22] sm:$0xff]
        %v1450 = vld [vmem:[%s931 + $0x32] sm:$0xff]
        %v1451 = vld [vmem:[%s931 + $0x3a] sm:$0xff]
        %v1452 = vld [vmem:[%s931 + $0x4a] sm:$0xff]
        %v1453 = vld [vmem:[%s931 + $0x52] sm:$0xff]
        %v1454 = vld [vmem:[%s931 + $0x62] sm:$0xff]
        %v1455 = vld [vmem:[%s931 + $0x6a] sm:$0xff]
        %v1456 = vld [vmem:[%s931 + $0x7a] sm:$0xff]
        %v1457 = vld [vmem:[%s931 + $0x82] sm:$0xff]
        %v1458 = vld [vmem:[%s931 + $0x92] sm:$0xff]
        %v1459 = vld [vmem:[%s931 + $0x9a] sm:$0xff]
        %v1460 = vld [vmem:[%s931 + $0xaa] sm:$0xff]
        %v1461 = vld [vmem:[%s931 + $0xb2] sm:$0xff]
        %v1462 = vld [vmem:[%s931 + $0xc2] sm:$0xff]
        %v1463 = vld [vmem:[%s931 + $0xca] sm:$0xff]
        %v1464 = vld [vmem:[%s931 + $0xda] sm:$0xff]
        %v1465 = vld [vmem:[%s931 + $0xe2] sm:$0xff]
        %v1466 = vld [vmem:[%s931 + $0xf2] sm:$0xff]
        %v1467 = vld [vmem:[%s931 + $0xfa] sm:$0xff]
        %v1468 = vld [vmem:[%s931 + $0x10a] sm:$0xff]
        %v1469 = vld [vmem:[%s931 + $0x112] sm:$0xff]
        %v1470 = vld [vmem:[%s931 + $0x122] sm:$0xff]
        %v1471 = vld [vmem:[%s931 + $0x12a] sm:$0xff]
        %v1472 = vld [vmem:[%s931 + $0x13a] sm:$0xff]
        %v1473 = vld [vmem:[%s931 + $0x142] sm:$0xff]
        %v1474 = vld [vmem:[%s931 + $0x152] sm:$0xff]
        %v1475 = vld [vmem:[%s931 + $0x15a] sm:$0xff]
        %v1476 = vld [vmem:[%s931 + $0x16a] sm:$0xff]
        %v1477 = vld [vmem:[%s931 + $0x172] sm:$0xff]
        %v1478 = vpack.c.bf16 %v1447, %v1446
        %v1479 = vpack.c.bf16 %v1449, %v1448
        %v1480 = vpack.c.bf16 %v1451, %v1450
        %v1481 = vpack.c.bf16 %v1453, %v1452
        %v1482 = vpack.c.bf16 %v1455, %v1454
        %v1483 = vpack.c.bf16 %v1457, %v1456
        %v1484 = vpack.c.bf16 %v1459, %v1458
        %v1485 = vpack.c.bf16 %v1461, %v1460
        %v1486 = vpack.c.bf16 %v1463, %v1462
        %v1487 = vpack.c.bf16 %v1465, %v1464
        %v1488 = vpack.c.bf16 %v1467, %v1466
        %v1489 = vpack.c.bf16 %v1469, %v1468
        %v1490 = vpack.c.bf16 %v1471, %v1470
        %v1491 = vpack.c.bf16 %v1473, %v1472
        %v1492 = vpack.c.bf16 %v1475, %v1474
        %v1493 = vpack.c.bf16 %v1477, %v1476
        %v1510 = vunpack.c.l.b16 %v1478
        %v1511 = vunpack.c.h.b16 %v1478
        %v1512 = vunpack.c.l.b16 %v1479
        %v1513 = vunpack.c.h.b16 %v1479
        %v1514 = vunpack.c.l.b16 %v1480
        %v1515 = vunpack.c.h.b16 %v1480
        %v1516 = vunpack.c.l.b16 %v1481
        %v1517 = vunpack.c.h.b16 %v1481
        %v1518 = vunpack.c.l.b16 %v1482
        %v1519 = vunpack.c.h.b16 %v1482
        %v1520 = vunpack.c.l.b16 %v1483
        %v1521 = vunpack.c.h.b16 %v1483
        %v1522 = vunpack.c.l.b16 %v1484
        %v1523 = vunpack.c.h.b16 %v1484
        %v1524 = vunpack.c.l.b16 %v1485
        %v1525 = vunpack.c.h.b16 %v1485
        %v1526 = vunpack.c.l.b16 %v1486
        %v1527 = vunpack.c.h.b16 %v1486
        %v1528 = vunpack.c.l.b16 %v1487
        %v1529 = vunpack.c.h.b16 %v1487
        %v1530 = vunpack.c.l.b16 %v1488
        %v1531 = vunpack.c.h.b16 %v1488
        %v1532 = vunpack.c.l.b16 %v1489
        %v1533 = vunpack.c.h.b16 %v1489
        %v1534 = vunpack.c.l.b16 %v1490
        %v1535 = vunpack.c.h.b16 %v1490
        %v1536 = vunpack.c.l.b16 %v1491
        %v1537 = vunpack.c.h.b16 %v1491
        %v1538 = vunpack.c.l.b16 %v1492
        %v1539 = vunpack.c.h.b16 %v1492
        %v1540 = vunpack.c.l.b16 %v1493
        %v1541 = vunpack.c.h.b16 %v1493
        %v1542 = vpack.c.b16 %v1510, %v1510
        %v1543 = vpack.c.b16 %v1511, %v1511
        %v1544 = vpack.c.b16 %v1512, %v1512
        %v1545 = vpack.c.b16 %v1513, %v1513
        %v1546 = vpack.c.b16 %v1514, %v1514
        %v1547 = vpack.c.b16 %v1515, %v1515
        %v1548 = vpack.c.b16 %v1516, %v1516
        %v1549 = vpack.c.b16 %v1517, %v1517
        %v1550 = vpack.c.b16 %v1518, %v1518
        %v1551 = vpack.c.b16 %v1519, %v1519
        %v1552 = vpack.c.b16 %v1520, %v1520
        %v1553 = vpack.c.b16 %v1521, %v1521
        %v1554 = vpack.c.b16 %v1522, %v1522
        %v1555 = vpack.c.b16 %v1523, %v1523
        %v1556 = vpack.c.b16 %v1524, %v1524
        %v1557 = vpack.c.b16 %v1525, %v1525
        %v1558 = vpack.c.b16 %v1526, %v1526
        %v1559 = vpack.c.b16 %v1527, %v1527
        %v1560 = vpack.c.b16 %v1528, %v1528
        %v1561 = vpack.c.b16 %v1529, %v1529
        %v1562 = vpack.c.b16 %v1530, %v1530
        %v1563 = vpack.c.b16 %v1531, %v1531
        %v1564 = vpack.c.b16 %v1532, %v1532
        %v1565 = vpack.c.b16 %v1533, %v1533
        %v1566 = vpack.c.b16 %v1534, %v1534
        %v1567 = vpack.c.b16 %v1535, %v1535
        %v1568 = vpack.c.b16 %v1536, %v1536
        %v1569 = vpack.c.b16 %v1537, %v1537
        %v1570 = vpack.c.b16 %v1538, %v1538
        %v1571 = vpack.c.b16 %v1539, %v1539
        %v1572 = vpack.c.b16 %v1540, %v1540
        %v1573 = vpack.c.b16 %v1541, %v1541
        %1574 = vrot.lane.b32.xlu0 %v1542, 20
        %v1575 = vpop.permute.xlu0 %1574
        %1576 = vrot.lane.b32.xlu0 %v1543, 20
        %v1577 = vpop.permute.xlu0 %1576
        %1578 = vrot.lane.b32.xlu0 %v1544, 20
        %v1579 = vpop.permute.xlu0 %1578
        %1580 = vrot.lane.b32.xlu0 %v1545, 20
        %v1581 = vpop.permute.xlu0 %1580
        %1582 = vrot.lane.b32.xlu0 %v1546, 20
        %v1583 = vpop.permute.xlu0 %1582
        %1584 = vrot.lane.b32.xlu0 %v1547, 20
        %v1585 = vpop.permute.xlu0 %1584
        %1586 = vrot.lane.b32.xlu0 %v1548, 20
        %v1587 = vpop.permute.xlu0 %1586
        %1588 = vrot.lane.b32.xlu0 %v1549, 20
        %v1589 = vpop.permute.xlu0 %1588
        %1590 = vrot.lane.b32.xlu0 %v1550, 20
        %v1591 = vpop.permute.xlu0 %1590
        %1592 = vrot.lane.b32.xlu0 %v1551, 20
        %v1593 = vpop.permute.xlu0 %1592
        %1594 = vrot.lane.b32.xlu0 %v1552, 20
        %v1595 = vpop.permute.xlu0 %1594
        %1596 = vrot.lane.b32.xlu0 %v1553, 20
        %v1597 = vpop.permute.xlu0 %1596
        %1598 = vrot.lane.b32.xlu0 %v1554, 20
        %v1599 = vpop.permute.xlu0 %1598
        %1600 = vrot.lane.b32.xlu0 %v1555, 20
        %v1601 = vpop.permute.xlu0 %1600
        %1602 = vrot.lane.b32.xlu0 %v1556, 20
        %v1603 = vpop.permute.xlu0 %1602
        %1604 = vrot.lane.b32.xlu0 %v1557, 20
        %v1605 = vpop.permute.xlu0 %1604
        %1606 = vrot.lane.b32.xlu0 %v1558, 20
        %v1607 = vpop.permute.xlu0 %1606
        %1608 = vrot.lane.b32.xlu0 %v1559, 20
        %v1609 = vpop.permute.xlu0 %1608
        %1610 = vrot.lane.b32.xlu0 %v1560, 20
        %v1611 = vpop.permute.xlu0 %1610
        %1612 = vrot.lane.b32.xlu0 %v1561, 20
        %v1613 = vpop.permute.xlu0 %1612
        %1614 = vrot.lane.b32.xlu0 %v1562, 20
        %v1615 = vpop.permute.xlu0 %1614
        %1616 = vrot.lane.b32.xlu0 %v1563, 20
        %v1617 = vpop.permute.xlu0 %1616
        %1618 = vrot.lane.b32.xlu0 %v1564, 20
        %v1619 = vpop.permute.xlu0 %1618
        %1620 = vrot.lane.b32.xlu0 %v1565, 20
        %v1621 = vpop.permute.xlu0 %1620
        %1622 = vrot.lane.b32.xlu0 %v1566, 20
        %v1623 = vpop.permute.xlu0 %1622
        %1624 = vrot.lane.b32.xlu0 %v1567, 20
        %v1625 = vpop.permute.xlu0 %1624
        %1626 = vrot.lane.b32.xlu0 %v1568, 20
        %v1627 = vpop.permute.xlu0 %1626
        %1628 = vrot.lane.b32.xlu0 %v1569, 20
        %v1629 = vpop.permute.xlu0 %1628
        %1630 = vrot.lane.b32.xlu0 %v1570, 20
        %v1631 = vpop.permute.xlu0 %1630
        %1632 = vrot.lane.b32.xlu0 %v1571, 20
        %v1633 = vpop.permute.xlu0 %1632
        %1634 = vrot.lane.b32.xlu0 %v1572, 20
        %v1635 = vpop.permute.xlu0 %1634
        %1636 = vrot.lane.b32.xlu0 %v1573, 20
        %v1637 = vpop.permute.xlu0 %1636
        %vm1670 = vcmask 191648
        %1671 = vst.msk [vmem:[#allocation2] sm:$0xf] %vm1670, %v1575
        %1672 = vst.msk [vmem:[#allocation2 + $0x4] sm:$0xf] %vm1670, %v1577
        %1673 = vst.msk [vmem:[#allocation2 + $0x8] sm:$0xf] %vm1670, %v1579
        %1674 = vst.msk [vmem:[#allocation2 + $0xc] sm:$0xf] %vm1670, %v1581
        %1675 = vst.msk [vmem:[#allocation2 + $0x10] sm:$0xf] %vm1670, %v1583
        %1676 = vst.msk [vmem:[#allocation2 + $0x14] sm:$0xf] %vm1670, %v1585
        %1677 = vst.msk [vmem:[#allocation2 + $0x18] sm:$0xf] %vm1670, %v1587
        %1678 = vst.msk [vmem:[#allocation2 + $0x1c] sm:$0xf] %vm1670, %v1589
        %1679 = vst.msk [vmem:[#allocation2 + $0x20] sm:$0xf] %vm1670, %v1591
        %1680 = vst.msk [vmem:[#allocation2 + $0x24] sm:$0xf] %vm1670, %v1593
        %1681 = vst.msk [vmem:[#allocation2 + $0x28] sm:$0xf] %vm1670, %v1595
        %1682 = vst.msk [vmem:[#allocation2 + $0x2c] sm:$0xf] %vm1670, %v1597
        %1683 = vst.msk [vmem:[#allocation2 + $0x30] sm:$0xf] %vm1670, %v1599
        %1684 = vst.msk [vmem:[#allocation2 + $0x34] sm:$0xf] %vm1670, %v1601
        %1685 = vst.msk [vmem:[#allocation2 + $0x38] sm:$0xf] %vm1670, %v1603
        %1686 = vst.msk [vmem:[#allocation2 + $0x3c] sm:$0xf] %vm1670, %v1605
        %1687 = vst.msk [vmem:[#allocation2 + $0x40] sm:$0xf] %vm1670, %v1607
        %1688 = vst.msk [vmem:[#allocation2 + $0x44] sm:$0xf] %vm1670, %v1609
        %1689 = vst.msk [vmem:[#allocation2 + $0x48] sm:$0xf] %vm1670, %v1611
        %1690 = vst.msk [vmem:[#allocation2 + $0x4c] sm:$0xf] %vm1670, %v1613
        %1691 = vst.msk [vmem:[#allocation2 + $0x50] sm:$0xf] %vm1670, %v1615
        %1692 = vst.msk [vmem:[#allocation2 + $0x54] sm:$0xf] %vm1670, %v1617
        %1693 = vst.msk [vmem:[#allocation2 + $0x58] sm:$0xf] %vm1670, %v1619
        %1694 = vst.msk [vmem:[#allocation2 + $0x5c] sm:$0xf] %vm1670, %v1621
        %1695 = vst.msk [vmem:[#allocation2 + $0x60] sm:$0xf] %vm1670, %v1623
        %1696 = vst.msk [vmem:[#allocation2 + $0x64] sm:$0xf] %vm1670, %v1625
        %1697 = vst.msk [vmem:[#allocation2 + $0x68] sm:$0xf] %vm1670, %v1627
        %1698 = vst.msk [vmem:[#allocation2 + $0x6c] sm:$0xf] %vm1670, %v1629
        %1699 = vst.msk [vmem:[#allocation2 + $0x70] sm:$0xf] %vm1670, %v1631
        %1700 = vst.msk [vmem:[#allocation2 + $0x74] sm:$0xf] %vm1670, %v1633
        %1701 = vst.msk [vmem:[#allocation2 + $0x78] sm:$0xf] %vm1670, %v1635
        %1702 = vst.msk [vmem:[#allocation2 + $0x7c] sm:$0xf] %vm1670, %v1637
        %s1703 = scalar_lea.vmem %s222, 48
        %v1704 = vld [vmem:[%s1703] sm:$0xff]
        %v1705 = vld [vmem:[%s1703 + $0x8] sm:$0xff]
        %v1706 = vld [vmem:[%s1703 + $0x18] sm:$0xff]
        %v1707 = vld [vmem:[%s1703 + $0x20] sm:$0xff]
        %v1708 = vld [vmem:[%s1703 + $0x30] sm:$0xff]
        %v1709 = vld [vmem:[%s1703 + $0x38] sm:$0xff]
        %v1710 = vld [vmem:[%s1703 + $0x48] sm:$0xff]
        %v1711 = vld [vmem:[%s1703 + $0x50] sm:$0xff]
        %v1712 = vld [vmem:[%s1703 + $0x60] sm:$0xff]
        %v1713 = vld [vmem:[%s1703 + $0x68] sm:$0xff]
        %v1714 = vld [vmem:[%s1703 + $0x78] sm:$0xff]
        %v1715 = vld [vmem:[%s1703 + $0x80] sm:$0xff]
        %v1716 = vld [vmem:[%s1703 + $0x90] sm:$0xff]
        %v1717 = vld [vmem:[%s1703 + $0x98] sm:$0xff]
        %v1718 = vld [vmem:[%s1703 + $0xa8] sm:$0xff]
        %v1719 = vld [vmem:[%s1703 + $0xb0] sm:$0xff]
        %v1720 = vld [vmem:[%s1703 + $0xc0] sm:$0xff]
        %v1721 = vld [vmem:[%s1703 + $0xc8] sm:$0xff]
        %v1722 = vld [vmem:[%s1703 + $0xd8] sm:$0xff]
        %v1723 = vld [vmem:[%s1703 + $0xe0] sm:$0xff]
        %v1724 = vld [vmem:[%s1703 + $0xf0] sm:$0xff]
        %v1725 = vld [vmem:[%s1703 + $0xf8] sm:$0xff]
        %v1726 = vld [vmem:[%s1703 + $0x108] sm:$0xff]
        %v1727 = vld [vmem:[%s1703 + $0x110] sm:$0xff]
        %v1728 = vld [vmem:[%s1703 + $0x120] sm:$0xff]
        %v1729 = vld [vmem:[%s1703 + $0x128] sm:$0xff]
        %v1730 = vld [vmem:[%s1703 + $0x138] sm:$0xff]
        %v1731 = vld [vmem:[%s1703 + $0x140] sm:$0xff]
        %v1732 = vld [vmem:[%s1703 + $0x150] sm:$0xff]
        %v1733 = vld [vmem:[%s1703 + $0x158] sm:$0xff]
        %v1734 = vld [vmem:[%s1703 + $0x168] sm:$0xff]
        %v1735 = vld [vmem:[%s1703 + $0x170] sm:$0xff]
        %v1736 = vpack.c.bf16 %v1705, %v1704
        %v1737 = vpack.c.bf16 %v1707, %v1706
        %v1738 = vpack.c.bf16 %v1709, %v1708
        %v1739 = vpack.c.bf16 %v1711, %v1710
        %v1740 = vpack.c.bf16 %v1713, %v1712
        %v1741 = vpack.c.bf16 %v1715, %v1714
        %v1742 = vpack.c.bf16 %v1717, %v1716
        %v1743 = vpack.c.bf16 %v1719, %v1718
        %v1744 = vpack.c.bf16 %v1721, %v1720
        %v1745 = vpack.c.bf16 %v1723, %v1722
        %v1746 = vpack.c.bf16 %v1725, %v1724
        %v1747 = vpack.c.bf16 %v1727, %v1726
        %v1748 = vpack.c.bf16 %v1729, %v1728
        %v1749 = vpack.c.bf16 %v1731, %v1730
        %v1750 = vpack.c.bf16 %v1733, %v1732
        %v1751 = vpack.c.bf16 %v1735, %v1734
        %v1768 = vunpack.c.l.b16 %v1736
        %v1769 = vunpack.c.h.b16 %v1736
        %v1770 = vunpack.c.l.b16 %v1737
        %v1771 = vunpack.c.h.b16 %v1737
        %v1772 = vunpack.c.l.b16 %v1738
        %v1773 = vunpack.c.h.b16 %v1738
        %v1774 = vunpack.c.l.b16 %v1739
        %v1775 = vunpack.c.h.b16 %v1739
        %v1776 = vunpack.c.l.b16 %v1740
        %v1777 = vunpack.c.h.b16 %v1740
        %v1778 = vunpack.c.l.b16 %v1741
        %v1779 = vunpack.c.h.b16 %v1741
        %v1780 = vunpack.c.l.b16 %v1742
        %v1781 = vunpack.c.h.b16 %v1742
        %v1782 = vunpack.c.l.b16 %v1743
        %v1783 = vunpack.c.h.b16 %v1743
        %v1784 = vunpack.c.l.b16 %v1744
        %v1785 = vunpack.c.h.b16 %v1744
        %v1786 = vunpack.c.l.b16 %v1745
        %v1787 = vunpack.c.h.b16 %v1745
        %v1788 = vunpack.c.l.b16 %v1746
        %v1789 = vunpack.c.h.b16 %v1746
        %v1790 = vunpack.c.l.b16 %v1747
        %v1791 = vunpack.c.h.b16 %v1747
        %v1792 = vunpack.c.l.b16 %v1748
        %v1793 = vunpack.c.h.b16 %v1748
        %v1794 = vunpack.c.l.b16 %v1749
        %v1795 = vunpack.c.h.b16 %v1749
        %v1796 = vunpack.c.l.b16 %v1750
        %v1797 = vunpack.c.h.b16 %v1750
        %v1798 = vunpack.c.l.b16 %v1751
        %v1799 = vunpack.c.h.b16 %v1751
        %v1800 = vpack.c.b16 %v1768, %v1768
        %v1801 = vpack.c.b16 %v1769, %v1769
        %v1802 = vpack.c.b16 %v1770, %v1770
        %v1803 = vpack.c.b16 %v1771, %v1771
        %v1804 = vpack.c.b16 %v1772, %v1772
        %v1805 = vpack.c.b16 %v1773, %v1773
        %v1806 = vpack.c.b16 %v1774, %v1774
        %v1807 = vpack.c.b16 %v1775, %v1775
        %v1808 = vpack.c.b16 %v1776, %v1776
        %v1809 = vpack.c.b16 %v1777, %v1777
        %v1810 = vpack.c.b16 %v1778, %v1778
        %v1811 = vpack.c.b16 %v1779, %v1779
        %v1812 = vpack.c.b16 %v1780, %v1780
        %v1813 = vpack.c.b16 %v1781, %v1781
        %v1814 = vpack.c.b16 %v1782, %v1782
        %v1815 = vpack.c.b16 %v1783, %v1783
        %v1816 = vpack.c.b16 %v1784, %v1784
        %v1817 = vpack.c.b16 %v1785, %v1785
        %v1818 = vpack.c.b16 %v1786, %v1786
        %v1819 = vpack.c.b16 %v1787, %v1787
        %v1820 = vpack.c.b16 %v1788, %v1788
        %v1821 = vpack.c.b16 %v1789, %v1789
        %v1822 = vpack.c.b16 %v1790, %v1790
        %v1823 = vpack.c.b16 %v1791, %v1791
        %v1824 = vpack.c.b16 %v1792, %v1792
        %v1825 = vpack.c.b16 %v1793, %v1793
        %v1826 = vpack.c.b16 %v1794, %v1794
        %v1827 = vpack.c.b16 %v1795, %v1795
        %v1828 = vpack.c.b16 %v1796, %v1796
        %v1829 = vpack.c.b16 %v1797, %v1797
        %v1830 = vpack.c.b16 %v1798, %v1798
        %v1831 = vpack.c.b16 %v1799, %v1799
        %1832 = vrot.lane.b32.xlu0 %v1800, 24
        %v1833 = vpop.permute.xlu0 %1832
        %1834 = vrot.lane.b32.xlu0 %v1801, 24
        %v1835 = vpop.permute.xlu0 %1834
        %1836 = vrot.lane.b32.xlu0 %v1802, 24
        %v1837 = vpop.permute.xlu0 %1836
        %1838 = vrot.lane.b32.xlu0 %v1803, 24
        %v1839 = vpop.permute.xlu0 %1838
        %1840 = vrot.lane.b32.xlu0 %v1804, 24
        %v1841 = vpop.permute.xlu0 %1840
        %1842 = vrot.lane.b32.xlu0 %v1805, 24
        %v1843 = vpop.permute.xlu0 %1842
        %1844 = vrot.lane.b32.xlu0 %v1806, 24
        %v1845 = vpop.permute.xlu0 %1844
        %1846 = vrot.lane.b32.xlu0 %v1807, 24
        %v1847 = vpop.permute.xlu0 %1846
        %1848 = vrot.lane.b32.xlu0 %v1808, 24
        %v1849 = vpop.permute.xlu0 %1848
        %1850 = vrot.lane.b32.xlu0 %v1809, 24
        %v1851 = vpop.permute.xlu0 %1850
        %1852 = vrot.lane.b32.xlu0 %v1810, 24
        %v1853 = vpop.permute.xlu0 %1852
        %1854 = vrot.lane.b32.xlu0 %v1811, 24
        %v1855 = vpop.permute.xlu0 %1854
        %1856 = vrot.lane.b32.xlu0 %v1812, 24
        %v1857 = vpop.permute.xlu0 %1856
        %1858 = vrot.lane.b32.xlu0 %v1813, 24
        %v1859 = vpop.permute.xlu0 %1858
        %1860 = vrot.lane.b32.xlu0 %v1814, 24
        %v1861 = vpop.permute.xlu0 %1860
        %1862 = vrot.lane.b32.xlu0 %v1815, 24
        %v1863 = vpop.permute.xlu0 %1862
        %1864 = vrot.lane.b32.xlu0 %v1816, 24
        %v1865 = vpop.permute.xlu0 %1864
        %1866 = vrot.lane.b32.xlu0 %v1817, 24
        %v1867 = vpop.permute.xlu0 %1866
        %1868 = vrot.lane.b32.xlu0 %v1818, 24
        %v1869 = vpop.permute.xlu0 %1868
        %1870 = vrot.lane.b32.xlu0 %v1819, 24
        %v1871 = vpop.permute.xlu0 %1870
        %1872 = vrot.lane.b32.xlu0 %v1820, 24
        %v1873 = vpop.permute.xlu0 %1872
        %1874 = vrot.lane.b32.xlu0 %v1821, 24
        %v1875 = vpop.permute.xlu0 %1874
        %1876 = vrot.lane.b32.xlu0 %v1822, 24
        %v1877 = vpop.permute.xlu0 %1876
        %1878 = vrot.lane.b32.xlu0 %v1823, 24
        %v1879 = vpop.permute.xlu0 %1878
        %1880 = vrot.lane.b32.xlu0 %v1824, 24
        %v1881 = vpop.permute.xlu0 %1880
        %1882 = vrot.lane.b32.xlu0 %v1825, 24
        %v1883 = vpop.permute.xlu0 %1882
        %1884 = vrot.lane.b32.xlu0 %v1826, 24
        %v1885 = vpop.permute.xlu0 %1884
        %1886 = vrot.lane.b32.xlu0 %v1827, 24
        %v1887 = vpop.permute.xlu0 %1886
        %1888 = vrot.lane.b32.xlu0 %v1828, 24
        %v1889 = vpop.permute.xlu0 %1888
        %1890 = vrot.lane.b32.xlu0 %v1829, 24
        %v1891 = vpop.permute.xlu0 %1890
        %1892 = vrot.lane.b32.xlu0 %v1830, 24
        %v1893 = vpop.permute.xlu0 %1892
        %1894 = vrot.lane.b32.xlu0 %v1831, 24
        %v1895 = vpop.permute.xlu0 %1894
        %vm1928 = vcmask 224448
        %1929 = vst.msk [vmem:[#allocation2] sm:$0xf] %vm1928, %v1833
        %1930 = vst.msk [vmem:[#allocation2 + $0x4] sm:$0xf] %vm1928, %v1835
        %1931 = vst.msk [vmem:[#allocation2 + $0x8] sm:$0xf] %vm1928, %v1837
        %1932 = vst.msk [vmem:[#allocation2 + $0xc] sm:$0xf] %vm1928, %v1839
        %1933 = vst.msk [vmem:[#allocation2 + $0x10] sm:$0xf] %vm1928, %v1841
        %1934 = vst.msk [vmem:[#allocation2 + $0x14] sm:$0xf] %vm1928, %v1843
        %1935 = vst.msk [vmem:[#allocation2 + $0x18] sm:$0xf] %vm1928, %v1845
        %1936 = vst.msk [vmem:[#allocation2 + $0x1c] sm:$0xf] %vm1928, %v1847
        %1937 = vst.msk [vmem:[#allocation2 + $0x20] sm:$0xf] %vm1928, %v1849
        %1938 = vst.msk [vmem:[#allocation2 + $0x24] sm:$0xf] %vm1928, %v1851
        %1939 = vst.msk [vmem:[#allocation2 + $0x28] sm:$0xf] %vm1928, %v1853
        %1940 = vst.msk [vmem:[#allocation2 + $0x2c] sm:$0xf] %vm1928, %v1855
        %1941 = vst.msk [vmem:[#allocation2 + $0x30] sm:$0xf] %vm1928, %v1857
        %1942 = vst.msk [vmem:[#allocation2 + $0x34] sm:$0xf] %vm1928, %v1859
        %1943 = vst.msk [vmem:[#allocation2 + $0x38] sm:$0xf] %vm1928, %v1861
        %1944 = vst.msk [vmem:[#allocation2 + $0x3c] sm:$0xf] %vm1928, %v1863
        %1945 = vst.msk [vmem:[#allocation2 + $0x40] sm:$0xf] %vm1928, %v1865
        %1946 = vst.msk [vmem:[#allocation2 + $0x44] sm:$0xf] %vm1928, %v1867
        %1947 = vst.msk [vmem:[#allocation2 + $0x48] sm:$0xf] %vm1928, %v1869
        %1948 = vst.msk [vmem:[#allocation2 + $0x4c] sm:$0xf] %vm1928, %v1871
        %1949 = vst.msk [vmem:[#allocation2 + $0x50] sm:$0xf] %vm1928, %v1873
        %1950 = vst.msk [vmem:[#allocation2 + $0x54] sm:$0xf] %vm1928, %v1875
        %1951 = vst.msk [vmem:[#allocation2 + $0x58] sm:$0xf] %vm1928, %v1877
        %1952 = vst.msk [vmem:[#allocation2 + $0x5c] sm:$0xf] %vm1928, %v1879
        %1953 = vst.msk [vmem:[#allocation2 + $0x60] sm:$0xf] %vm1928, %v1881
        %1954 = vst.msk [vmem:[#allocation2 + $0x64] sm:$0xf] %vm1928, %v1883
        %1955 = vst.msk [vmem:[#allocation2 + $0x68] sm:$0xf] %vm1928, %v1885
        %1956 = vst.msk [vmem:[#allocation2 + $0x6c] sm:$0xf] %vm1928, %v1887
        %1957 = vst.msk [vmem:[#allocation2 + $0x70] sm:$0xf] %vm1928, %v1889
        %1958 = vst.msk [vmem:[#allocation2 + $0x74] sm:$0xf] %vm1928, %v1891
        %1959 = vst.msk [vmem:[#allocation2 + $0x78] sm:$0xf] %vm1928, %v1893
        %1960 = vst.msk [vmem:[#allocation2 + $0x7c] sm:$0xf] %vm1928, %v1895
        %v1961 = vld [vmem:[%s1703 + $0x1] sm:$0xff]
        %v1962 = vld [vmem:[%s1703 + $0x9] sm:$0xff]
        %v1963 = vld [vmem:[%s1703 + $0x19] sm:$0xff]
        %v1964 = vld [vmem:[%s1703 + $0x21] sm:$0xff]
        %v1965 = vld [vmem:[%s1703 + $0x31] sm:$0xff]
        %v1966 = vld [vmem:[%s1703 + $0x39] sm:$0xff]
        %v1967 = vld [vmem:[%s1703 + $0x49] sm:$0xff]
        %v1968 = vld [vmem:[%s1703 + $0x51] sm:$0xff]
        %v1969 = vld [vmem:[%s1703 + $0x61] sm:$0xff]
        %v1970 = vld [vmem:[%s1703 + $0x69] sm:$0xff]
        %v1971 = vld [vmem:[%s1703 + $0x79] sm:$0xff]
        %v1972 = vld [vmem:[%s1703 + $0x81] sm:$0xff]
        %v1973 = vld [vmem:[%s1703 + $0x91] sm:$0xff]
        %v1974 = vld [vmem:[%s1703 + $0x99] sm:$0xff]
        %v1975 = vld [vmem:[%s1703 + $0xa9] sm:$0xff]
        %v1976 = vld [vmem:[%s1703 + $0xb1] sm:$0xff]
        %v1977 = vld [vmem:[%s1703 + $0xc1] sm:$0xff]
        %v1978 = vld [vmem:[%s1703 + $0xc9] sm:$0xff]
        %v1979 = vld [vmem:[%s1703 + $0xd9] sm:$0xff]
        %v1980 = vld [vmem:[%s1703 + $0xe1] sm:$0xff]
        %v1981 = vld [vmem:[%s1703 + $0xf1] sm:$0xff]
        %v1982 = vld [vmem:[%s1703 + $0xf9] sm:$0xff]
        %v1983 = vld [vmem:[%s1703 + $0x109] sm:$0xff]
        %v1984 = vld [vmem:[%s1703 + $0x111] sm:$0xff]
        %v1985 = vld [vmem:[%s1703 + $0x121] sm:$0xff]
        %v1986 = vld [vmem:[%s1703 + $0x129] sm:$0xff]
        %v1987 = vld [vmem:[%s1703 + $0x139] sm:$0xff]
        %v1988 = vld [vmem:[%s1703 + $0x141] sm:$0xff]
        %v1989 = vld [vmem:[%s1703 + $0x151] sm:$0xff]
        %v1990 = vld [vmem:[%s1703 + $0x159] sm:$0xff]
        %v1991 = vld [vmem:[%s1703 + $0x169] sm:$0xff]
        %v1992 = vld [vmem:[%s1703 + $0x171] sm:$0xff]
        %v1993 = vpack.c.bf16 %v1962, %v1961
        %v1994 = vpack.c.bf16 %v1964, %v1963
        %v1995 = vpack.c.bf16 %v1966, %v1965
        %v1996 = vpack.c.bf16 %v1968, %v1967
        %v1997 = vpack.c.bf16 %v1970, %v1969
        %v1998 = vpack.c.bf16 %v1972, %v1971
        %v1999 = vpack.c.bf16 %v1974, %v1973
        %v2000 = vpack.c.bf16 %v1976, %v1975
        %v2001 = vpack.c.bf16 %v1978, %v1977
        %v2002 = vpack.c.bf16 %v1980, %v1979
        %v2003 = vpack.c.bf16 %v1982, %v1981
        %v2004 = vpack.c.bf16 %v1984, %v1983
        %v2005 = vpack.c.bf16 %v1986, %v1985
        %v2006 = vpack.c.bf16 %v1988, %v1987
        %v2007 = vpack.c.bf16 %v1990, %v1989
        %v2008 = vpack.c.bf16 %v1992, %v1991
        %v2025 = vunpack.c.l.b16 %v1993
        %v2026 = vunpack.c.h.b16 %v1993
        %v2027 = vunpack.c.l.b16 %v1994
        %v2028 = vunpack.c.h.b16 %v1994
        %v2029 = vunpack.c.l.b16 %v1995
        %v2030 = vunpack.c.h.b16 %v1995
        %v2031 = vunpack.c.l.b16 %v1996
        %v2032 = vunpack.c.h.b16 %v1996
        %v2033 = vunpack.c.l.b16 %v1997
        %v2034 = vunpack.c.h.b16 %v1997
        %v2035 = vunpack.c.l.b16 %v1998
        %v2036 = vunpack.c.h.b16 %v1998
        %v2037 = vunpack.c.l.b16 %v1999
        %v2038 = vunpack.c.h.b16 %v1999
        %v2039 = vunpack.c.l.b16 %v2000
        %v2040 = vunpack.c.h.b16 %v2000
        %v2041 = vunpack.c.l.b16 %v2001
        %v2042 = vunpack.c.h.b16 %v2001
        %v2043 = vunpack.c.l.b16 %v2002
        %v2044 = vunpack.c.h.b16 %v2002
        %v2045 = vunpack.c.l.b16 %v2003
        %v2046 = vunpack.c.h.b16 %v2003
        %v2047 = vunpack.c.l.b16 %v2004
        %v2048 = vunpack.c.h.b16 %v2004
        %v2049 = vunpack.c.l.b16 %v2005
        %v2050 = vunpack.c.h.b16 %v2005
        %v2051 = vunpack.c.l.b16 %v2006
        %v2052 = vunpack.c.h.b16 %v2006
        %v2053 = vunpack.c.l.b16 %v2007
        %v2054 = vunpack.c.h.b16 %v2007
        %v2055 = vunpack.c.l.b16 %v2008
        %v2056 = vunpack.c.h.b16 %v2008
        %v2057 = vpack.c.b16 %v2025, %v2025
        %v2058 = vpack.c.b16 %v2026, %v2026
        %v2059 = vpack.c.b16 %v2027, %v2027
        %v2060 = vpack.c.b16 %v2028, %v2028
        %v2061 = vpack.c.b16 %v2029, %v2029
        %v2062 = vpack.c.b16 %v2030, %v2030
        %v2063 = vpack.c.b16 %v2031, %v2031
        %v2064 = vpack.c.b16 %v2032, %v2032
        %v2065 = vpack.c.b16 %v2033, %v2033
        %v2066 = vpack.c.b16 %v2034, %v2034
        %v2067 = vpack.c.b16 %v2035, %v2035
        %v2068 = vpack.c.b16 %v2036, %v2036
        %v2069 = vpack.c.b16 %v2037, %v2037
        %v2070 = vpack.c.b16 %v2038, %v2038
        %v2071 = vpack.c.b16 %v2039, %v2039
        %v2072 = vpack.c.b16 %v2040, %v2040
        %v2073 = vpack.c.b16 %v2041, %v2041
        %v2074 = vpack.c.b16 %v2042, %v2042
        %v2075 = vpack.c.b16 %v2043, %v2043
        %v2076 = vpack.c.b16 %v2044, %v2044
        %v2077 = vpack.c.b16 %v2045, %v2045
        %v2078 = vpack.c.b16 %v2046, %v2046
        %v2079 = vpack.c.b16 %v2047, %v2047
        %v2080 = vpack.c.b16 %v2048, %v2048
        %v2081 = vpack.c.b16 %v2049, %v2049
        %v2082 = vpack.c.b16 %v2050, %v2050
        %v2083 = vpack.c.b16 %v2051, %v2051
        %v2084 = vpack.c.b16 %v2052, %v2052
        %v2085 = vpack.c.b16 %v2053, %v2053
        %v2086 = vpack.c.b16 %v2054, %v2054
        %v2087 = vpack.c.b16 %v2055, %v2055
        %v2088 = vpack.c.b16 %v2056, %v2056
        %2089 = vrot.lane.b32.xlu0 %v2057, 28
        %v2090 = vpop.permute.xlu0 %2089
        %2091 = vrot.lane.b32.xlu0 %v2058, 28
        %v2092 = vpop.permute.xlu0 %2091
        %2093 = vrot.lane.b32.xlu0 %v2059, 28
        %v2094 = vpop.permute.xlu0 %2093
        %2095 = vrot.lane.b32.xlu0 %v2060, 28
        %v2096 = vpop.permute.xlu0 %2095
        %2097 = vrot.lane.b32.xlu0 %v2061, 28
        %v2098 = vpop.permute.xlu0 %2097
        %2099 = vrot.lane.b32.xlu0 %v2062, 28
        %v2100 = vpop.permute.xlu0 %2099
        %2101 = vrot.lane.b32.xlu0 %v2063, 28
        %v2102 = vpop.permute.xlu0 %2101
        %2103 = vrot.lane.b32.xlu0 %v2064, 28
        %v2104 = vpop.permute.xlu0 %2103
        %2105 = vrot.lane.b32.xlu0 %v2065, 28
        %v2106 = vpop.permute.xlu0 %2105
        %2107 = vrot.lane.b32.xlu0 %v2066, 28
        %v2108 = vpop.permute.xlu0 %2107
        %2109 = vrot.lane.b32.xlu0 %v2067, 28
        %v2110 = vpop.permute.xlu0 %2109
        %2111 = vrot.lane.b32.xlu0 %v2068, 28
        %v2112 = vpop.permute.xlu0 %2111
        %2113 = vrot.lane.b32.xlu0 %v2069, 28
        %v2114 = vpop.permute.xlu0 %2113
        %2115 = vrot.lane.b32.xlu0 %v2070, 28
        %v2116 = vpop.permute.xlu0 %2115
        %2117 = vrot.lane.b32.xlu0 %v2071, 28
        %v2118 = vpop.permute.xlu0 %2117
        %2119 = vrot.lane.b32.xlu0 %v2072, 28
        %v2120 = vpop.permute.xlu0 %2119
        %2121 = vrot.lane.b32.xlu0 %v2073, 28
        %v2122 = vpop.permute.xlu0 %2121
        %2123 = vrot.lane.b32.xlu0 %v2074, 28
        %v2124 = vpop.permute.xlu0 %2123
        %2125 = vrot.lane.b32.xlu0 %v2075, 28
        %v2126 = vpop.permute.xlu0 %2125
        %2127 = vrot.lane.b32.xlu0 %v2076, 28
        %v2128 = vpop.permute.xlu0 %2127
        %2129 = vrot.lane.b32.xlu0 %v2077, 28
        %v2130 = vpop.permute.xlu0 %2129
        %2131 = vrot.lane.b32.xlu0 %v2078, 28
        %v2132 = vpop.permute.xlu0 %2131
        %2133 = vrot.lane.b32.xlu0 %v2079, 28
        %v2134 = vpop.permute.xlu0 %2133
        %2135 = vrot.lane.b32.xlu0 %v2080, 28
        %v2136 = vpop.permute.xlu0 %2135
        %2137 = vrot.lane.b32.xlu0 %v2081, 28
        %v2138 = vpop.permute.xlu0 %2137
        %2139 = vrot.lane.b32.xlu0 %v2082, 28
        %v2140 = vpop.permute.xlu0 %2139
        %2141 = vrot.lane.b32.xlu0 %v2083, 28
        %v2142 = vpop.permute.xlu0 %2141
        %2143 = vrot.lane.b32.xlu0 %v2084, 28
        %v2144 = vpop.permute.xlu0 %2143
        %2145 = vrot.lane.b32.xlu0 %v2085, 28
        %v2146 = vpop.permute.xlu0 %2145
        %2147 = vrot.lane.b32.xlu0 %v2086, 28
        %v2148 = vpop.permute.xlu0 %2147
        %2149 = vrot.lane.b32.xlu0 %v2087, 28
        %v2150 = vpop.permute.xlu0 %2149
        %2151 = vrot.lane.b32.xlu0 %v2088, 28
        %v2152 = vpop.permute.xlu0 %2151
        %vm2185 = vcmask 257248
        %2186 = vst.msk [vmem:[#allocation2] sm:$0xf] %vm2185, %v2090
        %2187 = vst.msk [vmem:[#allocation2 + $0x4] sm:$0xf] %vm2185, %v2092
        %2188 = vst.msk [vmem:[#allocation2 + $0x8] sm:$0xf] %vm2185, %v2094
        %2189 = vst.msk [vmem:[#allocation2 + $0xc] sm:$0xf] %vm2185, %v2096
        %2190 = vst.msk [vmem:[#allocation2 + $0x10] sm:$0xf] %vm2185, %v2098
        %2191 = vst.msk [vmem:[#allocation2 + $0x14] sm:$0xf] %vm2185, %v2100
        %2192 = vst.msk [vmem:[#allocation2 + $0x18] sm:$0xf] %vm2185, %v2102
        %2193 = vst.msk [vmem:[#allocation2 + $0x1c] sm:$0xf] %vm2185, %v2104
        %2194 = vst.msk [vmem:[#allocation2 + $0x20] sm:$0xf] %vm2185, %v2106
        %2195 = vst.msk [vmem:[#allocation2 + $0x24] sm:$0xf] %vm2185, %v2108
        %2196 = vst.msk [vmem:[#allocation2 + $0x28] sm:$0xf] %vm2185, %v2110
        %2197 = vst.msk [vmem:[#allocation2 + $0x2c] sm:$0xf] %vm2185, %v2112
        %2198 = vst.msk [vmem:[#allocation2 + $0x30] sm:$0xf] %vm2185, %v2114
        %2199 = vst.msk [vmem:[#allocation2 + $0x34] sm:$0xf] %vm2185, %v2116
        %2200 = vst.msk [vmem:[#allocation2 + $0x38] sm:$0xf] %vm2185, %v2118
        %2201 = vst.msk [vmem:[#allocation2 + $0x3c] sm:$0xf] %vm2185, %v2120
        %2202 = vst.msk [vmem:[#allocation2 + $0x40] sm:$0xf] %vm2185, %v2122
        %2203 = vst.msk [vmem:[#allocation2 + $0x44] sm:$0xf] %vm2185, %v2124
        %2204 = vst.msk [vmem:[#allocation2 + $0x48] sm:$0xf] %vm2185, %v2126
        %2205 = vst.msk [vmem:[#allocation2 + $0x4c] sm:$0xf] %vm2185, %v2128
        %2206 = vst.msk [vmem:[#allocation2 + $0x50] sm:$0xf] %vm2185, %v2130
        %2207 = vst.msk [vmem:[#allocation2 + $0x54] sm:$0xf] %vm2185, %v2132
        %2208 = vst.msk [vmem:[#allocation2 + $0x58] sm:$0xf] %vm2185, %v2134
        %2209 = vst.msk [vmem:[#allocation2 + $0x5c] sm:$0xf] %vm2185, %v2136
        %2210 = vst.msk [vmem:[#allocation2 + $0x60] sm:$0xf] %vm2185, %v2138
        %2211 = vst.msk [vmem:[#allocation2 + $0x64] sm:$0xf] %vm2185, %v2140
        %2212 = vst.msk [vmem:[#allocation2 + $0x68] sm:$0xf] %vm2185, %v2142
        %2213 = vst.msk [vmem:[#allocation2 + $0x6c] sm:$0xf] %vm2185, %v2144
        %2214 = vst.msk [vmem:[#allocation2 + $0x70] sm:$0xf] %vm2185, %v2146
        %2215 = vst.msk [vmem:[#allocation2 + $0x74] sm:$0xf] %vm2185, %v2148
        %2216 = vst.msk [vmem:[#allocation2 + $0x78] sm:$0xf] %vm2185, %v2150
        %2217 = vst.msk [vmem:[#allocation2 + $0x7c] sm:$0xf] %vm2185, %v2152
        %v2218 = vld [vmem:[%s1703 + $0x2] sm:$0xff]
        %v2219 = vld [vmem:[%s1703 + $0xa] sm:$0xff]
        %v2220 = vld [vmem:[%s1703 + $0x1a] sm:$0xff]
        %v2221 = vld [vmem:[%s1703 + $0x22] sm:$0xff]
        %v2222 = vld [vmem:[%s1703 + $0x32] sm:$0xff]
        %v2223 = vld [vmem:[%s1703 + $0x3a] sm:$0xff]
        %v2224 = vld [vmem:[%s1703 + $0x4a] sm:$0xff]
        %v2225 = vld [vmem:[%s1703 + $0x52] sm:$0xff]
        %v2226 = vld [vmem:[%s1703 + $0x62] sm:$0xff]
        %v2227 = vld [vmem:[%s1703 + $0x6a] sm:$0xff]
        %v2228 = vld [vmem:[%s1703 + $0x7a] sm:$0xff]
        %v2229 = vld [vmem:[%s1703 + $0x82] sm:$0xff]
        %v2230 = vld [vmem:[%s1703 + $0x92] sm:$0xff]
        %v2231 = vld [vmem:[%s1703 + $0x9a] sm:$0xff]
        %v2232 = vld [vmem:[%s1703 + $0xaa] sm:$0xff]
        %v2233 = vld [vmem:[%s1703 + $0xb2] sm:$0xff]
        %v2234 = vld [vmem:[%s1703 + $0xc2] sm:$0xff]
        %v2235 = vld [vmem:[%s1703 + $0xca] sm:$0xff]
        %v2236 = vld [vmem:[%s1703 + $0xda] sm:$0xff]
        %v2237 = vld [vmem:[%s1703 + $0xe2] sm:$0xff]
        %v2238 = vld [vmem:[%s1703 + $0xf2] sm:$0xff]
        %v2239 = vld [vmem:[%s1703 + $0xfa] sm:$0xff]
        %v2240 = vld [vmem:[%s1703 + $0x10a] sm:$0xff]
        %v2241 = vld [vmem:[%s1703 + $0x112] sm:$0xff]
        %v2242 = vld [vmem:[%s1703 + $0x122] sm:$0xff]
        %v2243 = vld [vmem:[%s1703 + $0x12a] sm:$0xff]
        %v2244 = vld [vmem:[%s1703 + $0x13a] sm:$0xff]
        %v2245 = vld [vmem:[%s1703 + $0x142] sm:$0xff]
        %v2246 = vld [vmem:[%s1703 + $0x152] sm:$0xff]
        %v2247 = vld [vmem:[%s1703 + $0x15a] sm:$0xff]
        %v2248 = vld [vmem:[%s1703 + $0x16a] sm:$0xff]
        %v2249 = vld [vmem:[%s1703 + $0x172] sm:$0xff]
        %v2250 = vpack.c.bf16 %v2219, %v2218
        %v2251 = vpack.c.bf16 %v2221, %v2220
        %v2252 = vpack.c.bf16 %v2223, %v2222
        %v2253 = vpack.c.bf16 %v2225, %v2224
        %v2254 = vpack.c.bf16 %v2227, %v2226
        %v2255 = vpack.c.bf16 %v2229, %v2228
        %v2256 = vpack.c.bf16 %v2231, %v2230
        %v2257 = vpack.c.bf16 %v2233, %v2232
        %v2258 = vpack.c.bf16 %v2235, %v2234
        %v2259 = vpack.c.bf16 %v2237, %v2236
        %v2260 = vpack.c.bf16 %v2239, %v2238
        %v2261 = vpack.c.bf16 %v2241, %v2240
        %v2262 = vpack.c.bf16 %v2243, %v2242
        %v2263 = vpack.c.bf16 %v2245, %v2244
        %v2264 = vpack.c.bf16 %v2247, %v2246
        %v2265 = vpack.c.bf16 %v2249, %v2248
        %v2282 = vunpack.c.l.b16 %v2250
        %v2283 = vunpack.c.h.b16 %v2250
        %v2284 = vunpack.c.l.b16 %v2251
        %v2285 = vunpack.c.h.b16 %v2251
        %v2286 = vunpack.c.l.b16 %v2252
        %v2287 = vunpack.c.h.b16 %v2252
        %v2288 = vunpack.c.l.b16 %v2253
        %v2289 = vunpack.c.h.b16 %v2253
        %v2290 = vunpack.c.l.b16 %v2254
        %v2291 = vunpack.c.h.b16 %v2254
        %v2292 = vunpack.c.l.b16 %v2255
        %v2293 = vunpack.c.h.b16 %v2255
        %v2294 = vunpack.c.l.b16 %v2256
        %v2295 = vunpack.c.h.b16 %v2256
        %v2296 = vunpack.c.l.b16 %v2257
        %v2297 = vunpack.c.h.b16 %v2257
        %v2298 = vunpack.c.l.b16 %v2258
        %v2299 = vunpack.c.h.b16 %v2258
        %v2300 = vunpack.c.l.b16 %v2259
        %v2301 = vunpack.c.h.b16 %v2259
        %v2302 = vunpack.c.l.b16 %v2260
        %v2303 = vunpack.c.h.b16 %v2260
        %v2304 = vunpack.c.l.b16 %v2261
        %v2305 = vunpack.c.h.b16 %v2261
        %v2306 = vunpack.c.l.b16 %v2262
        %v2307 = vunpack.c.h.b16 %v2262
        %v2308 = vunpack.c.l.b16 %v2263
        %v2309 = vunpack.c.h.b16 %v2263
        %v2310 = vunpack.c.l.b16 %v2264
        %v2311 = vunpack.c.h.b16 %v2264
        %v2312 = vunpack.c.l.b16 %v2265
        %v2313 = vunpack.c.h.b16 %v2265
        %v2314 = vpack.c.b16 %v2282, %v2282
        %v2315 = vpack.c.b16 %v2283, %v2283
        %v2316 = vpack.c.b16 %v2284, %v2284
        %v2317 = vpack.c.b16 %v2285, %v2285
        %v2318 = vpack.c.b16 %v2286, %v2286
        %v2319 = vpack.c.b16 %v2287, %v2287
        %v2320 = vpack.c.b16 %v2288, %v2288
        %v2321 = vpack.c.b16 %v2289, %v2289
        %v2322 = vpack.c.b16 %v2290, %v2290
        %v2323 = vpack.c.b16 %v2291, %v2291
        %v2324 = vpack.c.b16 %v2292, %v2292
        %v2325 = vpack.c.b16 %v2293, %v2293
        %v2326 = vpack.c.b16 %v2294, %v2294
        %v2327 = vpack.c.b16 %v2295, %v2295
        %v2328 = vpack.c.b16 %v2296, %v2296
        %v2329 = vpack.c.b16 %v2297, %v2297
        %v2330 = vpack.c.b16 %v2298, %v2298
        %v2331 = vpack.c.b16 %v2299, %v2299
        %v2332 = vpack.c.b16 %v2300, %v2300
        %v2333 = vpack.c.b16 %v2301, %v2301
        %v2334 = vpack.c.b16 %v2302, %v2302
        %v2335 = vpack.c.b16 %v2303, %v2303
        %v2336 = vpack.c.b16 %v2304, %v2304
        %v2337 = vpack.c.b16 %v2305, %v2305
        %v2338 = vpack.c.b16 %v2306, %v2306
        %v2339 = vpack.c.b16 %v2307, %v2307
        %v2340 = vpack.c.b16 %v2308, %v2308
        %v2341 = vpack.c.b16 %v2309, %v2309
        %v2342 = vpack.c.b16 %v2310, %v2310
        %v2343 = vpack.c.b16 %v2311, %v2311
        %v2344 = vpack.c.b16 %v2312, %v2312
        %v2345 = vpack.c.b16 %v2313, %v2313
        %2346 = vrot.lane.b32.xlu0 %v2314, 32
        %v2347 = vpop.permute.xlu0 %2346
        %2348 = vrot.lane.b32.xlu0 %v2315, 32
        %v2349 = vpop.permute.xlu0 %2348
        %2350 = vrot.lane.b32.xlu0 %v2316, 32
        %v2351 = vpop.permute.xlu0 %2350
        %2352 = vrot.lane.b32.xlu0 %v2317, 32
        %v2353 = vpop.permute.xlu0 %2352
        %2354 = vrot.lane.b32.xlu0 %v2318, 32
        %v2355 = vpop.permute.xlu0 %2354
        %2356 = vrot.lane.b32.xlu0 %v2319, 32
        %v2357 = vpop.permute.xlu0 %2356
        %2358 = vrot.lane.b32.xlu0 %v2320, 32
        %v2359 = vpop.permute.xlu0 %2358
        %2360 = vrot.lane.b32.xlu0 %v2321, 32
        %v2361 = vpop.permute.xlu0 %2360
        %2362 = vrot.lane.b32.xlu0 %v2322, 32
        %v2363 = vpop.permute.xlu0 %2362
        %2364 = vrot.lane.b32.xlu0 %v2323, 32
        %v2365 = vpop.permute.xlu0 %2364
        %2366 = vrot.lane.b32.xlu0 %v2324, 32
        %v2367 = vpop.permute.xlu0 %2366
        %2368 = vrot.lane.b32.xlu0 %v2325, 32
        %v2369 = vpop.permute.xlu0 %2368
        %2370 = vrot.lane.b32.xlu0 %v2326, 32
        %v2371 = vpop.permute.xlu0 %2370
        %2372 = vrot.lane.b32.xlu0 %v2327, 32
        %v2373 = vpop.permute.xlu0 %2372
        %2374 = vrot.lane.b32.xlu0 %v2328, 32
        %v2375 = vpop.permute.xlu0 %2374
        %2376 = vrot.lane.b32.xlu0 %v2329, 32
        %v2377 = vpop.permute.xlu0 %2376
        %2378 = vrot.lane.b32.xlu0 %v2330, 32
        %v2379 = vpop.permute.xlu0 %2378
        %2380 = vrot.lane.b32.xlu0 %v2331, 32
        %v2381 = vpop.permute.xlu0 %2380
        %2382 = vrot.lane.b32.xlu0 %v2332, 32
        %v2383 = vpop.permute.xlu0 %2382
        %2384 = vrot.lane.b32.xlu0 %v2333, 32
        %v2385 = vpop.permute.xlu0 %2384
        %2386 = vrot.lane.b32.xlu0 %v2334, 32
        %v2387 = vpop.permute.xlu0 %2386
        %2388 = vrot.lane.b32.xlu0 %v2335, 32
        %v2389 = vpop.permute.xlu0 %2388
        %2390 = vrot.lane.b32.xlu0 %v2336, 32
        %v2391 = vpop.permute.xlu0 %2390
        %2392 = vrot.lane.b32.xlu0 %v2337, 32
        %v2393 = vpop.permute.xlu0 %2392
        %2394 = vrot.lane.b32.xlu0 %v2338, 32
        %v2395 = vpop.permute.xlu0 %2394
        %2396 = vrot.lane.b32.xlu0 %v2339, 32
        %v2397 = vpop.permute.xlu0 %2396
        %2398 = vrot.lane.b32.xlu0 %v2340, 32
        %v2399 = vpop.permute.xlu0 %2398
        %2400 = vrot.lane.b32.xlu0 %v2341, 32
        %v2401 = vpop.permute.xlu0 %2400
        %2402 = vrot.lane.b32.xlu0 %v2342, 32
        %v2403 = vpop.permute.xlu0 %2402
        %2404 = vrot.lane.b32.xlu0 %v2343, 32
        %v2405 = vpop.permute.xlu0 %2404
        %2406 = vrot.lane.b32.xlu0 %v2344, 32
        %v2407 = vpop.permute.xlu0 %2406
        %2408 = vrot.lane.b32.xlu0 %v2345, 32
        %v2409 = vpop.permute.xlu0 %2408
        %vm2442 = vcmask 290048
        %2443 = vst.msk [vmem:[#allocation2] sm:$0xf] %vm2442, %v2347
        %2444 = vst.msk [vmem:[#allocation2 + $0x4] sm:$0xf] %vm2442, %v2349
        %2445 = vst.msk [vmem:[#allocation2 + $0x8] sm:$0xf] %vm2442, %v2351
        %2446 = vst.msk [vmem:[#allocation2 + $0xc] sm:$0xf] %vm2442, %v2353
        %2447 = vst.msk [vmem:[#allocation2 + $0x10] sm:$0xf] %vm2442, %v2355
        %2448 = vst.msk [vmem:[#allocation2 + $0x14] sm:$0xf] %vm2442, %v2357
        %2449 = vst.msk [vmem:[#allocation2 + $0x18] sm:$0xf] %vm2442, %v2359
        %2450 = vst.msk [vmem:[#allocation2 + $0x1c] sm:$0xf] %vm2442, %v2361
        %2451 = vst.msk [vmem:[#allocation2 + $0x20] sm:$0xf] %vm2442, %v2363
        %2452 = vst.msk [vmem:[#allocation2 + $0x24] sm:$0xf] %vm2442, %v2365
        %2453 = vst.msk [vmem:[#allocation2 + $0x28] sm:$0xf] %vm2442, %v2367
        %2454 = vst.msk [vmem:[#allocation2 + $0x2c] sm:$0xf] %vm2442, %v2369
        %2455 = vst.msk [vmem:[#allocation2 + $0x30] sm:$0xf] %vm2442, %v2371
        %2456 = vst.msk [vmem:[#allocation2 + $0x34] sm:$0xf] %vm2442, %v2373
        %2457 = vst.msk [vmem:[#allocation2 + $0x38] sm:$0xf] %vm2442, %v2375
        %2458 = vst.msk [vmem:[#allocation2 + $0x3c] sm:$0xf] %vm2442, %v2377
        %2459 = vst.msk [vmem:[#allocation2 + $0x40] sm:$0xf] %vm2442, %v2379
        %2460 = vst.msk [vmem:[#allocation2 + $0x44] sm:$0xf] %vm2442, %v2381
        %2461 = vst.msk [vmem:[#allocation2 + $0x48] sm:$0xf] %vm2442, %v2383
        %2462 = vst.msk [vmem:[#allocation2 + $0x4c] sm:$0xf] %vm2442, %v2385
        %2463 = vst.msk [vmem:[#allocation2 + $0x50] sm:$0xf] %vm2442, %v2387
        %2464 = vst.msk [vmem:[#allocation2 + $0x54] sm:$0xf] %vm2442, %v2389
        %2465 = vst.msk [vmem:[#allocation2 + $0x58] sm:$0xf] %vm2442, %v2391
        %2466 = vst.msk [vmem:[#allocation2 + $0x5c] sm:$0xf] %vm2442, %v2393
        %2467 = vst.msk [vmem:[#allocation2 + $0x60] sm:$0xf] %vm2442, %v2395
        %2468 = vst.msk [vmem:[#allocation2 + $0x64] sm:$0xf] %vm2442, %v2397
        %2469 = vst.msk [vmem:[#allocation2 + $0x68] sm:$0xf] %vm2442, %v2399
        %2470 = vst.msk [vmem:[#allocation2 + $0x6c] sm:$0xf] %vm2442, %v2401
        %2471 = vst.msk [vmem:[#allocation2 + $0x70] sm:$0xf] %vm2442, %v2403
        %2472 = vst.msk [vmem:[#allocation2 + $0x74] sm:$0xf] %vm2442, %v2405
        %2473 = vst.msk [vmem:[#allocation2 + $0x78] sm:$0xf] %vm2442, %v2407
        %2474 = vst.msk [vmem:[#allocation2 + $0x7c] sm:$0xf] %vm2442, %v2409
        %v2475 = vld [vmem:[#allocation2] sm:$0xf]
        %v2476 = vld [vmem:[#allocation2 + $0x4] sm:$0xf]
        %v2477 = vld [vmem:[#allocation2 + $0x8] sm:$0xf]
        %v2478 = vld [vmem:[#allocation2 + $0xc] sm:$0xf]
        %v2479 = vld [vmem:[#allocation2 + $0x10] sm:$0xf]
        %v2480 = vld [vmem:[#allocation2 + $0x14] sm:$0xf]
        %v2481 = vld [vmem:[#allocation2 + $0x18] sm:$0xf]
        %v2482 = vld [vmem:[#allocation2 + $0x1c] sm:$0xf]
        %v2483 = vld [vmem:[#allocation2 + $0x20] sm:$0xf]
        %v2484 = vld [vmem:[#allocation2 + $0x24] sm:$0xf]
        %v2485 = vld [vmem:[#allocation2 + $0x28] sm:$0xf]
        %v2486 = vld [vmem:[#allocation2 + $0x2c] sm:$0xf]
        %v2487 = vld [vmem:[#allocation2 + $0x30] sm:$0xf]
        %v2488 = vld [vmem:[#allocation2 + $0x34] sm:$0xf]
        %v2489 = vld [vmem:[#allocation2 + $0x38] sm:$0xf]
        %v2490 = vld [vmem:[#allocation2 + $0x3c] sm:$0xf]
        %v2491 = vld [vmem:[#allocation2 + $0x40] sm:$0xf]
        %v2492 = vld [vmem:[#allocation2 + $0x44] sm:$0xf]
        %v2493 = vld [vmem:[#allocation2 + $0x48] sm:$0xf]
        %v2494 = vld [vmem:[#allocation2 + $0x4c] sm:$0xf]
        %v2495 = vld [vmem:[#allocation2 + $0x50] sm:$0xf]
        %v2496 = vld [vmem:[#allocation2 + $0x54] sm:$0xf]
        %v2497 = vld [vmem:[#allocation2 + $0x58] sm:$0xf]
        %v2498 = vld [vmem:[#allocation2 + $0x5c] sm:$0xf]
        %v2499 = vld [vmem:[#allocation2 + $0x60] sm:$0xf]
        %v2500 = vld [vmem:[#allocation2 + $0x64] sm:$0xf]
        %v2501 = vld [vmem:[#allocation2 + $0x68] sm:$0xf]
        %v2502 = vld [vmem:[#allocation2 + $0x6c] sm:$0xf]
        %v2503 = vld [vmem:[#allocation2 + $0x70] sm:$0xf]
        %v2504 = vld [vmem:[#allocation2 + $0x74] sm:$0xf]
        %v2505 = vld [vmem:[#allocation2 + $0x78] sm:$0xf]
        %v2506 = vld [vmem:[#allocation2 + $0x7c] sm:$0xf]
        %v2507 = vld [vmem:[%s1] sm:$0xf]
        %v2508 = vld [vmem:[%s1 + $0x4] sm:$0xf]
        %v2509 = vld [vmem:[%s1 + $0x8] sm:$0xf]
        %v2510 = vld [vmem:[%s1 + $0xc] sm:$0xf]
        %v2511 = vld [vmem:[%s1 + $0x10] sm:$0x3]
        %v2512 = vld [vmem:[%s2] sm:$0x1]
        %v2514 = vlaneseq
        %v2515 = vshrl.u32 %v2514, 7
        %v2516 = vsub.s32 0, %v2515
        %v2517 = vrot.slane %v2512, %v2516
        %v2551 = vunpack.c.l.b16 %v2475
        %v2552 = vunpack.c.l.b16 %v2476
        %v2553 = vunpack.c.l.b16 %v2477
        %v2554 = vunpack.c.l.b16 %v2478
        %v2555 = vunpack.c.l.b16 %v2479
        %v2556 = vunpack.c.l.b16 %v2480
        %v2557 = vunpack.c.l.b16 %v2481
        %v2558 = vunpack.c.l.b16 %v2482
        %v2559 = vunpack.c.l.b16 %v2483
        %v2560 = vunpack.c.l.b16 %v2484
        %v2561 = vunpack.c.l.b16 %v2485
        %v2562 = vunpack.c.l.b16 %v2486
        %v2563 = vunpack.c.l.b16 %v2487
        %v2564 = vunpack.c.l.b16 %v2488
        %v2565 = vunpack.c.l.b16 %v2489
        %v2566 = vunpack.c.l.b16 %v2490
        %v2567 = vunpack.c.l.b16 %v2491
        %v2568 = vunpack.c.l.b16 %v2492
        %v2569 = vunpack.c.l.b16 %v2493
        %v2570 = vunpack.c.l.b16 %v2494
        %v2571 = vunpack.c.l.b16 %v2495
        %v2572 = vunpack.c.l.b16 %v2496
        %v2573 = vunpack.c.l.b16 %v2497
        %v2574 = vunpack.c.l.b16 %v2498
        %v2575 = vunpack.c.l.b16 %v2499
        %v2576 = vunpack.c.l.b16 %v2500
        %v2577 = vunpack.c.l.b16 %v2501
        %v2578 = vunpack.c.l.b16 %v2502
        %v2579 = vunpack.c.l.b16 %v2503
        %v2580 = vunpack.c.l.b16 %v2504
        %v2581 = vunpack.c.l.b16 %v2505
        %v2582 = vunpack.c.l.b16 %v2506
        %v2583 = vpack.c.b16 %v2552, %v2551
        %v2584 = vpack.c.b16 %v2554, %v2553
        %v2585 = vpack.c.b16 %v2556, %v2555
        %v2586 = vpack.c.b16 %v2558, %v2557
        %v2587 = vpack.c.b16 %v2560, %v2559
        %v2588 = vpack.c.b16 %v2562, %v2561
        %v2589 = vpack.c.b16 %v2564, %v2563
        %v2590 = vpack.c.b16 %v2566, %v2565
        %v2591 = vpack.c.b16 %v2568, %v2567
        %v2592 = vpack.c.b16 %v2570, %v2569
        %v2593 = vpack.c.b16 %v2572, %v2571
        %v2594 = vpack.c.b16 %v2574, %v2573
        %v2595 = vpack.c.b16 %v2576, %v2575
        %v2596 = vpack.c.b16 %v2578, %v2577
        %v2597 = vpack.c.b16 %v2580, %v2579
        %v2598 = vpack.c.b16 %v2582, %v2581
        %v2604 = vunpack.c.l.b16 %v2507
        %v2605 = vunpack.c.l.b16 %v2508
        %v2606 = vunpack.c.l.b16 %v2509
        %v2607 = vunpack.c.l.b16 %v2510
        %v2608 = vunpack.c.l.b16 %v2511
        %v2609 = vpack.c.b16 %v2605, %v2604
        %v2610 = vpack.c.b16 %v2607, %v2606
        %v2611 = vpack.c.b16 %v2608, %v2608
        %vm2614 = vcmask 293888
        %v2616 = vsel %vm2614, %v2583, 0
        %v2619 = vsel %vm2614, %v2584, 0
        %v2622 = vsel %vm2614, %v2585, 0
        %v2625 = vsel %vm2614, %v2586, 0
        %v2628 = vsel %vm2614, %v2587, 0
        %v2631 = vsel %vm2614, %v2588, 0
        %v2634 = vsel %vm2614, %v2589, 0
        %v2637 = vsel %vm2614, %v2590, 0
        %v2640 = vsel %vm2614, %v2591, 0
        %v2643 = vsel %vm2614, %v2592, 0
        %v2646 = vsel %vm2614, %v2593, 0
        %v2649 = vsel %vm2614, %v2594, 0
        %v2652 = vsel %vm2614, %v2595, 0
        %v2655 = vsel %vm2614, %v2596, 0
        %v2658 = vsel %vm2614, %v2597, 0
        %v2661 = vsel %vm2614, %v2598, 0
        %vm2663 = vcmask 1041408
        %v2665 = vsel %vm2663, %v2611, 0
        %2667 = vmatprep.subr.bf16.mxu0 0
        %2668 = vmatpush1.bf16.msra.mxu0 0
        %2669 = vmatprep.subr.bf16.mxu0 0
        %2670 = vmatpush1.bf16.msra.mxu0 0
        %2671 = vmatprep.subr.bf16.mxu0 0
        %2672 = vmatpush1.bf16.msra.mxu0 0
        %2673 = vmatprep.subr.bf16.mxu0 0
        %2674 = vmatpush1.bf16.msra.mxu0 0
        %2675 = vmatprep.subr.bf16.mxu0 0
        %2676 = vmatpush1.bf16.msra.mxu0 0
        %2677 = vmatprep.subr.bf16.mxu0 0
        %2678 = vmatpush1.bf16.msra.mxu0 %v2665
        %2679 = vmatprep.subr.bf16.mxu0 0
        %2680 = vmatpush1.bf16.msra.mxu0 %v2610
        %2681 = vmatprep.subr.bf16.mxu0 0
        %2682 = vmatpush1.bf16.msra.mxu0 %v2609
        %2683 = vmatprep.subr.bf16.mxu0 0
        %2684 = vmatpush2.bf16.msra.mxu0 0
        %2685 = vmatprep.subr.bf16.mxu0 0
        %2686 = vmatpush2.bf16.msra.mxu0 0
        %2687 = vmatprep.subr.bf16.mxu0 0
        %2688 = vmatpush2.bf16.msra.mxu0 0
        %2689 = vmatprep.subr.bf16.mxu0 0
        %2690 = vmatpush2.bf16.msra.mxu0 0
        %2691 = vmatprep.subr.bf16.mxu0 0
        %2692 = vmatpush2.bf16.msra.mxu0 0
        %2693 = vmatprep.subr.bf16.mxu0 0
        %2694 = vmatpush2.bf16.msra.mxu0 0
        %2695 = vmatprep.subr.bf16.mxu0 0
        %2696 = vmatpush2.bf16.msra.mxu0 0
        %2697 = vmatprep.subr.bf16.mxu0 0
        %2698 = vmatpush2.bf16.msra.mxu0 0
        %2699 = vmatprep.mubr.bf16.mxu0 0
        %2700 = vmatmul.mubr.bf16.gmra.mxu0 %v2616
        %v2701 = vpop.f32.mrf.mxu0
        %v2702 = vadd.f32 %v2517, %v2701
        %v2703 = vpop.f32.mrf.mxu0
        %v2704 = vpop.f32.mrf.mxu0
        %v2705 = vadd.f32 %v2517, %v2704
        %v2706 = vpop.f32.mrf.mxu0
        %2707 = vmatprep.mubr.bf16.mxu0 0
        %2708 = vmatmul.mubr.bf16.gmra.mxu0 %v2619
        %v2709 = vpop.f32.mrf.mxu0
        %v2710 = vadd.f32 %v2517, %v2709
        %v2711 = vpop.f32.mrf.mxu0
        %v2712 = vpop.f32.mrf.mxu0
        %v2713 = vadd.f32 %v2517, %v2712
        %v2714 = vpop.f32.mrf.mxu0
        %2715 = vmatprep.mubr.bf16.mxu0 0
        %2716 = vmatmul.mubr.bf16.gmra.mxu0 %v2622
        %v2717 = vpop.f32.mrf.mxu0
        %v2718 = vadd.f32 %v2517, %v2717
        %v2719 = vpop.f32.mrf.mxu0
        %v2720 = vpop.f32.mrf.mxu0
        %v2721 = vadd.f32 %v2517, %v2720
        %v2722 = vpop.f32.mrf.mxu0
        %2723 = vmatprep.mubr.bf16.mxu0 0
        %2724 = vmatmul.mubr.bf16.gmra.mxu0 %v2625
        %v2725 = vpop.f32.mrf.mxu0
        %v2726 = vadd.f32 %v2517, %v2725
        %v2727 = vpop.f32.mrf.mxu0
        %v2728 = vpop.f32.mrf.mxu0
        %v2729 = vadd.f32 %v2517, %v2728
        %v2730 = vpop.f32.mrf.mxu0
        %2731 = vmatprep.mubr.bf16.mxu0 0
        %2732 = vmatmul.mubr.bf16.gmra.mxu0 %v2628
        %v2733 = vpop.f32.mrf.mxu0
        %v2734 = vadd.f32 %v2517, %v2733
        %v2735 = vpop.f32.mrf.mxu0
        %v2736 = vpop.f32.mrf.mxu0
        %v2737 = vadd.f32 %v2517, %v2736
        %v2738 = vpop.f32.mrf.mxu0
        %2739 = vmatprep.mubr.bf16.mxu0 0
        %2740 = vmatmul.mubr.bf16.gmra.mxu0 %v2631
        %v2741 = vpop.f32.mrf.mxu0
        %v2742 = vadd.f32 %v2517, %v2741
        %v2743 = vpop.f32.mrf.mxu0
        %v2744 = vpop.f32.mrf.mxu0
        %v2745 = vadd.f32 %v2517, %v2744
        %v2746 = vpop.f32.mrf.mxu0
        %2747 = vmatprep.mubr.bf16.mxu0 0
        %2748 = vmatmul.mubr.bf16.gmra.mxu0 %v2634
        %v2749 = vpop.f32.mrf.mxu0
        %v2750 = vadd.f32 %v2517, %v2749
        %v2751 = vpop.f32.mrf.mxu0
        %v2752 = vpop.f32.mrf.mxu0
        %v2753 = vadd.f32 %v2517, %v2752
        %v2754 = vpop.f32.mrf.mxu0
        %2755 = vmatprep.mubr.bf16.mxu0 0
        %2756 = vmatmul.mubr.bf16.gmra.mxu0 %v2637
        %v2757 = vpop.f32.mrf.mxu0
        %v2758 = vadd.f32 %v2517, %v2757
        %v2759 = vpop.f32.mrf.mxu0
        %v2760 = vpop.f32.mrf.mxu0
        %v2761 = vadd.f32 %v2517, %v2760
        %v2762 = vpop.f32.mrf.mxu0
        %2763 = vmatprep.mubr.bf16.mxu0 0
        %2764 = vmatmul.mubr.bf16.gmra.mxu0 %v2640
        %v2765 = vpop.f32.mrf.mxu0
        %v2766 = vadd.f32 %v2517, %v2765
        %v2767 = vpop.f32.mrf.mxu0
        %v2768 = vpop.f32.mrf.mxu0
        %v2769 = vadd.f32 %v2517, %v2768
        %v2770 = vpop.f32.mrf.mxu0
        %2771 = vmatprep.mubr.bf16.mxu0 0
        %2772 = vmatmul.mubr.bf16.gmra.mxu0 %v2643
        %v2773 = vpop.f32.mrf.mxu0
        %v2774 = vadd.f32 %v2517, %v2773
        %v2775 = vpop.f32.mrf.mxu0
        %v2776 = vpop.f32.mrf.mxu0
        %v2777 = vadd.f32 %v2517, %v2776
        %v2778 = vpop.f32.mrf.mxu0
        %2779 = vmatprep.mubr.bf16.mxu0 0
        %2780 = vmatmul.mubr.bf16.gmra.mxu0 %v2646
        %v2781 = vpop.f32.mrf.mxu0
        %v2782 = vadd.f32 %v2517, %v2781
        %v2783 = vpop.f32.mrf.mxu0
        %v2784 = vpop.f32.mrf.mxu0
        %v2785 = vadd.f32 %v2517, %v2784
        %v2786 = vpop.f32.mrf.mxu0
        %2787 = vmatprep.mubr.bf16.mxu0 0
        %2788 = vmatmul.mubr.bf16.gmra.mxu0 %v2649
        %v2789 = vpop.f32.mrf.mxu0
        %v2790 = vadd.f32 %v2517, %v2789
        %v2791 = vpop.f32.mrf.mxu0
        %v2792 = vpop.f32.mrf.mxu0
        %v2793 = vadd.f32 %v2517, %v2792
        %v2794 = vpop.f32.mrf.mxu0
        %2795 = vmatprep.mubr.bf16.mxu0 0
        %2796 = vmatmul.mubr.bf16.gmra.mxu0 %v2652
        %v2797 = vpop.f32.mrf.mxu0
        %v2798 = vadd.f32 %v2517, %v2797
        %v2799 = vpop.f32.mrf.mxu0
        %v2800 = vpop.f32.mrf.mxu0
        %v2801 = vadd.f32 %v2517, %v2800
        %v2802 = vpop.f32.mrf.mxu0
        %2803 = vmatprep.mubr.bf16.mxu0 0
        %2804 = vmatmul.mubr.bf16.gmra.mxu0 %v2655
        %v2805 = vpop.f32.mrf.mxu0
        %v2806 = vadd.f32 %v2517, %v2805
        %v2807 = vpop.f32.mrf.mxu0
        %v2808 = vpop.f32.mrf.mxu0
        %v2809 = vadd.f32 %v2517, %v2808
        %v2810 = vpop.f32.mrf.mxu0
        %2811 = vmatprep.mubr.bf16.mxu0 0
        %2812 = vmatmul.mubr.bf16.gmra.mxu0 %v2658
        %v2813 = vpop.f32.mrf.mxu0
        %v2814 = vadd.f32 %v2517, %v2813
        %v2815 = vpop.f32.mrf.mxu0
        %v2816 = vpop.f32.mrf.mxu0
        %v2817 = vadd.f32 %v2517, %v2816
        %v2818 = vpop.f32.mrf.mxu0
        %2819 = vmatprep.mubr.bf16.mxu0 0
        %2820 = vmatmul.mubr.bf16.gmra.mxu0 %v2661
        %v2821 = vpop.f32.mrf.mxu0
        %v2822 = vadd.f32 %v2517, %v2821
        %v2823 = vpop.f32.mrf.mxu0
        %v2824 = vpop.f32.mrf.mxu0
        %v2825 = vadd.f32 %v2517, %v2824
        %v2826 = vpop.f32.mrf.mxu0
        %2827 = vdwg.mxu0
        %v2828 = vmax.f32 %v2702, 0.0
        %v2829 = vmax.f32 %v2705, 0.0
        %v2830 = vmax.f32 %v2710, 0.0
        %v2831 = vmax.f32 %v2713, 0.0
        %v2832 = vmax.f32 %v2718, 0.0
        %v2833 = vmax.f32 %v2721, 0.0
        %v2834 = vmax.f32 %v2726, 0.0
        %v2835 = vmax.f32 %v2729, 0.0
        %v2836 = vmax.f32 %v2734, 0.0
        %v2837 = vmax.f32 %v2737, 0.0
        %v2838 = vmax.f32 %v2742, 0.0
        %v2839 = vmax.f32 %v2745, 0.0
        %v2840 = vmax.f32 %v2750, 0.0
        %v2841 = vmax.f32 %v2753, 0.0
        %v2842 = vmax.f32 %v2758, 0.0
        %v2843 = vmax.f32 %v2761, 0.0
        %v2844 = vmax.f32 %v2766, 0.0
        %v2845 = vmax.f32 %v2769, 0.0
        %v2846 = vmax.f32 %v2774, 0.0
        %v2847 = vmax.f32 %v2777, 0.0
        %v2848 = vmax.f32 %v2782, 0.0
        %v2849 = vmax.f32 %v2785, 0.0
        %v2850 = vmax.f32 %v2790, 0.0
        %v2851 = vmax.f32 %v2793, 0.0
        %v2852 = vmax.f32 %v2798, 0.0
        %v2853 = vmax.f32 %v2801, 0.0
        %v2854 = vmax.f32 %v2806, 0.0
        %v2855 = vmax.f32 %v2809, 0.0
        %v2856 = vmax.f32 %v2814, 0.0
        %v2857 = vmax.f32 %v2817, 0.0
        %v2858 = vmax.f32 %v2822, 0.0
        %v2859 = vmax.f32 %v2825, 0.0
        %vm2860 = vcmask 64512
        %2861 = vst.msk [vmem:[#allocation3] sm:$0xff] %vm2860, %v2828
        %2862 = vst.msk [vmem:[#allocation3 + $0x8] sm:$0xff] %vm2860, %v2829
        %2863 = vst.msk [vmem:[#allocation3 + $0x10] sm:$0xff] %vm2860, %v2830
        %2864 = vst.msk [vmem:[#allocation3 + $0x18] sm:$0xff] %vm2860, %v2831
        %2865 = vst.msk [vmem:[#allocation3 + $0x20] sm:$0xff] %vm2860, %v2832
        %2866 = vst.msk [vmem:[#allocation3 + $0x28] sm:$0xff] %vm2860, %v2833
        %2867 = vst.msk [vmem:[#allocation3 + $0x30] sm:$0xff] %vm2860, %v2834
        %2868 = vst.msk [vmem:[#allocation3 + $0x38] sm:$0xff] %vm2860, %v2835
        %2869 = vst.msk [vmem:[#allocation3 + $0x40] sm:$0xff] %vm2860, %v2836
        %2870 = vst.msk [vmem:[#allocation3 + $0x48] sm:$0xff] %vm2860, %v2837
        %2871 = vst.msk [vmem:[#allocation3 + $0x50] sm:$0xff] %vm2860, %v2838
        %2872 = vst.msk [vmem:[#allocation3 + $0x58] sm:$0xff] %vm2860, %v2839
        %2873 = vst.msk [vmem:[#allocation3 + $0x60] sm:$0xff] %vm2860, %v2840
        %2874 = vst.msk [vmem:[#allocation3 + $0x68] sm:$0xff] %vm2860, %v2841
        %2875 = vst.msk [vmem:[#allocation3 + $0x70] sm:$0xff] %vm2860, %v2842
        %2876 = vst.msk [vmem:[#allocation3 + $0x78] sm:$0xff] %vm2860, %v2843
        %2877 = vst.msk [vmem:[#allocation3 + $0x80] sm:$0xff] %vm2860, %v2844
        %2878 = vst.msk [vmem:[#allocation3 + $0x88] sm:$0xff] %vm2860, %v2845
        %2879 = vst.msk [vmem:[#allocation3 + $0x90] sm:$0xff] %vm2860, %v2846
        %2880 = vst.msk [vmem:[#allocation3 + $0x98] sm:$0xff] %vm2860, %v2847
        %2881 = vst.msk [vmem:[#allocation3 + $0xa0] sm:$0xff] %vm2860, %v2848
        %2882 = vst.msk [vmem:[#allocation3 + $0xa8] sm:$0xff] %vm2860, %v2849
        %2883 = vst.msk [vmem:[#allocation3 + $0xb0] sm:$0xff] %vm2860, %v2850
        %2884 = vst.msk [vmem:[#allocation3 + $0xb8] sm:$0xff] %vm2860, %v2851
        %2885 = vst.msk [vmem:[#allocation3 + $0xc0] sm:$0xff] %vm2860, %v2852
        %2886 = vst.msk [vmem:[#allocation3 + $0xc8] sm:$0xff] %vm2860, %v2853
        %2887 = vst.msk [vmem:[#allocation3 + $0xd0] sm:$0xff] %vm2860, %v2854
        %2888 = vst.msk [vmem:[#allocation3 + $0xd8] sm:$0xff] %vm2860, %v2855
        %2889 = vst.msk [vmem:[#allocation3 + $0xe0] sm:$0xff] %vm2860, %v2856
        %2890 = vst.msk [vmem:[#allocation3 + $0xe8] sm:$0xff] %vm2860, %v2857
        %2891 = vst.msk [vmem:[#allocation3 + $0xf0] sm:$0xff] %vm2860, %v2858
        %2892 = vst.msk [vmem:[#allocation3 + $0xf8] sm:$0xff] %vm2860, %v2859
        %v2893 = vld [vmem:[#allocation3] ss:$2 sm:$0xff]
        %s2894 = scalar_lea.vmem [#allocation3], 32
        %v2895 = vld [vmem:[%s2894] ss:$2 sm:$0xff]
        %s2896 = scalar_lea.vmem [#allocation3], 64
        %v2897 = vld [vmem:[%s2896] ss:$2 sm:$0xff]
        %s2898 = scalar_lea.vmem [#allocation3], 96
        %v2899 = vld [vmem:[%s2898] ss:$2 sm:$0xff]
        %s2900 = scalar_lea.vmem [#allocation3], 128
        %v2901 = vld [vmem:[%s2900] ss:$2 sm:$0xff]
        %s2902 = scalar_lea.vmem [#allocation3], 160
        %v2903 = vld [vmem:[%s2902] ss:$2 sm:$0xff]
        %s2904 = scalar_lea.vmem [#allocation3], 192
        %v2905 = vld [vmem:[%s2904] ss:$2 sm:$0xff]
        %s2906 = scalar_lea.vmem [#allocation3], 224
        %v2907 = vld [vmem:[%s2906] ss:$2 sm:$0xff]
        %s2908 = scalar_lea.vmem [#allocation3], 1
        %v2909 = vld [vmem:[%s2908] ss:$2 sm:$0xff]
        %s2910 = scalar_lea.vmem [#allocation3], 33
        %v2911 = vld [vmem:[%s2910] ss:$2 sm:$0xff]
        %s2912 = scalar_lea.vmem [#allocation3], 65
        %v2913 = vld [vmem:[%s2912] ss:$2 sm:$0xff]
        %s2914 = scalar_lea.vmem [#allocation3], 97
        %v2915 = vld [vmem:[%s2914] ss:$2 sm:$0xff]
        %s2916 = scalar_lea.vmem [#allocation3], 129
        %v2917 = vld [vmem:[%s2916] ss:$2 sm:$0xff]
        %s2918 = scalar_lea.vmem [#allocation3], 161
        %v2919 = vld [vmem:[%s2918] ss:$2 sm:$0xff]
        %s2920 = scalar_lea.vmem [#allocation3], 193
        %v2921 = vld [vmem:[%s2920] ss:$2 sm:$0xff]
        %s2922 = scalar_lea.vmem [#allocation3], 225
        %v2923 = vld [vmem:[%s2922] ss:$2 sm:$0xff]
        %s2924 = scalar_lea.vmem [#allocation3], 16
        %v2925 = vld [vmem:[%s2924] ss:$2 sm:$0xff]
        %s2926 = scalar_lea.vmem %s2924, 32 [#allocation3]
        %v2927 = vld [vmem:[%s2926] ss:$2 sm:$0xff]
        %s2928 = scalar_lea.vmem %s2924, 64 [#allocation3]
        %v2929 = vld [vmem:[%s2928] ss:$2 sm:$0xff]
        %s2930 = scalar_lea.vmem %s2924, 96 [#allocation3]
        %v2931 = vld [vmem:[%s2930] ss:$2 sm:$0xff]
        %s2932 = scalar_lea.vmem %s2924, 128 [#allocation3]
        %v2933 = vld [vmem:[%s2932] ss:$2 sm:$0xff]
        %s2934 = scalar_lea.vmem %s2924, 160 [#allocation3]
        %v2935 = vld [vmem:[%s2934] ss:$2 sm:$0xff]
        %s2936 = scalar_lea.vmem %s2924, 192 [#allocation3]
        %v2937 = vld [vmem:[%s2936] ss:$2 sm:$0xff]
        %s2938 = scalar_lea.vmem %s2924, 224 [#allocation3]
        %v2939 = vld [vmem:[%s2938] ss:$2 sm:$0xff]
        %s2940 = scalar_lea.vmem %s2924, 1 [#allocation3]
        %v2941 = vld [vmem:[%s2940] ss:$2 sm:$0xff]
        %s2942 = scalar_lea.vmem %s2924, 33 [#allocation3]
        %v2943 = vld [vmem:[%s2942] ss:$2 sm:$0xff]
        %s2944 = scalar_lea.vmem %s2924, 65 [#allocation3]
        %v2945 = vld [vmem:[%s2944] ss:$2 sm:$0xff]
        %s2946 = scalar_lea.vmem %s2924, 97 [#allocation3]
        %v2947 = vld [vmem:[%s2946] ss:$2 sm:$0xff]
        %s2948 = scalar_lea.vmem %s2924, 129 [#allocation3]
        %v2949 = vld [vmem:[%s2948] ss:$2 sm:$0xff]
        %s2950 = scalar_lea.vmem %s2924, 161 [#allocation3]
        %v2951 = vld [vmem:[%s2950] ss:$2 sm:$0xff]
        %s2952 = scalar_lea.vmem %s2924, 193 [#allocation3]
        %v2953 = vld [vmem:[%s2952] ss:$2 sm:$0xff]
        %s2954 = scalar_lea.vmem %s2924, 225 [#allocation3]
        %v2955 = vld [vmem:[%s2954] ss:$2 sm:$0xff]
        %v2956 = vmax.f32 %v2893, %v2909
        %v2957 = vmax.f32 %v2895, %v2911
        %v2958 = vmax.f32 %v2897, %v2913
        %v2959 = vmax.f32 %v2899, %v2915
        %v2960 = vmax.f32 %v2901, %v2917
        %v2961 = vmax.f32 %v2903, %v2919
        %v2962 = vmax.f32 %v2905, %v2921
        %v2963 = vmax.f32 %v2907, %v2923
        %v2964 = vmax.f32 %v2925, %v2941
        %v2965 = vmax.f32 %v2927, %v2943
        %v2966 = vmax.f32 %v2929, %v2945
        %v2967 = vmax.f32 %v2931, %v2947
        %v2968 = vmax.f32 %v2933, %v2949
        %v2969 = vmax.f32 %v2935, %v2951
        %v2970 = vmax.f32 %v2937, %v2953
        %v2971 = vmax.f32 %v2939, %v2955
        %v2972 = vmax.f32 %v2956, %v2964
        %v2973 = vmax.f32 %v2957, %v2965
        %v2974 = vmax.f32 %v2958, %v2966
        %v2975 = vmax.f32 %v2959, %v2967
        %v2976 = vmax.f32 %v2960, %v2968
        %v2977 = vmax.f32 %v2961, %v2969
        %v2978 = vmax.f32 %v2962, %v2970
        %v2979 = vmax.f32 %v2963, %v2971
        %2980 = vst.msk [vmem:[#allocation4] sm:$0xff] %vm2860, 0.0
        %vm2981 = vcmask 58368
        %2982 = vst.msk [vmem:[#allocation4 + $0x8] sm:$0x3] %vm2981, 0.0
        %s2983 = scalar_lea.vmem [#allocation4], 144
        %2984 = vst.msk [vmem:[%s2983] sm:$0xff] %vm2860, 0.0
        %2985 = vst.msk [vmem:[%s2983 + $0x8] sm:$0x3] %vm2981, 0.0
        %vm2986 = vcmask 57344
        %2987 = vst.msk [vmem:[#allocation4] sm:$0x1] %vm2986, 0.0
        %2988 = vst.msk [vmem:[#allocation4 + $0x10] sm:$0x1] %vm2986, 0.0
        %2989 = vst.msk [vmem:[#allocation4 + $0x20] sm:$0x1] %vm2986, 0.0
        %2990 = vst.msk [vmem:[#allocation4 + $0x30] sm:$0x1] %vm2986, 0.0
        %2991 = vst.msk [vmem:[#allocation4 + $0x40] sm:$0x1] %vm2986, 0.0
        %2992 = vst.msk [vmem:[#allocation4 + $0x50] sm:$0x1] %vm2986, 0.0
        %2993 = vst.msk [vmem:[#allocation4 + $0x60] sm:$0x1] %vm2986, 0.0
        %2994 = vst.msk [vmem:[#allocation4 + $0x70] sm:$0x1] %vm2986, 0.0
        %2995 = vst.msk [vmem:[#allocation4 + $0x80] sm:$0x1] %vm2986, 0.0
        %2996 = vst.msk [vmem:[#allocation4 + $0x90] sm:$0x1] %vm2986, 0.0
        %2997 = vst.msk [vmem:[#allocation4 + $0x9] sm:$0x1] %vm2986, 0.0
        %2998 = vst.msk [vmem:[#allocation4 + $0x19] sm:$0x1] %vm2986, 0.0
        %2999 = vst.msk [vmem:[#allocation4 + $0x29] sm:$0x1] %vm2986, 0.0
        %3000 = vst.msk [vmem:[#allocation4 + $0x39] sm:$0x1] %vm2986, 0.0
        %3001 = vst.msk [vmem:[#allocation4 + $0x49] sm:$0x1] %vm2986, 0.0
        %3002 = vst.msk [vmem:[#allocation4 + $0x59] sm:$0x1] %vm2986, 0.0
        %3003 = vst.msk [vmem:[#allocation4 + $0x69] sm:$0x1] %vm2986, 0.0
        %3004 = vst.msk [vmem:[#allocation4 + $0x79] sm:$0x1] %vm2986, 0.0
        %3005 = vst.msk [vmem:[#allocation4 + $0x89] sm:$0x1] %vm2986, 0.0
        %3006 = vst.msk [vmem:[#allocation4 + $0x99] sm:$0x1] %vm2986, 0.0
        %s3007 = scalar_lea.vmem [#allocation4], 16
        %3008 = vst.msk [vmem:[%s3007 + $0x1] sm:$0xff] %vm2860, %v2972
        %3009 = vst.msk [vmem:[%s3007 + $0x11] sm:$0xff] %vm2860, %v2973
        %3010 = vst.msk [vmem:[%s3007 + $0x21] sm:$0xff] %vm2860, %v2974
        %3011 = vst.msk [vmem:[%s3007 + $0x31] sm:$0xff] %vm2860, %v2975
        %3012 = vst.msk [vmem:[%s3007 + $0x41] sm:$0xff] %vm2860, %v2976
        %3013 = vst.msk [vmem:[%s3007 + $0x51] sm:$0xff] %vm2860, %v2977
        %3014 = vst.msk [vmem:[%s3007 + $0x61] sm:$0xff] %vm2860, %v2978
        %3015 = vst.msk [vmem:[%s3007 + $0x71] sm:$0xff] %vm2860, %v2979
        %v3016 = vld [vmem:[#allocation4] sm:$0xff]
        %v3017 = vld [vmem:[#allocation4 + $0x10] sm:$0xff]
        %v3018 = vld [vmem:[#allocation4 + $0x20] sm:$0xff]
        %v3019 = vld [vmem:[#allocation4 + $0x30] sm:$0xff]
        %v3020 = vld [vmem:[#allocation4 + $0x40] sm:$0xff]
        %v3021 = vld [vmem:[#allocation4 + $0x50] sm:$0xff]
        %v3022 = vld [vmem:[#allocation4 + $0x60] sm:$0xff]
        %v3023 = vld [vmem:[#allocation4 + $0x70] sm:$0xff]
        %v3024 = vpack.c.bf16 %v3017, %v3016
        %v3025 = vpack.c.bf16 %v3019, %v3018
        %v3026 = vpack.c.bf16 %v3021, %v3020
        %v3027 = vpack.c.bf16 %v3023, %v3022
        %v3032 = vunpack.c.l.b16 %v3024
        %v3033 = vunpack.c.h.b16 %v3024
        %v3034 = vunpack.c.l.b16 %v3025
        %v3035 = vunpack.c.h.b16 %v3025
        %v3036 = vunpack.c.l.b16 %v3026
        %v3037 = vunpack.c.h.b16 %v3026
        %v3038 = vunpack.c.l.b16 %v3027
        %v3039 = vunpack.c.h.b16 %v3027
        %v3040 = vpack.c.b16 %v3032, %v3032
        %v3041 = vpack.c.b16 %v3033, %v3033
        %v3042 = vpack.c.b16 %v3034, %v3034
        %v3043 = vpack.c.b16 %v3035, %v3035
        %v3044 = vpack.c.b16 %v3036, %v3036
        %v3045 = vpack.c.b16 %v3037, %v3037
        %v3046 = vpack.c.b16 %v3038, %v3038
        %v3047 = vpack.c.b16 %v3039, %v3039
        %vm3056 = vcmask 60416
        %3057 = vst.msk [vmem:[#allocation5] sm:$0xf] %vm3056, %v3040
        %3058 = vst.msk [vmem:[#allocation5 + $0x4] sm:$0xf] %vm3056, %v3041
        %3059 = vst.msk [vmem:[#allocation5 + $0x8] sm:$0xf] %vm3056, %v3042
        %3060 = vst.msk [vmem:[#allocation5 + $0xc] sm:$0xf] %vm3056, %v3043
        %3061 = vst.msk [vmem:[#allocation5 + $0x10] sm:$0xf] %vm3056, %v3044
        %3062 = vst.msk [vmem:[#allocation5 + $0x14] sm:$0xf] %vm3056, %v3045
        %3063 = vst.msk [vmem:[#allocation5 + $0x18] sm:$0xf] %vm3056, %v3046
        %3064 = vst.msk [vmem:[#allocation5 + $0x1c] sm:$0xf] %vm3056, %v3047
        %v3065 = vld [vmem:[#allocation4 + $0x1] sm:$0xff]
        %v3066 = vld [vmem:[#allocation4 + $0x11] sm:$0xff]
        %v3067 = vld [vmem:[#allocation4 + $0x21] sm:$0xff]
        %v3068 = vld [vmem:[#allocation4 + $0x31] sm:$0xff]
        %v3069 = vld [vmem:[#allocation4 + $0x41] sm:$0xff]
        %v3070 = vld [vmem:[#allocation4 + $0x51] sm:$0xff]
        %v3071 = vld [vmem:[#allocation4 + $0x61] sm:$0xff]
        %v3072 = vld [vmem:[#allocation4 + $0x71] sm:$0xff]
        %v3073 = vpack.c.bf16 %v3066, %v3065
        %v3074 = vpack.c.bf16 %v3068, %v3067
        %v3075 = vpack.c.bf16 %v3070, %v3069
        %v3076 = vpack.c.bf16 %v3072, %v3071
        %v3081 = vunpack.c.l.b16 %v3073
        %v3082 = vunpack.c.h.b16 %v3073
        %v3083 = vunpack.c.l.b16 %v3074
        %v3084 = vunpack.c.h.b16 %v3074
        %v3085 = vunpack.c.l.b16 %v3075
        %v3086 = vunpack.c.h.b16 %v3075
        %v3087 = vunpack.c.l.b16 %v3076
        %v3088 = vunpack.c.h.b16 %v3076
        %v3089 = vpack.c.b16 %v3081, %v3081
        %v3090 = vpack.c.b16 %v3082, %v3082
        %v3091 = vpack.c.b16 %v3083, %v3083
        %v3092 = vpack.c.b16 %v3084, %v3084
        %v3093 = vpack.c.b16 %v3085, %v3085
        %v3094 = vpack.c.b16 %v3086, %v3086
        %v3095 = vpack.c.b16 %v3087, %v3087
        %v3096 = vpack.c.b16 %v3088, %v3088
        %3097 = vrot.lane.b32.xlu0 %v3089, 8
        %v3098 = vpop.permute.xlu0 %3097
        %3099 = vrot.lane.b32.xlu0 %v3090, 8
        %v3100 = vpop.permute.xlu0 %3099
        %3101 = vrot.lane.b32.xlu0 %v3091, 8
        %v3102 = vpop.permute.xlu0 %3101
        %3103 = vrot.lane.b32.xlu0 %v3092, 8
        %v3104 = vpop.permute.xlu0 %3103
        %3105 = vrot.lane.b32.xlu0 %v3093, 8
        %v3106 = vpop.permute.xlu0 %3105
        %3107 = vrot.lane.b32.xlu0 %v3094, 8
        %v3108 = vpop.permute.xlu0 %3107
        %3109 = vrot.lane.b32.xlu0 %v3095, 8
        %v3110 = vpop.permute.xlu0 %3109
        %3111 = vrot.lane.b32.xlu0 %v3096, 8
        %v3112 = vpop.permute.xlu0 %3111
        %vm3121 = vcmask 126016
        %3122 = vst.msk [vmem:[#allocation5] sm:$0xf] %vm3121, %v3098
        %3123 = vst.msk [vmem:[#allocation5 + $0x4] sm:$0xf] %vm3121, %v3100
        %3124 = vst.msk [vmem:[#allocation5 + $0x8] sm:$0xf] %vm3121, %v3102
        %3125 = vst.msk [vmem:[#allocation5 + $0xc] sm:$0xf] %vm3121, %v3104
        %3126 = vst.msk [vmem:[#allocation5 + $0x10] sm:$0xf] %vm3121, %v3106
        %3127 = vst.msk [vmem:[#allocation5 + $0x14] sm:$0xf] %vm3121, %v3108
        %3128 = vst.msk [vmem:[#allocation5 + $0x18] sm:$0xf] %vm3121, %v3110
        %3129 = vst.msk [vmem:[#allocation5 + $0x1c] sm:$0xf] %vm3121, %v3112
        %v3130 = vld [vmem:[#allocation4 + $0x2] sm:$0xff]
        %v3131 = vld [vmem:[#allocation4 + $0x12] sm:$0xff]
        %v3132 = vld [vmem:[#allocation4 + $0x22] sm:$0xff]
        %v3133 = vld [vmem:[#allocation4 + $0x32] sm:$0xff]
        %v3134 = vld [vmem:[#allocation4 + $0x42] sm:$0xff]
        %v3135 = vld [vmem:[#allocation4 + $0x52] sm:$0xff]
        %v3136 = vld [vmem:[#allocation4 + $0x62] sm:$0xff]
        %v3137 = vld [vmem:[#allocation4 + $0x72] sm:$0xff]
        %v3138 = vpack.c.bf16 %v3131, %v3130
        %v3139 = vpack.c.bf16 %v3133, %v3132
        %v3140 = vpack.c.bf16 %v3135, %v3134
        %v3141 = vpack.c.bf16 %v3137, %v3136
        %v3146 = vunpack.c.l.b16 %v3138
        %v3147 = vunpack.c.h.b16 %v3138
        %v3148 = vunpack.c.l.b16 %v3139
        %v3149 = vunpack.c.h.b16 %v3139
        %v3150 = vunpack.c.l.b16 %v3140
        %v3151 = vunpack.c.h.b16 %v3140
        %v3152 = vunpack.c.l.b16 %v3141
        %v3153 = vunpack.c.h.b16 %v3141
        %v3154 = vpack.c.b16 %v3146, %v3146
        %v3155 = vpack.c.b16 %v3147, %v3147
        %v3156 = vpack.c.b16 %v3148, %v3148
        %v3157 = vpack.c.b16 %v3149, %v3149
        %v3158 = vpack.c.b16 %v3150, %v3150
        %v3159 = vpack.c.b16 %v3151, %v3151
        %v3160 = vpack.c.b16 %v3152, %v3152
        %v3161 = vpack.c.b16 %v3153, %v3153
        %3162 = vrot.lane.b32.xlu0 %v3154, 16
        %v3163 = vpop.permute.xlu0 %3162
        %3164 = vrot.lane.b32.xlu0 %v3155, 16
        %v3165 = vpop.permute.xlu0 %3164
        %3166 = vrot.lane.b32.xlu0 %v3156, 16
        %v3167 = vpop.permute.xlu0 %3166
        %3168 = vrot.lane.b32.xlu0 %v3157, 16
        %v3169 = vpop.permute.xlu0 %3168
        %3170 = vrot.lane.b32.xlu0 %v3158, 16
        %v3171 = vpop.permute.xlu0 %3170
        %3172 = vrot.lane.b32.xlu0 %v3159, 16
        %v3173 = vpop.permute.xlu0 %3172
        %3174 = vrot.lane.b32.xlu0 %v3160, 16
        %v3175 = vpop.permute.xlu0 %3174
        %3176 = vrot.lane.b32.xlu0 %v3161, 16
        %v3177 = vpop.permute.xlu0 %3176
        %vm3186 = vcmask 191616
        %3187 = vst.msk [vmem:[#allocation5] sm:$0xf] %vm3186, %v3163
        %3188 = vst.msk [vmem:[#allocation5 + $0x4] sm:$0xf] %vm3186, %v3165
        %3189 = vst.msk [vmem:[#allocation5 + $0x8] sm:$0xf] %vm3186, %v3167
        %3190 = vst.msk [vmem:[#allocation5 + $0xc] sm:$0xf] %vm3186, %v3169
        %3191 = vst.msk [vmem:[#allocation5 + $0x10] sm:$0xf] %vm3186, %v3171
        %3192 = vst.msk [vmem:[#allocation5 + $0x14] sm:$0xf] %vm3186, %v3173
        %3193 = vst.msk [vmem:[#allocation5 + $0x18] sm:$0xf] %vm3186, %v3175
        %3194 = vst.msk [vmem:[#allocation5 + $0x1c] sm:$0xf] %vm3186, %v3177
        %v3195 = vld [vmem:[%s3007] sm:$0xff]
        %v3196 = vld [vmem:[%s3007 + $0x10] sm:$0xff]
        %v3197 = vld [vmem:[%s3007 + $0x20] sm:$0xff]
        %v3198 = vld [vmem:[%s3007 + $0x30] sm:$0xff]
        %v3199 = vld [vmem:[%s3007 + $0x40] sm:$0xff]
        %v3200 = vld [vmem:[%s3007 + $0x50] sm:$0xff]
        %v3201 = vld [vmem:[%s3007 + $0x60] sm:$0xff]
        %v3202 = vld [vmem:[%s3007 + $0x70] sm:$0xff]
        %v3203 = vpack.c.bf16 %v3196, %v3195
        %v3204 = vpack.c.bf16 %v3198, %v3197
        %v3205 = vpack.c.bf16 %v3200, %v3199
        %v3206 = vpack.c.bf16 %v3202, %v3201
        %v3211 = vunpack.c.l.b16 %v3203
        %v3212 = vunpack.c.h.b16 %v3203
        %v3213 = vunpack.c.l.b16 %v3204
        %v3214 = vunpack.c.h.b16 %v3204
        %v3215 = vunpack.c.l.b16 %v3205
        %v3216 = vunpack.c.h.b16 %v3205
        %v3217 = vunpack.c.l.b16 %v3206
        %v3218 = vunpack.c.h.b16 %v3206
        %v3219 = vpack.c.b16 %v3211, %v3211
        %v3220 = vpack.c.b16 %v3212, %v3212
        %v3221 = vpack.c.b16 %v3213, %v3213
        %v3222 = vpack.c.b16 %v3214, %v3214
        %v3223 = vpack.c.b16 %v3215, %v3215
        %v3224 = vpack.c.b16 %v3216, %v3216
        %v3225 = vpack.c.b16 %v3217, %v3217
        %v3226 = vpack.c.b16 %v3218, %v3218
        %3227 = vrot.lane.b32.xlu0 %v3219, 24
        %v3228 = vpop.permute.xlu0 %3227
        %3229 = vrot.lane.b32.xlu0 %v3220, 24
        %v3230 = vpop.permute.xlu0 %3229
        %3231 = vrot.lane.b32.xlu0 %v3221, 24
        %v3232 = vpop.permute.xlu0 %3231
        %3233 = vrot.lane.b32.xlu0 %v3222, 24
        %v3234 = vpop.permute.xlu0 %3233
        %3235 = vrot.lane.b32.xlu0 %v3223, 24
        %v3236 = vpop.permute.xlu0 %3235
        %3237 = vrot.lane.b32.xlu0 %v3224, 24
        %v3238 = vpop.permute.xlu0 %3237
        %3239 = vrot.lane.b32.xlu0 %v3225, 24
        %v3240 = vpop.permute.xlu0 %3239
        %3241 = vrot.lane.b32.xlu0 %v3226, 24
        %v3242 = vpop.permute.xlu0 %3241
        %vm3251 = vcmask 257216
        %3252 = vst.msk [vmem:[#allocation5] sm:$0xf] %vm3251, %v3228
        %3253 = vst.msk [vmem:[#allocation5 + $0x4] sm:$0xf] %vm3251, %v3230
        %3254 = vst.msk [vmem:[#allocation5 + $0x8] sm:$0xf] %vm3251, %v3232
        %3255 = vst.msk [vmem:[#allocation5 + $0xc] sm:$0xf] %vm3251, %v3234
        %3256 = vst.msk [vmem:[#allocation5 + $0x10] sm:$0xf] %vm3251, %v3236
        %3257 = vst.msk [vmem:[#allocation5 + $0x14] sm:$0xf] %vm3251, %v3238
        %3258 = vst.msk [vmem:[#allocation5 + $0x18] sm:$0xf] %vm3251, %v3240
        %3259 = vst.msk [vmem:[#allocation5 + $0x1c] sm:$0xf] %vm3251, %v3242
        %v3260 = vld [vmem:[%s3007 + $0x1] sm:$0xff]
        %v3261 = vld [vmem:[%s3007 + $0x11] sm:$0xff]
        %v3262 = vld [vmem:[%s3007 + $0x21] sm:$0xff]
        %v3263 = vld [vmem:[%s3007 + $0x31] sm:$0xff]
        %v3264 = vld [vmem:[%s3007 + $0x41] sm:$0xff]
        %v3265 = vld [vmem:[%s3007 + $0x51] sm:$0xff]
        %v3266 = vld [vmem:[%s3007 + $0x61] sm:$0xff]
        %v3267 = vld [vmem:[%s3007 + $0x71] sm:$0xff]
        %v3268 = vpack.c.bf16 %v3261, %v3260
        %v3269 = vpack.c.bf16 %v3263, %v3262
        %v3270 = vpack.c.bf16 %v3265, %v3264
        %v3271 = vpack.c.bf16 %v3267, %v3266
        %v3276 = vunpack.c.l.b16 %v3268
        %v3277 = vunpack.c.h.b16 %v3268
        %v3278 = vunpack.c.l.b16 %v3269
        %v3279 = vunpack.c.h.b16 %v3269
        %v3280 = vunpack.c.l.b16 %v3270
        %v3281 = vunpack.c.h.b16 %v3270
        %v3282 = vunpack.c.l.b16 %v3271
        %v3283 = vunpack.c.h.b16 %v3271
        %v3284 = vpack.c.b16 %v3276, %v3276
        %v3285 = vpack.c.b16 %v3277, %v3277
        %v3286 = vpack.c.b16 %v3278, %v3278
        %v3287 = vpack.c.b16 %v3279, %v3279
        %v3288 = vpack.c.b16 %v3280, %v3280
        %v3289 = vpack.c.b16 %v3281, %v3281
        %v3290 = vpack.c.b16 %v3282, %v3282
        %v3291 = vpack.c.b16 %v3283, %v3283
        %3292 = vrot.lane.b32.xlu0 %v3284, 32
        %v3293 = vpop.permute.xlu0 %3292
        %3294 = vrot.lane.b32.xlu0 %v3285, 32
        %v3295 = vpop.permute.xlu0 %3294
        %3296 = vrot.lane.b32.xlu0 %v3286, 32
        %v3297 = vpop.permute.xlu0 %3296
        %3298 = vrot.lane.b32.xlu0 %v3287, 32
        %v3299 = vpop.permute.xlu0 %3298
        %3300 = vrot.lane.b32.xlu0 %v3288, 32
        %v3301 = vpop.permute.xlu0 %3300
        %3302 = vrot.lane.b32.xlu0 %v3289, 32
        %v3303 = vpop.permute.xlu0 %3302
        %3304 = vrot.lane.b32.xlu0 %v3290, 32
        %v3305 = vpop.permute.xlu0 %3304
        %3306 = vrot.lane.b32.xlu0 %v3291, 32
        %v3307 = vpop.permute.xlu0 %3306
        %vm3316 = vcmask 322816
        %3317 = vst.msk [vmem:[#allocation5] sm:$0xf] %vm3316, %v3293
        %3318 = vst.msk [vmem:[#allocation5 + $0x4] sm:$0xf] %vm3316, %v3295
        %3319 = vst.msk [vmem:[#allocation5 + $0x8] sm:$0xf] %vm3316, %v3297
        %3320 = vst.msk [vmem:[#allocation5 + $0xc] sm:$0xf] %vm3316, %v3299
        %3321 = vst.msk [vmem:[#allocation5 + $0x10] sm:$0xf] %vm3316, %v3301
        %3322 = vst.msk [vmem:[#allocation5 + $0x14] sm:$0xf] %vm3316, %v3303
        %3323 = vst.msk [vmem:[#allocation5 + $0x18] sm:$0xf] %vm3316, %v3305
        %3324 = vst.msk [vmem:[#allocation5 + $0x1c] sm:$0xf] %vm3316, %v3307
        %v3325 = vld [vmem:[%s3007 + $0x2] sm:$0xff]
        %v3326 = vld [vmem:[%s3007 + $0x12] sm:$0xff]
        %v3327 = vld [vmem:[%s3007 + $0x22] sm:$0xff]
        %v3328 = vld [vmem:[%s3007 + $0x32] sm:$0xff]
        %v3329 = vld [vmem:[%s3007 + $0x42] sm:$0xff]
        %v3330 = vld [vmem:[%s3007 + $0x52] sm:$0xff]
        %v3331 = vld [vmem:[%s3007 + $0x62] sm:$0xff]
        %v3332 = vld [vmem:[%s3007 + $0x72] sm:$0xff]
        %v3333 = vpack.c.bf16 %v3326, %v3325
        %v3334 = vpack.c.bf16 %v3328, %v3327
        %v3335 = vpack.c.bf16 %v3330, %v3329
        %v3336 = vpack.c.bf16 %v3332, %v3331
        %v3341 = vunpack.c.l.b16 %v3333
        %v3342 = vunpack.c.h.b16 %v3333
        %v3343 = vunpack.c.l.b16 %v3334
        %v3344 = vunpack.c.h.b16 %v3334
        %v3345 = vunpack.c.l.b16 %v3335
        %v3346 = vunpack.c.h.b16 %v3335
        %v3347 = vunpack.c.l.b16 %v3336
        %v3348 = vunpack.c.h.b16 %v3336
        %v3349 = vpack.c.b16 %v3341, %v3341
        %v3350 = vpack.c.b16 %v3342, %v3342
        %v3351 = vpack.c.b16 %v3343, %v3343
        %v3352 = vpack.c.b16 %v3344, %v3344
        %v3353 = vpack.c.b16 %v3345, %v3345
        %v3354 = vpack.c.b16 %v3346, %v3346
        %v3355 = vpack.c.b16 %v3347, %v3347
        %v3356 = vpack.c.b16 %v3348, %v3348
        %3357 = vrot.lane.b32.xlu0 %v3349, 40
        %v3358 = vpop.permute.xlu0 %3357
        %3359 = vrot.lane.b32.xlu0 %v3350, 40
        %v3360 = vpop.permute.xlu0 %3359
        %3361 = vrot.lane.b32.xlu0 %v3351, 40
        %v3362 = vpop.permute.xlu0 %3361
        %3363 = vrot.lane.b32.xlu0 %v3352, 40
        %v3364 = vpop.permute.xlu0 %3363
        %3365 = vrot.lane.b32.xlu0 %v3353, 40
        %v3366 = vpop.permute.xlu0 %3365
        %3367 = vrot.lane.b32.xlu0 %v3354, 40
        %v3368 = vpop.permute.xlu0 %3367
        %3369 = vrot.lane.b32.xlu0 %v3355, 40
        %v3370 = vpop.permute.xlu0 %3369
        %3371 = vrot.lane.b32.xlu0 %v3356, 40
        %v3372 = vpop.permute.xlu0 %3371
        %vm3381 = vcmask 388416
        %3382 = vst.msk [vmem:[#allocation5] sm:$0xf] %vm3381, %v3358
        %3383 = vst.msk [vmem:[#allocation5 + $0x4] sm:$0xf] %vm3381, %v3360
        %3384 = vst.msk [vmem:[#allocation5 + $0x8] sm:$0xf] %vm3381, %v3362
        %3385 = vst.msk [vmem:[#allocation5 + $0xc] sm:$0xf] %vm3381, %v3364
        %3386 = vst.msk [vmem:[#allocation5 + $0x10] sm:$0xf] %vm3381, %v3366
        %3387 = vst.msk [vmem:[#allocation5 + $0x14] sm:$0xf] %vm3381, %v3368
        %3388 = vst.msk [vmem:[#allocation5 + $0x18] sm:$0xf] %vm3381, %v3370
        %3389 = vst.msk [vmem:[#allocation5 + $0x1c] sm:$0xf] %vm3381, %v3372
        %s3390 = scalar_lea.vmem [#allocation4], 32
        %v3391 = vld [vmem:[%s3390] sm:$0xff]
        %v3392 = vld [vmem:[%s3390 + $0x10] sm:$0xff]
        %v3393 = vld [vmem:[%s3390 + $0x20] sm:$0xff]
        %v3394 = vld [vmem:[%s3390 + $0x30] sm:$0xff]
        %v3395 = vld [vmem:[%s3390 + $0x40] sm:$0xff]
        %v3396 = vld [vmem:[%s3390 + $0x50] sm:$0xff]
        %v3397 = vld [vmem:[%s3390 + $0x60] sm:$0xff]
        %v3398 = vld [vmem:[%s3390 + $0x70] sm:$0xff]
        %v3399 = vpack.c.bf16 %v3392, %v3391
        %v3400 = vpack.c.bf16 %v3394, %v3393
        %v3401 = vpack.c.bf16 %v3396, %v3395
        %v3402 = vpack.c.bf16 %v3398, %v3397
        %v3407 = vunpack.c.l.b16 %v3399
        %v3408 = vunpack.c.h.b16 %v3399
        %v3409 = vunpack.c.l.b16 %v3400
        %v3410 = vunpack.c.h.b16 %v3400
        %v3411 = vunpack.c.l.b16 %v3401
        %v3412 = vunpack.c.h.b16 %v3401
        %v3413 = vunpack.c.l.b16 %v3402
        %v3414 = vunpack.c.h.b16 %v3402
        %v3415 = vpack.c.b16 %v3407, %v3407
        %v3416 = vpack.c.b16 %v3408, %v3408
        %v3417 = vpack.c.b16 %v3409, %v3409
        %v3418 = vpack.c.b16 %v3410, %v3410
        %v3419 = vpack.c.b16 %v3411, %v3411
        %v3420 = vpack.c.b16 %v3412, %v3412
        %v3421 = vpack.c.b16 %v3413, %v3413
        %v3422 = vpack.c.b16 %v3414, %v3414
        %3423 = vrot.lane.b32.xlu0 %v3415, 48
        %v3424 = vpop.permute.xlu0 %3423
        %3425 = vrot.lane.b32.xlu0 %v3416, 48
        %v3426 = vpop.permute.xlu0 %3425
        %3427 = vrot.lane.b32.xlu0 %v3417, 48
        %v3428 = vpop.permute.xlu0 %3427
        %3429 = vrot.lane.b32.xlu0 %v3418, 48
        %v3430 = vpop.permute.xlu0 %3429
        %3431 = vrot.lane.b32.xlu0 %v3419, 48
        %v3432 = vpop.permute.xlu0 %3431
        %3433 = vrot.lane.b32.xlu0 %v3420, 48
        %v3434 = vpop.permute.xlu0 %3433
        %3435 = vrot.lane.b32.xlu0 %v3421, 48
        %v3436 = vpop.permute.xlu0 %3435
        %3437 = vrot.lane.b32.xlu0 %v3422, 48
        %v3438 = vpop.permute.xlu0 %3437
        %vm3447 = vcmask 454016
        %3448 = vst.msk [vmem:[#allocation5] sm:$0xf] %vm3447, %v3424
        %3449 = vst.msk [vmem:[#allocation5 + $0x4] sm:$0xf] %vm3447, %v3426
        %3450 = vst.msk [vmem:[#allocation5 + $0x8] sm:$0xf] %vm3447, %v3428
        %3451 = vst.msk [vmem:[#allocation5 + $0xc] sm:$0xf] %vm3447, %v3430
        %3452 = vst.msk [vmem:[#allocation5 + $0x10] sm:$0xf] %vm3447, %v3432
        %3453 = vst.msk [vmem:[#allocation5 + $0x14] sm:$0xf] %vm3447, %v3434
        %3454 = vst.msk [vmem:[#allocation5 + $0x18] sm:$0xf] %vm3447, %v3436
        %3455 = vst.msk [vmem:[#allocation5 + $0x1c] sm:$0xf] %vm3447, %v3438
        %v3456 = vld [vmem:[%s3390 + $0x1] sm:$0xff]
        %v3457 = vld [vmem:[%s3390 + $0x11] sm:$0xff]
        %v3458 = vld [vmem:[%s3390 + $0x21] sm:$0xff]
        %v3459 = vld [vmem:[%s3390 + $0x31] sm:$0xff]
        %v3460 = vld [vmem:[%s3390 + $0x41] sm:$0xff]
        %v3461 = vld [vmem:[%s3390 + $0x51] sm:$0xff]
        %v3462 = vld [vmem:[%s3390 + $0x61] sm:$0xff]
        %v3463 = vld [vmem:[%s3390 + $0x71] sm:$0xff]
        %v3464 = vpack.c.bf16 %v3457, %v3456
        %v3465 = vpack.c.bf16 %v3459, %v3458
        %v3466 = vpack.c.bf16 %v3461, %v3460
        %v3467 = vpack.c.bf16 %v3463, %v3462
        %v3472 = vunpack.c.l.b16 %v3464
        %v3473 = vunpack.c.h.b16 %v3464
        %v3474 = vunpack.c.l.b16 %v3465
        %v3475 = vunpack.c.h.b16 %v3465
        %v3476 = vunpack.c.l.b16 %v3466
        %v3477 = vunpack.c.h.b16 %v3466
        %v3478 = vunpack.c.l.b16 %v3467
        %v3479 = vunpack.c.h.b16 %v3467
        %v3480 = vpack.c.b16 %v3472, %v3472
        %v3481 = vpack.c.b16 %v3473, %v3473
        %v3482 = vpack.c.b16 %v3474, %v3474
        %v3483 = vpack.c.b16 %v3475, %v3475
        %v3484 = vpack.c.b16 %v3476, %v3476
        %v3485 = vpack.c.b16 %v3477, %v3477
        %v3486 = vpack.c.b16 %v3478, %v3478
        %v3487 = vpack.c.b16 %v3479, %v3479
        %3488 = vrot.lane.b32.xlu0 %v3480, 56
        %v3489 = vpop.permute.xlu0 %3488
        %3490 = vrot.lane.b32.xlu0 %v3481, 56
        %v3491 = vpop.permute.xlu0 %3490
        %3492 = vrot.lane.b32.xlu0 %v3482, 56
        %v3493 = vpop.permute.xlu0 %3492
        %3494 = vrot.lane.b32.xlu0 %v3483, 56
        %v3495 = vpop.permute.xlu0 %3494
        %3496 = vrot.lane.b32.xlu0 %v3484, 56
        %v3497 = vpop.permute.xlu0 %3496
        %3498 = vrot.lane.b32.xlu0 %v3485, 56
        %v3499 = vpop.permute.xlu0 %3498
        %3500 = vrot.lane.b32.xlu0 %v3486, 56
        %v3501 = vpop.permute.xlu0 %3500
        %3502 = vrot.lane.b32.xlu0 %v3487, 56
        %v3503 = vpop.permute.xlu0 %3502
        %vm3512 = vcmask 519616
        %3513 = vst.msk [vmem:[#allocation5] sm:$0xf] %vm3512, %v3489
        %3514 = vst.msk [vmem:[#allocation5 + $0x4] sm:$0xf] %vm3512, %v3491
        %3515 = vst.msk [vmem:[#allocation5 + $0x8] sm:$0xf] %vm3512, %v3493
        %3516 = vst.msk [vmem:[#allocation5 + $0xc] sm:$0xf] %vm3512, %v3495
        %3517 = vst.msk [vmem:[#allocation5 + $0x10] sm:$0xf] %vm3512, %v3497
        %3518 = vst.msk [vmem:[#allocation5 + $0x14] sm:$0xf] %vm3512, %v3499
        %3519 = vst.msk [vmem:[#allocation5 + $0x18] sm:$0xf] %vm3512, %v3501
        %3520 = vst.msk [vmem:[#allocation5 + $0x1c] sm:$0xf] %vm3512, %v3503
        %v3521 = vld [vmem:[%s3390 + $0x2] sm:$0xff]
        %v3522 = vld [vmem:[%s3390 + $0x12] sm:$0xff]
        %v3523 = vld [vmem:[%s3390 + $0x22] sm:$0xff]
        %v3524 = vld [vmem:[%s3390 + $0x32] sm:$0xff]
        %v3525 = vld [vmem:[%s3390 + $0x42] sm:$0xff]
        %v3526 = vld [vmem:[%s3390 + $0x52] sm:$0xff]
        %v3527 = vld [vmem:[%s3390 + $0x62] sm:$0xff]
        %v3528 = vld [vmem:[%s3390 + $0x72] sm:$0xff]
        %v3529 = vpack.c.bf16 %v3522, %v3521
        %v3530 = vpack.c.bf16 %v3524, %v3523
        %v3531 = vpack.c.bf16 %v3526, %v3525
        %v3532 = vpack.c.bf16 %v3528, %v3527
        %v3537 = vunpack.c.l.b16 %v3529
        %v3538 = vunpack.c.h.b16 %v3529
        %v3539 = vunpack.c.l.b16 %v3530
        %v3540 = vunpack.c.h.b16 %v3530
        %v3541 = vunpack.c.l.b16 %v3531
        %v3542 = vunpack.c.h.b16 %v3531
        %v3543 = vunpack.c.l.b16 %v3532
        %v3544 = vunpack.c.h.b16 %v3532
        %v3545 = vpack.c.b16 %v3537, %v3537
        %v3546 = vpack.c.b16 %v3538, %v3538
        %v3547 = vpack.c.b16 %v3539, %v3539
        %v3548 = vpack.c.b16 %v3540, %v3540
        %v3549 = vpack.c.b16 %v3541, %v3541
        %v3550 = vpack.c.b16 %v3542, %v3542
        %v3551 = vpack.c.b16 %v3543, %v3543
        %v3552 = vpack.c.b16 %v3544, %v3544
        %3553 = vrot.lane.b32.xlu0 %v3545, 64
        %v3554 = vpop.permute.xlu0 %3553
        %3555 = vrot.lane.b32.xlu0 %v3546, 64
        %v3556 = vpop.permute.xlu0 %3555
        %3557 = vrot.lane.b32.xlu0 %v3547, 64
        %v3558 = vpop.permute.xlu0 %3557
        %3559 = vrot.lane.b32.xlu0 %v3548, 64
        %v3560 = vpop.permute.xlu0 %3559
        %3561 = vrot.lane.b32.xlu0 %v3549, 64
        %v3562 = vpop.permute.xlu0 %3561
        %3563 = vrot.lane.b32.xlu0 %v3550, 64
        %v3564 = vpop.permute.xlu0 %3563
        %3565 = vrot.lane.b32.xlu0 %v3551, 64
        %v3566 = vpop.permute.xlu0 %3565
        %3567 = vrot.lane.b32.xlu0 %v3552, 64
        %v3568 = vpop.permute.xlu0 %3567
        %vm3577 = vcmask 585216
        %3578 = vst.msk [vmem:[#allocation5] sm:$0xf] %vm3577, %v3554
        %3579 = vst.msk [vmem:[#allocation5 + $0x4] sm:$0xf] %vm3577, %v3556
        %3580 = vst.msk [vmem:[#allocation5 + $0x8] sm:$0xf] %vm3577, %v3558
        %3581 = vst.msk [vmem:[#allocation5 + $0xc] sm:$0xf] %vm3577, %v3560
        %3582 = vst.msk [vmem:[#allocation5 + $0x10] sm:$0xf] %vm3577, %v3562
        %3583 = vst.msk [vmem:[#allocation5 + $0x14] sm:$0xf] %vm3577, %v3564
        %3584 = vst.msk [vmem:[#allocation5 + $0x18] sm:$0xf] %vm3577, %v3566
        %3585 = vst.msk [vmem:[#allocation5 + $0x1c] sm:$0xf] %vm3577, %v3568
        %v3586 = vld [vmem:[#allocation5] sm:$0xf]
        %v3587 = vld [vmem:[#allocation5 + $0x4] sm:$0xf]
        %v3588 = vld [vmem:[#allocation5 + $0x8] sm:$0xf]
        %v3589 = vld [vmem:[#allocation5 + $0xc] sm:$0xf]
        %v3590 = vld [vmem:[#allocation5 + $0x10] sm:$0xf]
        %v3591 = vld [vmem:[#allocation5 + $0x14] sm:$0xf]
        %v3592 = vld [vmem:[#allocation5 + $0x18] sm:$0xf]
        %v3593 = vld [vmem:[#allocation5 + $0x1c] sm:$0xf]
        %v3594 = vld [vmem:[%s3] sm:$0xf]
        %v3595 = vld [vmem:[%s3 + $0x4] sm:$0xf]
        %v3596 = vld [vmem:[%s3 + $0x8] sm:$0xf]
        %v3597 = vld [vmem:[%s3 + $0xc] sm:$0xf]
        %v3598 = vld [vmem:[%s3 + $0x10] sm:$0xf]
        %v3599 = vld [vmem:[%s3 + $0x14] sm:$0xf]
        %v3600 = vld [vmem:[%s3 + $0x18] sm:$0xf]
        %v3601 = vld [vmem:[%s3 + $0x1c] sm:$0xf]
        %v3602 = vld [vmem:[%s3 + $0x20] sm:$0xf]
        %v3603 = vld [vmem:[%s4] sm:$0x1]
        %v3605 = vlaneseq
        %v3606 = vshrl.u32 %v3605, 7
        %v3607 = vsub.s32 0, %v3606
        %v3608 = vrot.slane %v3603, %v3607
        %v3618 = vunpack.c.l.b16 %v3586
        %v3619 = vunpack.c.l.b16 %v3587
        %v3620 = vunpack.c.l.b16 %v3588
        %v3621 = vunpack.c.l.b16 %v3589
        %v3622 = vunpack.c.l.b16 %v3590
        %v3623 = vunpack.c.l.b16 %v3591
        %v3624 = vunpack.c.l.b16 %v3592
        %v3625 = vunpack.c.l.b16 %v3593
        %v3626 = vpack.c.b16 %v3619, %v3618
        %v3627 = vpack.c.b16 %v3621, %v3620
        %v3628 = vpack.c.b16 %v3623, %v3622
        %v3629 = vpack.c.b16 %v3625, %v3624
        %v3639 = vunpack.c.l.b16 %v3594
        %v3640 = vunpack.c.l.b16 %v3595
        %v3641 = vunpack.c.l.b16 %v3596
        %v3642 = vunpack.c.l.b16 %v3597
        %v3643 = vunpack.c.l.b16 %v3598
        %v3644 = vunpack.c.l.b16 %v3599
        %v3645 = vunpack.c.l.b16 %v3600
        %v3646 = vunpack.c.l.b16 %v3601
        %v3647 = vunpack.c.l.b16 %v3602
        %v3648 = vpack.c.b16 %v3640, %v3639
        %v3649 = vpack.c.b16 %v3642, %v3641
        %v3650 = vpack.c.b16 %v3644, %v3643
        %v3651 = vpack.c.b16 %v3646, %v3645
        %v3652 = vpack.c.b16 %v3647, %v3647
        %vm3657 = vcmask 588800
        %v3659 = vsel %vm3657, %v3626, 0
        %v3662 = vsel %vm3657, %v3627, 0
        %v3665 = vsel %vm3657, %v3628, 0
        %v3668 = vsel %vm3657, %v3629, 0
        %vm3670 = vcmask 1043456
        %v3672 = vsel %vm3670, %v3652, 0
        %3674 = vmatprep.subr.bf16.mxu0 0
        %3675 = vmatpush1.bf16.msra.mxu0 0
        %3676 = vmatprep.subr.bf16.mxu0 0
        %3677 = vmatpush1.bf16.msra.mxu0 0
        %3678 = vmatprep.subr.bf16.mxu0 0
        %3679 = vmatpush1.bf16.msra.mxu0 0
        %3680 = vmatprep.subr.bf16.mxu0 0
        %3681 = vmatpush1.bf16.msra.mxu0 %v3672
        %3682 = vmatprep.subr.bf16.mxu0 0
        %3683 = vmatpush1.bf16.msra.mxu0 %v3651
        %3684 = vmatprep.subr.bf16.mxu0 0
        %3685 = vmatpush1.bf16.msra.mxu0 %v3650
        %3686 = vmatprep.subr.bf16.mxu0 0
        %3687 = vmatpush1.bf16.msra.mxu0 %v3649
        %3688 = vmatprep.subr.bf16.mxu0 0
        %3689 = vmatpush1.bf16.msra.mxu0 %v3648
        %3690 = vmatprep.subr.bf16.mxu0 0
        %3691 = vmatpush2.bf16.msra.mxu0 0
        %3692 = vmatprep.subr.bf16.mxu0 0
        %3693 = vmatpush2.bf16.msra.mxu0 0
        %3694 = vmatprep.subr.bf16.mxu0 0
        %3695 = vmatpush2.bf16.msra.mxu0 0
        %3696 = vmatprep.subr.bf16.mxu0 0
        %3697 = vmatpush2.bf16.msra.mxu0 0
        %3698 = vmatprep.subr.bf16.mxu0 0
        %3699 = vmatpush2.bf16.msra.mxu0 0
        %3700 = vmatprep.subr.bf16.mxu0 0
        %3701 = vmatpush2.bf16.msra.mxu0 0
        %3702 = vmatprep.subr.bf16.mxu0 0
        %3703 = vmatpush2.bf16.msra.mxu0 0
        %3704 = vmatprep.subr.bf16.mxu0 0
        %3705 = vmatpush2.bf16.msra.mxu0 0
        %3706 = vmatprep.mubr.bf16.mxu0 0
        %3707 = vmatmul.mubr.bf16.gmra.mxu0 %v3659
        %v3708 = vpop.f32.mrf.mxu0
        %v3709 = vadd.f32 %v3608, %v3708
        %v3710 = vpop.f32.mrf.mxu0
        %v3711 = vpop.f32.mrf.mxu0
        %v3712 = vadd.f32 %v3608, %v3711
        %v3713 = vpop.f32.mrf.mxu0
        %3714 = vmatprep.mubr.bf16.mxu0 0
        %3715 = vmatmul.mubr.bf16.gmra.mxu0 %v3662
        %v3716 = vpop.f32.mrf.mxu0
        %v3717 = vadd.f32 %v3608, %v3716
        %v3718 = vpop.f32.mrf.mxu0
        %v3719 = vpop.f32.mrf.mxu0
        %v3720 = vadd.f32 %v3608, %v3719
        %v3721 = vpop.f32.mrf.mxu0
        %3722 = vmatprep.mubr.bf16.mxu0 0
        %3723 = vmatmul.mubr.bf16.gmra.mxu0 %v3665
        %v3724 = vpop.f32.mrf.mxu0
        %v3725 = vadd.f32 %v3608, %v3724
        %v3726 = vpop.f32.mrf.mxu0
        %v3727 = vpop.f32.mrf.mxu0
        %v3728 = vadd.f32 %v3608, %v3727
        %v3729 = vpop.f32.mrf.mxu0
        %3730 = vmatprep.mubr.bf16.mxu0 0
        %3731 = vmatmul.mubr.bf16.gmra.mxu0 %v3668
        %v3732 = vpop.f32.mrf.mxu0
        %v3733 = vadd.f32 %v3608, %v3732
        %v3734 = vpop.f32.mrf.mxu0
        %v3735 = vpop.f32.mrf.mxu0
        %v3736 = vadd.f32 %v3608, %v3735
        %v3737 = vpop.f32.mrf.mxu0
        %3738 = vdwg.mxu0
        %v3739 = vmax.f32 %v3709, 0.0
        %v3740 = vmax.f32 %v3712, 0.0
        %v3741 = vmax.f32 %v3717, 0.0
        %v3742 = vmax.f32 %v3720, 0.0
        %v3743 = vmax.f32 %v3725, 0.0
        %v3744 = vmax.f32 %v3728, 0.0
        %v3745 = vmax.f32 %v3733, 0.0
        %v3746 = vmax.f32 %v3736, 0.0
        %vm3747 = vcmask 130048
        %3748 = vst.msk [vmem:[#allocation6] sm:$0xff] %vm3747, %v3739
        %3749 = vst.msk [vmem:[#allocation6 + $0x8] sm:$0xff] %vm3747, %v3740
        %3750 = vst.msk [vmem:[#allocation6 + $0x10] sm:$0xff] %vm3747, %v3741
        %3751 = vst.msk [vmem:[#allocation6 + $0x18] sm:$0xff] %vm3747, %v3742
        %3752 = vst.msk [vmem:[#allocation6 + $0x20] sm:$0xff] %vm3747, %v3743
        %3753 = vst.msk [vmem:[#allocation6 + $0x28] sm:$0xff] %vm3747, %v3744
        %3754 = vst.msk [vmem:[#allocation6 + $0x30] sm:$0xff] %vm3747, %v3745
        %3755 = vst.msk [vmem:[#allocation6 + $0x38] sm:$0xff] %vm3747, %v3746
        %v3756 = vld [vmem:[#allocation6] ss:$2 sm:$0xf]
        %s3757 = scalar_lea.vmem [#allocation6], 16
        %v3758 = vld [vmem:[%s3757] ss:$2 sm:$0xf]
        %s3759 = scalar_lea.vmem [#allocation6], 32
        %v3760 = vld [vmem:[%s3759] ss:$2 sm:$0xf]
        %s3761 = scalar_lea.vmem [#allocation6], 48
        %v3762 = vld [vmem:[%s3761] ss:$2 sm:$0xf]
        %s3763 = scalar_lea.vmem [#allocation6], 1
        %v3764 = vld [vmem:[%s3763] ss:$2 sm:$0xf]
        %s3765 = scalar_lea.vmem [#allocation6], 17
        %v3766 = vld [vmem:[%s3765] ss:$2 sm:$0xf]
        %s3767 = scalar_lea.vmem [#allocation6], 33
        %v3768 = vld [vmem:[%s3767] ss:$2 sm:$0xf]
        %s3769 = scalar_lea.vmem [#allocation6], 49
        %v3770 = vld [vmem:[%s3769] ss:$2 sm:$0xf]
        %s3771 = scalar_lea.vmem [#allocation6], 8
        %v3772 = vld [vmem:[%s3771] ss:$2 sm:$0xf]
        %s3773 = scalar_lea.vmem %s3771, 16 [#allocation6]
        %v3774 = vld [vmem:[%s3773] ss:$2 sm:$0xf]
        %s3775 = scalar_lea.vmem %s3771, 32 [#allocation6]
        %v3776 = vld [vmem:[%s3775] ss:$2 sm:$0xf]
        %s3777 = scalar_lea.vmem %s3771, 48 [#allocation6]
        %v3778 = vld [vmem:[%s3777] ss:$2 sm:$0xf]
        %s3779 = scalar_lea.vmem %s3771, 1 [#allocation6]
        %v3780 = vld [vmem:[%s3779] ss:$2 sm:$0xf]
        %s3781 = scalar_lea.vmem %s3771, 17 [#allocation6]
        %v3782 = vld [vmem:[%s3781] ss:$2 sm:$0xf]
        %s3783 = scalar_lea.vmem %s3771, 33 [#allocation6]
        %v3784 = vld [vmem:[%s3783] ss:$2 sm:$0xf]
        %s3785 = scalar_lea.vmem %s3771, 49 [#allocation6]
        %v3786 = vld [vmem:[%s3785] ss:$2 sm:$0xf]
        %v3787 = vmax.f32 %v3756, %v3764
        %v3788 = vmax.f32 %v3758, %v3766
        %v3789 = vmax.f32 %v3760, %v3768
        %v3790 = vmax.f32 %v3762, %v3770
        %v3791 = vmax.f32 %v3772, %v3780
        %v3792 = vmax.f32 %v3774, %v3782
        %v3793 = vmax.f32 %v3776, %v3784
        %v3794 = vmax.f32 %v3778, %v3786
        %v3795 = vmax.f32 %v3787, %v3791
        %v3796 = vmax.f32 %v3788, %v3792
        %v3797 = vmax.f32 %v3789, %v3793
        %v3798 = vmax.f32 %v3790, %v3794
        %v3803 = vcombine.low %v3795, %v3796
        %v3804 = vcombine.low %v3797, %v3798
        %3807 = vxpose.xlu0.b32.start [1/16] %v3803, 128
        %3808 = vxpose.xlu0.b32.cont [2/16] %v3804, 128
        %3809 = vxpose.xlu0.b32.cont [3/16] 0.0, 128
        %3810 = vxpose.xlu0.b32.cont [4/16] 0.0, 128
        %3811 = vxpose.xlu0.b32.cont [5/16] 0.0, 128
        %3812 = vxpose.xlu0.b32.cont [6/16] 0.0, 128
        %3813 = vxpose.xlu0.b32.cont [7/16] 0.0, 128
        %3814 = vxpose.xlu0.b32.cont [8/16] 0.0, 128
        %3815 = vxpose.xlu0.b32.cont [9/16] 0.0, 128
        %3816 = vxpose.xlu0.b32.cont [10/16] 0.0, 128
        %3817 = vxpose.xlu0.b32.cont [11/16] 0.0, 128
        %3818 = vxpose.xlu0.b32.cont [12/16] 0.0, 128
        %3819 = vxpose.xlu0.b32.cont [13/16] 0.0, 128
        %3820 = vxpose.xlu0.b32.cont [14/16] 0.0, 128
        %3821 = vxpose.xlu0.b32.cont [15/16] 0.0, 128
        %3822 = vxpose.xlu0.b32.end [16/16] 0.0, 128
        %v3823 = vpop.trf.xlu0
        %v3824 = vpop.trf.xlu0
        %v3825 = vpop.trf.xlu0
        %v3826 = vpop.trf.xlu0
        %v3827 = vpop.trf.xlu0
        %v3828 = vpop.trf.xlu0
        %v3829 = vpop.trf.xlu0
        %v3830 = vpop.trf.xlu0
        %v3831 = vpop.trf.xlu0
        %v3832 = vpop.trf.xlu0
        %v3833 = vpop.trf.xlu0
        %v3834 = vpop.trf.xlu0
        %v3835 = vpop.trf.xlu0
        %v3836 = vpop.trf.xlu0
        %v3837 = vpop.trf.xlu0
        %v3838 = vpop.trf.xlu0
        %3839 = vst.msk [vmem:[%s217] sm:$0xff] %vm3747, %v3823
        %3840 = vst.msk [vmem:[%s217 + $0x8] sm:$0xff] %vm3747, %v3824
        %s3841 = sand.u32 %s137, 1
        %s3842 = scalar_lea.sflag [#allocation8], %s3841
        %s3843 = sand.u32 %s137, 1
        %s3844 = smul.addr %s3843, 16
        %s3845 = scalar_lea.vmem [#allocation7], %s3844
        // Predicated region
        $region41: #{tpu_custom_call.1} parent=39 // pred_check
          %p3846 = pneg %p147
        $region42: #{tpu_custom_call.1} parent=39 // pred_check_branch
          %3848 = sbr.rel (%p3846) target = $region44
        $region43: #{tpu_custom_call.1} parent=39 // pred_region
          %s3850 = ssub.s32 256, 256
          %3851 = vsyncadd %s3842, %s3850
          %s3852 = smul.addr %s19, 2
          %s3853 = smul.addr %s3852, 128
          %s3854 = scalar_lea.hbm %s5, %s3853
          %s3855 = sshll.u32 %s3845, 4
          %s3856 = int_to_ptr.vmem [resolvable:$true] %s3855
          %3861 = dma.vmem_to_hbm [thread:$0]  %s3856, 256, %s3854, %s3842, 128, 128, 8
        $region44: #{tpu_custom_call.1} parent=39 // pred_fallthru
          _
      $region40: #{tpu_custom_call.1} parent=5 // pred_fallthru
        _
      %p3862 = scmp.le.s32.totalorder 2, %s14
      // Predicated region
      $region45: #{tpu_custom_call.1} parent=5 // pred_check
        %p3863 = pneg %p3862
      $region46: #{tpu_custom_call.1} parent=5 // pred_check_branch
        %3865 = sbr.rel (%p3863) target = $region48
      $region47: #{tpu_custom_call.1} parent=5 // pred_region
        %s3866 = ssub.s32 %s14, 2
        // Predicated region
        $region49: #{tpu_custom_call.1} parent=47 // pred_check
          %p3867 = pneg %p153
        $region50: #{tpu_custom_call.1} parent=47 // pred_check_branch
          %3869 = sbr.rel (%p3867) target = $region52
        $region51: #{tpu_custom_call.1} parent=47 // pred_region
          %s3870 = sand.u32 %s138, 1
          %s3871 = scalar_lea.sflag [#allocation8], %s3870
          %s3872 = sand.u32 %s138, 1
          %s3873 = smul.addr %s3872, 16
          %s3874 = scalar_lea.vmem [#allocation7], %s3873
          %3875 = dma.done %s3871, 256
        $region52: #{tpu_custom_call.1} parent=47 // pred_fallthru
          _
      $region48: #{tpu_custom_call.1} parent=5 // pred_fallthru
        _
    $region6: #{tpu_custom_call.1} parent=1 // loop_footer
      %s18 = sadd.s32 1, %s14
    $region7: #{tpu_custom_call.1} parent=1 // loop_footer_branch
      %13 = sbr.rel target = $region3
    $region8: #{tpu_custom_call.1} parent=1 // loop_exit
      _
    %3876 = vsyncpa [#allocation8], 1
    %s3877 = scalar_lea.sflag [#allocation8], 1
    %3878 = vsyncpa %s3877, 1

</llo_original>
